<compile_context>
chip_gen: v7x
topology: tpu7x:2x2x1
jax: 0.10.0
libtpu: 0.0.40
codegen_flags: <defaults>
</compile_context>

<pallas_src>
import jax
import jax.numpy as jnp
from jax.experimental import pallas as pl
from jax.experimental.pallas import tpu as pltpu


# ------------------------- shared math helpers -------------------------

def _layer_norm(x, gamma, beta, eps=1e-5):
    mu = jnp.mean(x, axis=-1, keepdims=True)
    var = jnp.mean(jnp.square(x - mu), axis=-1, keepdims=True)
    return (x - mu) * jax.lax.rsqrt(var + eps) * gamma + beta


def _bfdot(a, b):
    # bf16 operands, f32 accumulation (mirrors the in-kernel MXU usage).
    return jnp.dot(a.astype(jnp.bfloat16), b.astype(jnp.bfloat16),
                   preferred_element_type=jnp.float32)


def _output_head(pooled, params):
    # output_mlp: Linear(d_model, 2)   (kept in XLA -> kernel output stays lane-dense)
    return jnp.dot(pooled, params["wout"].T) + params["bout"]


def _pick_block(n, preferred):
    for c in preferred:
        if c <= n and n % c == 0:
            return c
    return n


def _pick_time_chunk(s):
    if s <= 32:
        return s
    for c in (32, 16, 8, 4, 2):
        if s % c == 0:
            return c
    return 1


# ------------------------- Pallas kernels -------------------------

def _embed_gates_kernel(x_ref, w1t_ref, b1_ref, g1_ref, be1_ref,
                        w2t_ref, b2_ref, g2_ref, be2_ref,
                        wih0t_ref, bih0_ref, g0_ref):
    """embbedding1 MLP fused with the GRU layer-0 input projection."""
    bf = jnp.bfloat16
    x = x_ref[...]
    h = jnp.dot(x.astype(bf), w1t_ref[...],
                preferred_element_type=jnp.float32) + b1_ref[...]
    h = jax.nn.relu(_layer_norm(h, g1_ref[...], be1_ref[...]))
    h = jnp.dot(h.astype(bf), w2t_ref[...],
                preferred_element_type=jnp.float32) + b2_ref[...]
    h = jax.nn.relu(_layer_norm(h, g2_ref[...], be2_ref[...]))
    # Hoisted GRU layer-0 input gates (r,z,n), input bias folded in.
    g0_ref[...] = jnp.dot(h.astype(bf), wih0t_ref[...],
                          preferred_element_type=jnp.float32) + bih0_ref[...]


def _gru_attnpool_kernel(g0_ref, len_ref, wiht_ref, whht_ref, bih_ref, bhh_ref,
                         ww_ref, bw_ref, pooled_ref,
                         h_scr, m_scr, l_scr, acc_scr):
    """Multi-layer GRU recurrence + masked softmax attention pooling.

    Grid: (batch_block [parallel], time_chunk [arbitrary]).
    g0_ref holds precomputed layer-0 gate inputs for this time chunk.
    """
    bf = jnp.bfloat16
    c = pl.program_id(1)
    t_chunk = g0_ref.shape[0]
    num_layers = whht_ref.shape[0]
    d = h_scr.shape[-1]

    @pl.when(c == 0)
    def _():
        h_scr[...] = jnp.zeros_like(h_scr)
        m_scr[...] = jnp.full_like(m_scr, -jnp.inf)
        l_scr[...] = jnp.zeros_like(l_scr)
        acc_scr[...] = jnp.zeros_like(acc_scr)

    lens = len_ref[...]                                   # (Bb, 1) int32

    for tt in range(t_chunk):                             # static unroll over the chunk
        t = c * t_chunk + tt
        x_in = None
        for l in range(num_layers):                       # static unroll over layers
            if l == 0:
                gi = g0_ref[tt]                           # precomputed x@W_ih0^T + b_ih0
            else:
                gi = jnp.dot(x_in.astype(bf), wiht_ref[l],
                             preferred_element_type=jnp.float32) + bih_ref[l]
            h_prev = h_scr[l]
            gh = jnp.dot(h_prev.astype(bf), whht_ref[l],
                         preferred_element_type=jnp.float32) + bhh_ref[l]
            # PyTorch GRU gate order: r, z, n
            r = jax.nn.sigmoid(gi[:, 0 * d:1 * d] + gh[:, 0 * d:1 * d])
            z = jax.nn.sigmoid(gi[:, 1 * d:2 * d] + gh[:, 1 * d:2 * d])
            n = jnp.tanh(gi[:, 2 * d:3 * d] + r * gh[:, 2 * d:3 * d])
            h_new = (1.0 - z) * n + z * h_prev
            h_scr[l] = h_new
            x_in = h_new

        # weight_layer score + length-masked online-softmax accumulation.
        s = jnp.sum(x_in * ww_ref[...], axis=-1, keepdims=True) + bw_ref[...]
        valid = t < lens                                  # (Bb, 1) bool
        m_old = m_scr[...]
        m_new = jnp.where(valid, jnp.maximum(m_old, s), m_old)
        alpha = jnp.where(valid, jnp.exp(m_old - m_new), 1.0)
        p = jnp.where(valid, jnp.exp(s - m_new), 0.0)
        l_scr[...] = alpha * l_scr[...] + p
        acc_scr[...] = alpha * acc_scr[...] + p * x_in
        m_scr[...] = m_new

    @pl.when(c == pl.num_programs(1) - 1)
    def _():
        # zero-length rows give 0/0 = NaN, matching softmax over an all -inf row.
        pooled_ref[...] = acc_scr[...] / l_scr[...]


# ------------------------- wrapper -------------------------

def gru_self_forward(params, input_seqs, lengths):
    """GRUSelf.forward (eval).  masks / seq_time_step / code_masks are unused."""
    B, S, V = input_seqs.shape
    D = params["w1"].shape[0]
    L = params["wih"].shape[0]
    G = 3 * D
    bf = jnp.bfloat16

    # ---- one-time weight relayout: pre-transpose + pre-cast MXU operands ----
    w1t = params["w1"].T.astype(bf)                            # (V, D)
    w2t = params["w2"].T.astype(bf)                            # (D, D)
    wiht = jnp.transpose(params["wih"], (0, 2, 1)).astype(bf)  # (L, D, 3D)
    whht = jnp.transpose(params["whh"], (0, 2, 1)).astype(bf)  # (L, D, 3D)

    # ---- kernel 1: embedding MLP + hoisted layer-0 GRU input projection ----
    # TODO(synk): the raw-input transpose to time-major is the one remaining XLA
    # relayout; folding it into the kernel needs an in-kernel sublane transpose.
    x_tm = jnp.transpose(input_seqs, (1, 0, 2)).reshape(S * B, V)
    rows = S * B
    R = _pick_block(rows, (512, 256, 128, 64, 32, 16, 8))

    g0_flat = pl.pallas_call(
        _embed_gates_kernel,
        out_shape=jax.ShapeDtypeStruct((rows, G), jnp.float32),
        grid=(rows // R,),
        in_specs=[
            pl.BlockSpec((R, V), lambda i: (i, 0)),   # input rows
            pl.BlockSpec((V, D), lambda i: (0, 0)),   # W1^T
            pl.BlockSpec((1, D), lambda i: (0, 0)),   # b1
            pl.BlockSpec((1, D), lambda i: (0, 0)),   # ln1 gamma
            pl.BlockSpec((1, D), lambda i: (0, 0)),   # ln1 beta
            pl.BlockSpec((D, D), lambda i: (0, 0)),   # W2^T
            pl.BlockSpec((1, D), lambda i: (0, 0)),   # b2
            pl.BlockSpec((1, D), lambda i: (0, 0)),   # ln2 gamma
            pl.BlockSpec((1, D), lambda i: (0, 0)),   # ln2 beta
            pl.BlockSpec((D, G), lambda i: (0, 0)),   # W_ih0^T
            pl.BlockSpec((1, G), lambda i: (0, 0)),   # b_ih0
        ],
        out_specs=pl.BlockSpec((R, G), lambda i: (i, 0)),
        compiler_params=pltpu.CompilerParams(
            dimension_semantics=("parallel",),
            vmem_limit_bytes=32 * 1024 * 1024),
    )(x_tm, w1t, params["b1"], params["g1"], params["be1"],
      w2t, params["b2"], params["g2"], params["be2"],
      wiht[0], params["bih"][0])

    g0 = g0_flat.reshape(S, B, G)     # time-major gate slab; free reshape
    # dropout / emb_dropout: identity in eval mode.

    # ---- kernel 2: GRU recurrence + masked attention pooling ----
    t_chunk = _pick_time_chunk(S)
    n_bblk = 2 if (B % 16 == 0) else 1     # parallel batch blocks (v7x 2 TCs)
    b_blk = B // n_bblk
    lens2d = lengths.reshape(B, 1).astype(jnp.int32)

    pooled = pl.pallas_call(
        _gru_attnpool_kernel,
        out_shape=jax.ShapeDtypeStruct((B, D), jnp.float32),
        grid_spec=pltpu.PrefetchScalarGridSpec(
            num_scalar_prefetch=0,
            grid=(n_bblk, S // t_chunk),
            in_specs=[
                pl.BlockSpec((t_chunk, b_blk, G), lambda bb, c: (c, bb, 0)),  # g0
                pl.BlockSpec((b_blk, 1), lambda bb, c: (bb, 0)),              # lengths
                pl.BlockSpec((L, D, G), lambda bb, c: (0, 0, 0)),             # W_ih^T (layers>0)
                pl.BlockSpec((L, D, G), lambda bb, c: (0, 0, 0)),             # W_hh^T
                pl.BlockSpec((L, 1, G), lambda bb, c: (0, 0, 0)),             # b_ih
                pl.BlockSpec((L, 1, G), lambda bb, c: (0, 0, 0)),             # b_hh
                pl.BlockSpec((1, D), lambda bb, c: (0, 0)),                   # weight_layer W
                pl.BlockSpec((1, 1), lambda bb, c: (0, 0)),                   # weight_layer b
            ],
            out_specs=pl.BlockSpec((b_blk, D), lambda bb, c: (bb, 0)),
            scratch_shapes=[
                pltpu.VMEM((L, b_blk, D), jnp.float32),   # hidden state per layer
                pltpu.VMEM((b_blk, 1), jnp.float32),      # running max (online softmax)
                pltpu.VMEM((b_blk, 1), jnp.float32),      # running denominator
                pltpu.VMEM((b_blk, D), jnp.float32),      # running weighted sum
            ],
        ),
        compiler_params=pltpu.CompilerParams(
            dimension_semantics=("parallel", "arbitrary"),
            vmem_limit_bytes=32 * 1024 * 1024),
    )(g0, lens2d, wiht, whht, params["bih"], params["bhh"],
      params["ww"], params["bw"])

    return _output_head(pooled, params)


# ------------------------- params + reference -------------------------

def init_params(key, vocab_size, d_model, num_layers):
    ks = jax.random.split(key, 12)

    def unif(k, shape, fan_in):
        bound = 1.0 / jnp.sqrt(jnp.float32(fan_in))
        return jax.random.uniform(k, shape, jnp.float32, -bound, bound)

    D = d_model
    return dict(
        # embbedding1: Linear(V,D) -> LayerNorm -> ReLU -> Linear(D,D) -> LayerNorm -> ReLU
        w1=unif(ks[0], (D, vocab_size), vocab_size),
        b1=unif(ks[1], (1, D), vocab_size),
        g1=jnp.ones((1, D), jnp.float32),
        be1=jnp.zeros((1, D), jnp.float32),
        w2=unif(ks[2], (D, D), D),
        b2=unif(ks[3], (1, D), D),
        g2=jnp.ones((1, D), jnp.float32),
        be2=jnp.zeros((1, D), jnp.float32),
        # nn.GRU (gate order r,z,n): weight_ih/weight_hh are (3D, D) per layer
        wih=unif(ks[4], (num_layers, 3 * D, D), D),
        whh=unif(ks[5], (num_layers, 3 * D, D), D),
        bih=unif(ks[6], (num_layers, 1, 3 * D), D),
        bhh=unif(ks[7], (num_layers, 1, 3 * D), D),
        # weight_layer: Linear(D, 1)
        ww=unif(ks[8], (1, D), D),
        bw=unif(ks[9], (1, 1), D),
        # output_mlp: Linear(D, 2)
        wout=unif(ks[10], (2, D), D),
        bout=unif(ks[11], (1, 2), D),
    )


def ref_forward(params, input_seqs, lengths):
    """Pure-JAX reference mirroring the kernel numerics (bf16 MXU, f32 acc)."""
    B, S, V = input_seqs.shape
    D = params["w1"].shape[0]
    L = params["wih"].shape[0]

    x = _bfdot(input_seqs.reshape(B * S, V), params["w1"].T) + params["b1"]
    x = jax.nn.relu(_layer_norm(x, params["g1"], params["be1"]))
    x = _bfdot(x, params["w2"].T) + params["b2"]
    x = jax.nn.relu(_layer_norm(x, params["g2"], params["be2"]))
    x = x.reshape(B, S, D)

    h = [jnp.zeros((B, D), jnp.float32) for _ in range(L)]
    outs = []
    for t in range(S):
        inp = x[:, t, :]
        for l in range(L):
            gi = _bfdot(inp, params["wih"][l].T) + params["bih"][l]
            gh = _bfdot(h[l], params["whh"][l].T) + params["bhh"][l]
            r = jax.nn.sigmoid(gi[:, :D] + gh[:, :D])
            z = jax.nn.sigmoid(gi[:, D:2 * D] + gh[:, D:2 * D])
            n = jnp.tanh(gi[:, 2 * D:] + r * gh[:, 2 * D:])
            h[l] = (1.0 - z) * n + z * h[l]
            inp = h[l]
        outs.append(inp)
    rnn_out = jnp.stack(outs, axis=1)                       # (B, S, D)

    scores = jnp.sum(rnn_out * params["ww"][0], axis=-1) + params["bw"][0, 0]
    mask = jnp.arange(S)[None, :] < lengths[:, None]
    scores = jnp.where(mask, scores, -jnp.inf)
    att = jax.nn.softmax(scores, axis=1)                    # (B, S)
    pooled = jnp.sum(att[:, :, None] * rnn_out, axis=1)     # (B, D)
    return _output_head(pooled, params)


if __name__ == "__main__":
    vocab_size, d_model, num_layers = 16, 32, 2
    batch, seq_len = 2, 8

    key = jax.random.PRNGKey(0)
    kp, kx = jax.random.split(key)
    params = init_params(kp, vocab_size, d_model, num_layers)
    input_seqs = jax.random.uniform(kx, (batch, seq_len, vocab_size), jnp.float32)
    lengths = jnp.array([seq_len, 5], dtype=jnp.int32)
    # masks / seq_time_step / code_masks are unused by the module's forward.

    fwd = jax.jit(gru_self_forward)
    out = jax.block_until_ready(fwd(params, input_seqs, lengths))

    ref = ref_forward(params, input_seqs, lengths)
    assert out.shape == (batch, 2), out.shape
    assert jnp.allclose(out, ref, rtol=2e-3, atol=2e-3), (out, ref)
    print("KERNEL_OK")
</pallas_src>

<mosaic_0001>
module attributes {stable_mosaic.version = 11 : i64} {
  func.func @_embed_gates_kernel(%arg0: i32, %arg1: memref<16x16xf32, #tpu.memory_space<vmem>>, %arg2: memref<16x32xbf16, #tpu.memory_space<vmem>>, %arg3: memref<1x32xf32, #tpu.memory_space<vmem>>, %arg4: memref<1x32xf32, #tpu.memory_space<vmem>>, %arg5: memref<1x32xf32, #tpu.memory_space<vmem>>, %arg6: memref<32x32xbf16, #tpu.memory_space<vmem>>, %arg7: memref<1x32xf32, #tpu.memory_space<vmem>>, %arg8: memref<1x32xf32, #tpu.memory_space<vmem>>, %arg9: memref<1x32xf32, #tpu.memory_space<vmem>>, %arg10: memref<32x96xbf16, #tpu.memory_space<vmem>>, %arg11: memref<1x96xf32, #tpu.memory_space<vmem>>, %arg12: memref<16x96xf32, #tpu.memory_space<vmem>>) attributes {dimension_semantics = [#tpu.dimension_semantics<parallel>], iteration_bounds = array<i64: 1>, scalar_prefetch = 0 : i64, scratch_operands = 0 : i64, tpu.core_type = #tpu.core_type<tc>, window_params = [{transform_indices = @transform_0, window_bounds = array<i64: 16, 16>}, {pipeline_mode = #tpu.pipeline_mode<synchronous>, transform_indices = @transform_1, window_bounds = array<i64: 16, 32>}, {pipeline_mode = #tpu.pipeline_mode<synchronous>, transform_indices = @transform_2, window_bounds = array<i64: 1, 32>}, {pipeline_mode = #tpu.pipeline_mode<synchronous>, transform_indices = @transform_3, window_bounds = array<i64: 1, 32>}, {pipeline_mode = #tpu.pipeline_mode<synchronous>, transform_indices = @transform_4, window_bounds = array<i64: 1, 32>}, {pipeline_mode = #tpu.pipeline_mode<synchronous>, transform_indices = @transform_5, window_bounds = array<i64: 32, 32>}, {pipeline_mode = #tpu.pipeline_mode<synchronous>, transform_indices = @transform_6, window_bounds = array<i64: 1, 32>}, {pipeline_mode = #tpu.pipeline_mode<synchronous>, transform_indices = @transform_7, window_bounds = array<i64: 1, 32>}, {pipeline_mode = #tpu.pipeline_mode<synchronous>, transform_indices = @transform_8, window_bounds = array<i64: 1, 32>}, {pipeline_mode = #tpu.pipeline_mode<synchronous>, transform_indices = @transform_9, window_bounds = array<i64: 32, 96>}, {pipeline_mode = #tpu.pipeline_mode<synchronous>, transform_indices = @transform_10, window_bounds = array<i64: 1, 96>}, {transform_indices = @transform_11, window_bounds = array<i64: 16, 96>}]} {
    %c0 = arith.constant 0 : index
    %c0_0 = arith.constant 0 : index
    %0 = vector.load %arg1[%c0, %c0_0] : memref<16x16xf32, #tpu.memory_space<vmem>>, vector<16x16xf32>
    %1 = arith.truncf %0 : vector<16x16xf32> to vector<16x16xbf16>
    %c0_1 = arith.constant 0 : index
    %c0_2 = arith.constant 0 : index
    %2 = vector.load %arg2[%c0_1, %c0_2] : memref<16x32xbf16, #tpu.memory_space<vmem>>, vector<16x32xbf16>
    %cst = arith.constant dense<0.000000e+00> : vector<16x32xf32>
    %3 = tpu.matmul %1, %2, %cst {dimension_numbers = #tpu.dot_dimension_numbers<[1], [0], [0], [1], [0, 0, 1, 1], [], []>} : vector<16x16xbf16>, vector<16x32xbf16>, vector<16x32xf32> -> vector<16x32xf32>
    %c0_3 = arith.constant 0 : index
    %c0_4 = arith.constant 0 : index
    %4 = vector.load %arg3[%c0_3, %c0_4] : memref<1x32xf32, #tpu.memory_space<vmem>>, vector<1x32xf32>
    %5 = vector.broadcast %4 : vector<1x32xf32> to vector<16x32xf32>
    %6 = arith.addf %3, %5 : vector<16x32xf32>
    %c0_5 = arith.constant 0 : index
    %c0_6 = arith.constant 0 : index
    %7 = vector.load %arg4[%c0_5, %c0_6] : memref<1x32xf32, #tpu.memory_space<vmem>>, vector<1x32xf32>
    %c0_7 = arith.constant 0 : index
    %c0_8 = arith.constant 0 : index
    %8 = vector.load %arg5[%c0_7, %c0_8] : memref<1x32xf32, #tpu.memory_space<vmem>>, vector<1x32xf32>
    %cst_9 = arith.constant dense<0.000000e+00> : vector<16xf32>
    %9 = vector.multi_reduction <add>, %6, %cst_9 [1] : vector<16x32xf32> to vector<16xf32>
    %10 = vector.shape_cast %9 : vector<16xf32> to vector<16x1xf32>
    %cst_10 = arith.constant 3.200000e+01 : f32
    %11 = vector.broadcast %cst_10 : f32 to vector<16x1xf32>
    %12 = arith.divf %10, %11 : vector<16x1xf32>
    %13 = vector.broadcast %12 : vector<16x1xf32> to vector<16x32xf32>
    %14 = arith.subf %6, %13 : vector<16x32xf32>
    %15 = arith.mulf %14, %14 : vector<16x32xf32>
    %cst_11 = arith.constant dense<0.000000e+00> : vector<16xf32>
    %16 = vector.multi_reduction <add>, %15, %cst_11 [1] : vector<16x32xf32> to vector<16xf32>
    %17 = vector.shape_cast %16 : vector<16xf32> to vector<16x1xf32>
    %cst_12 = arith.constant 3.200000e+01 : f32
    %18 = vector.broadcast %cst_12 : f32 to vector<16x1xf32>
    %19 = arith.divf %17, %18 : vector<16x1xf32>
    %20 = vector.broadcast %12 : vector<16x1xf32> to vector<16x32xf32>
    %21 = arith.subf %6, %20 : vector<16x32xf32>
    %cst_13 = arith.constant 9.99999974E-6 : f32
    %22 = vector.broadcast %cst_13 : f32 to vector<16x1xf32>
    %23 = arith.addf %19, %22 : vector<16x1xf32>
    %24 = math.rsqrt %23 : vector<16x1xf32>
    %25 = vector.broadcast %24 : vector<16x1xf32> to vector<16x32xf32>
    %26 = arith.mulf %21, %25 : vector<16x32xf32>
    %27 = vector.broadcast %7 : vector<1x32xf32> to vector<16x32xf32>
    %28 = arith.mulf %26, %27 : vector<16x32xf32>
    %29 = vector.broadcast %8 : vector<1x32xf32> to vector<16x32xf32>
    %30 = arith.addf %28, %29 : vector<16x32xf32>
    %cst_14 = arith.constant 0.000000e+00 : f32
    %31 = vector.broadcast %cst_14 : f32 to vector<16x32xf32>
    %32 = arith.maximumf %30, %31 : vector<16x32xf32>
    %33 = arith.truncf %32 : vector<16x32xf32> to vector<16x32xbf16>
    %c0_15 = arith.constant 0 : index
    %c0_16 = arith.constant 0 : index
    %34 = vector.load %arg6[%c0_15, %c0_16] : memref<32x32xbf16, #tpu.memory_space<vmem>>, vector<32x32xbf16>
    %cst_17 = arith.constant dense<0.000000e+00> : vector<16x32xf32>
    %35 = tpu.matmul %33, %34, %cst_17 {dimension_numbers = #tpu.dot_dimension_numbers<[1], [0], [0], [1], [0, 0, 1, 1], [], []>} : vector<16x32xbf16>, vector<32x32xbf16>, vector<16x32xf32> -> vector<16x32xf32>
    %c0_18 = arith.constant 0 : index
    %c0_19 = arith.constant 0 : index
    %36 = vector.load %arg7[%c0_18, %c0_19] : memref<1x32xf32, #tpu.memory_space<vmem>>, vector<1x32xf32>
    %37 = vector.broadcast %36 : vector<1x32xf32> to vector<16x32xf32>
    %38 = arith.addf %35, %37 : vector<16x32xf32>
    %c0_20 = arith.constant 0 : index
    %c0_21 = arith.constant 0 : index
    %39 = vector.load %arg8[%c0_20, %c0_21] : memref<1x32xf32, #tpu.memory_space<vmem>>, vector<1x32xf32>
    %c0_22 = arith.constant 0 : index
    %c0_23 = arith.constant 0 : index
    %40 = vector.load %arg9[%c0_22, %c0_23] : memref<1x32xf32, #tpu.memory_space<vmem>>, vector<1x32xf32>
    %cst_24 = arith.constant dense<0.000000e+00> : vector<16xf32>
    %41 = vector.multi_reduction <add>, %38, %cst_24 [1] : vector<16x32xf32> to vector<16xf32>
    %42 = vector.shape_cast %41 : vector<16xf32> to vector<16x1xf32>
    %cst_25 = arith.constant 3.200000e+01 : f32
    %43 = vector.broadcast %cst_25 : f32 to vector<16x1xf32>
    %44 = arith.divf %42, %43 : vector<16x1xf32>
    %45 = vector.broadcast %44 : vector<16x1xf32> to vector<16x32xf32>
    %46 = arith.subf %38, %45 : vector<16x32xf32>
    %47 = arith.mulf %46, %46 : vector<16x32xf32>
    %cst_26 = arith.constant dense<0.000000e+00> : vector<16xf32>
    %48 = vector.multi_reduction <add>, %47, %cst_26 [1] : vector<16x32xf32> to vector<16xf32>
    %49 = vector.shape_cast %48 : vector<16xf32> to vector<16x1xf32>
    %cst_27 = arith.constant 3.200000e+01 : f32
    %50 = vector.broadcast %cst_27 : f32 to vector<16x1xf32>
    %51 = arith.divf %49, %50 : vector<16x1xf32>
    %52 = vector.broadcast %44 : vector<16x1xf32> to vector<16x32xf32>
    %53 = arith.subf %38, %52 : vector<16x32xf32>
    %cst_28 = arith.constant 9.99999974E-6 : f32
    %54 = vector.broadcast %cst_28 : f32 to vector<16x1xf32>
    %55 = arith.addf %51, %54 : vector<16x1xf32>
    %56 = math.rsqrt %55 : vector<16x1xf32>
    %57 = vector.broadcast %56 : vector<16x1xf32> to vector<16x32xf32>
    %58 = arith.mulf %53, %57 : vector<16x32xf32>
    %59 = vector.broadcast %39 : vector<1x32xf32> to vector<16x32xf32>
    %60 = arith.mulf %58, %59 : vector<16x32xf32>
    %61 = vector.broadcast %40 : vector<1x32xf32> to vector<16x32xf32>
    %62 = arith.addf %60, %61 : vector<16x32xf32>
    %cst_29 = arith.constant 0.000000e+00 : f32
    %63 = vector.broadcast %cst_29 : f32 to vector<16x32xf32>
    %64 = arith.maximumf %62, %63 : vector<16x32xf32>
    %65 = arith.truncf %64 : vector<16x32xf32> to vector<16x32xbf16>
    %c0_30 = arith.constant 0 : index
    %c0_31 = arith.constant 0 : index
    %66 = vector.load %arg10[%c0_30, %c0_31] : memref<32x96xbf16, #tpu.memory_space<vmem>>, vector<32x96xbf16>
    %cst_32 = arith.constant dense<0.000000e+00> : vector<16x96xf32>
    %67 = tpu.matmul %65, %66, %cst_32 {dimension_numbers = #tpu.dot_dimension_numbers<[1], [0], [0], [1], [0, 0, 1, 1], [], []>} : vector<16x32xbf16>, vector<32x96xbf16>, vector<16x96xf32> -> vector<16x96xf32>
    %c0_33 = arith.constant 0 : index
    %c0_34 = arith.constant 0 : index
    %68 = vector.load %arg11[%c0_33, %c0_34] : memref<1x96xf32, #tpu.memory_space<vmem>>, vector<1x96xf32>
    %69 = vector.broadcast %68 : vector<1x96xf32> to vector<16x96xf32>
    %70 = arith.addf %67, %69 : vector<16x96xf32>
    %c0_35 = arith.constant 0 : index
    %c0_36 = arith.constant 0 : index
    %71 = vector.load %arg12[%c0_35, %c0_36] : memref<16x96xf32, #tpu.memory_space<vmem>>, vector<16x96xf32>
    tpu.vector_store %arg12[%c0_35, %c0_36], %70 {strides = array<i32>} : memref<16x96xf32, #tpu.memory_space<vmem>>, vector<16x96xf32>,
    return
  }
  func.func @transform_0(%arg0: i32) -> (i32, i32) {
    %c0_i32 = arith.constant 0 : i32
    %c0_i32_0 = arith.constant 0 : i32
    return %arg0, %c0_i32 : i32, i32
  }
  func.func @transform_1(%arg0: i32) -> (i32, i32) {
    %c0_i32 = arith.constant 0 : i32
    %c0_i32_0 = arith.constant 0 : i32
    %c0_i32_1 = arith.constant 0 : i32
    return %c0_i32, %c0_i32_0 : i32, i32
  }
  func.func @transform_2(%arg0: i32) -> (i32, i32) {
    %c0_i32 = arith.constant 0 : i32
    %c0_i32_0 = arith.constant 0 : i32
    %c0_i32_1 = arith.constant 0 : i32
    return %c0_i32, %c0_i32_0 : i32, i32
  }
  func.func @transform_3(%arg0: i32) -> (i32, i32) {
    %c0_i32 = arith.constant 0 : i32
    %c0_i32_0 = arith.constant 0 : i32
    %c0_i32_1 = arith.constant 0 : i32
    return %c0_i32, %c0_i32_0 : i32, i32
  }
  func.func @transform_4(%arg0: i32) -> (i32, i32) {
    %c0_i32 = arith.constant 0 : i32
    %c0_i32_0 = arith.constant 0 : i32
    %c0_i32_1 = arith.constant 0 : i32
    return %c0_i32, %c0_i32_0 : i32, i32
  }
  func.func @transform_5(%arg0: i32) -> (i32, i32) {
    %c0_i32 = arith.constant 0 : i32
    %c0_i32_0 = arith.constant 0 : i32
    %c0_i32_1 = arith.constant 0 : i32
    return %c0_i32, %c0_i32_0 : i32, i32
  }
  func.func @transform_6(%arg0: i32) -> (i32, i32) {
    %c0_i32 = arith.constant 0 : i32
    %c0_i32_0 = arith.constant 0 : i32
    %c0_i32_1 = arith.constant 0 : i32
    return %c0_i32, %c0_i32_0 : i32, i32
  }
  func.func @transform_7(%arg0: i32) -> (i32, i32) {
    %c0_i32 = arith.constant 0 : i32
    %c0_i32_0 = arith.constant 0 : i32
    %c0_i32_1 = arith.constant 0 : i32
    return %c0_i32, %c0_i32_0 : i32, i32
  }
  func.func @transform_8(%arg0: i32) -> (i32, i32) {
    %c0_i32 = arith.constant 0 : i32
    %c0_i32_0 = arith.constant 0 : i32
    %c0_i32_1 = arith.constant 0 : i32
    return %c0_i32, %c0_i32_0 : i32, i32
  }
  func.func @transform_9(%arg0: i32) -> (i32, i32) {
    %c0_i32 = arith.constant 0 : i32
    %c0_i32_0 = arith.constant 0 : i32
    %c0_i32_1 = arith.constant 0 : i32
    return %c0_i32, %c0_i32_0 : i32, i32
  }
  func.func @transform_10(%arg0: i32) -> (i32, i32) {
    %c0_i32 = arith.constant 0 : i32
    %c0_i32_0 = arith.constant 0 : i32
    %c0_i32_1 = arith.constant 0 : i32
    return %c0_i32, %c0_i32_0 : i32, i32
  }
  func.func @transform_11(%arg0: i32) -> (i32, i32) {
    %c0_i32 = arith.constant 0 : i32
    %c0_i32_0 = arith.constant 0 : i32
    return %arg0, %c0_i32 : i32, i32
  }
}

module attributes {stable_mosaic.version = 11 : i64} {
  func.func @_gru_attnpool_kernel(%arg0: i32, %arg1: i32, %arg2: memref<8x2x96xf32, #tpu.memory_space<vmem>>, %arg3: memref<2x1xi32, #tpu.memory_space<vmem>>, %arg4: memref<2x32x96xbf16, #tpu.memory_space<vmem>>, %arg5: memref<2x32x96xbf16, #tpu.memory_space<vmem>>, %arg6: memref<2x1x96xf32, #tpu.memory_space<vmem>>, %arg7: memref<2x1x96xf32, #tpu.memory_space<vmem>>, %arg8: memref<1x32xf32, #tpu.memory_space<vmem>>, %arg9: memref<1x1xf32, #tpu.memory_space<vmem>>, %arg10: memref<2x32xf32, #tpu.memory_space<vmem>>, %arg11: memref<2x2x32xf32, #tpu.memory_space<vmem>>, %arg12: memref<2x1xf32, #tpu.memory_space<vmem>>, %arg13: memref<2x1xf32, #tpu.memory_space<vmem>>, %arg14: memref<2x32xf32, #tpu.memory_space<vmem>>) attributes {dimension_semantics = [#tpu.dimension_semantics<parallel>, #tpu.dimension_semantics<arbitrary>], iteration_bounds = array<i64: 1, 1>, scalar_prefetch = 0 : i64, scratch_operands = 4 : i64, tpu.core_type = #tpu.core_type<tc>, window_params = [{transform_indices = @transform_0, window_bounds = array<i64: 8, 2, 96>}, {transform_indices = @transform_1, window_bounds = array<i64: 2, 1>}, {pipeline_mode = #tpu.pipeline_mode<synchronous>, transform_indices = @transform_2, window_bounds = array<i64: 2, 32, 96>}, {pipeline_mode = #tpu.pipeline_mode<synchronous>, transform_indices = @transform_3, window_bounds = array<i64: 2, 32, 96>}, {pipeline_mode = #tpu.pipeline_mode<synchronous>, transform_indices = @transform_4, window_bounds = array<i64: 2, 1, 96>}, {pipeline_mode = #tpu.pipeline_mode<synchronous>, transform_indices = @transform_5, window_bounds = array<i64: 2, 1, 96>}, {pipeline_mode = #tpu.pipeline_mode<synchronous>, transform_indices = @transform_6, window_bounds = array<i64: 1, 32>}, {pipeline_mode = #tpu.pipeline_mode<synchronous>, transform_indices = @transform_7, window_bounds = array<i64: 1, 1>}, {transform_indices = @transform_8, window_bounds = array<i64: 2, 32>}]} {
    %c0_i32 = arith.constant 0 : i32
    %0 = arith.cmpi eq, %arg1, %c0_i32 : i32
    %1 = arith.extui %0 : i1 to i32
    %c0_i32_0 = arith.constant 0 : i32
    %2 = arith.cmpi ne, %1, %c0_i32_0 : i32
    scf.if %2 {
      %cst_492 = arith.constant 0.000000e+00 : f32
      %991 = vector.broadcast %cst_492 : f32 to vector<2x2x32xf32>
      %c0_493 = arith.constant 0 : index
      %c0_494 = arith.constant 0 : index
      %c0_495 = arith.constant 0 : index
      %992 = vector.load %arg11[%c0_493, %c0_494, %c0_495] : memref<2x2x32xf32, #tpu.memory_space<vmem>>, vector<2x2x32xf32>
      tpu.vector_store %arg11[%c0_493, %c0_494, %c0_495], %991 {strides = array<i32>} : memref<2x2x32xf32, #tpu.memory_space<vmem>>, vector<2x2x32xf32>,
      %cst_496 = arith.constant 0xFF800000 : f32
      %993 = vector.broadcast %cst_496 : f32 to vector<2x1xf32>
      %c0_497 = arith.constant 0 : index
      %c0_498 = arith.constant 0 : index
      %994 = vector.load %arg12[%c0_497, %c0_498] : memref<2x1xf32, #tpu.memory_space<vmem>>, vector<2x1xf32>
      tpu.vector_store %arg12[%c0_497, %c0_498], %993 {strides = array<i32>} : memref<2x1xf32, #tpu.memory_space<vmem>>, vector<2x1xf32>,
      %cst_499 = arith.constant 0.000000e+00 : f32
      %995 = vector.broadcast %cst_499 : f32 to vector<2x1xf32>
      %c0_500 = arith.constant 0 : index
      %c0_501 = arith.constant 0 : index
      %996 = vector.load %arg13[%c0_500, %c0_501] : memref<2x1xf32, #tpu.memory_space<vmem>>, vector<2x1xf32>
      tpu.vector_store %arg13[%c0_500, %c0_501], %995 {strides = array<i32>} : memref<2x1xf32, #tpu.memory_space<vmem>>, vector<2x1xf32>,
      %cst_502 = arith.constant 0.000000e+00 : f32
      %997 = vector.broadcast %cst_502 : f32 to vector<2x32xf32>
      %c0_503 = arith.constant 0 : index
      %c0_504 = arith.constant 0 : index
      %998 = vector.load %arg14[%c0_503, %c0_504] : memref<2x32xf32, #tpu.memory_space<vmem>>, vector<2x32xf32>
      tpu.vector_store %arg14[%c0_503, %c0_504], %997 {strides = array<i32>} : memref<2x32xf32, #tpu.memory_space<vmem>>, vector<2x32xf32>,
    } else {
    }
    %c0 = arith.constant 0 : index
    %c0_1 = arith.constant 0 : index
    %3 = vector.load %arg3[%c0, %c0_1] : memref<2x1xi32, #tpu.memory_space<vmem>>, vector<2x1xi32>
    %c8_i32 = arith.constant 8 : i32
    %4 = arith.muli %arg1, %c8_i32 : i32
    %c0_i32_2 = arith.constant 0 : i32
    %5 = arith.addi %4, %c0_i32_2 : i32
    %c0_3 = arith.constant 0 : index
    %c0_4 = arith.constant 0 : index
    %c0_5 = arith.constant 0 : index
    %6 = vector.load %arg2[%c0_3, %c0_4, %c0_5] : memref<8x2x96xf32, #tpu.memory_space<vmem>>, vector<1x2x96xf32>
    %7 = vector.shape_cast %6 : vector<1x2x96xf32> to vector<2x96xf32>
    %c0_6 = arith.constant 0 : index
    %c0_7 = arith.constant 0 : index
    %c0_8 = arith.constant 0 : index
    %8 = vector.load %arg11[%c0_6, %c0_7, %c0_8] : memref<2x2x32xf32, #tpu.memory_space<vmem>>, vector<1x2x32xf32>
    %9 = vector.shape_cast %8 : vector<1x2x32xf32> to vector<2x32xf32>
    %10 = arith.truncf %9 : vector<2x32xf32> to vector<2x32xbf16>
    %c0_9 = arith.constant 0 : index
    %c0_10 = arith.constant 0 : index
    %c0_11 = arith.constant 0 : index
    %11 = vector.load %arg5[%c0_9, %c0_10, %c0_11] : memref<2x32x96xbf16, #tpu.memory_space<vmem>>, vector<1x32x96xbf16>
    %12 = vector.shape_cast %11 : vector<1x32x96xbf16> to vector<32x96xbf16>
    %cst = arith.constant dense<0.000000e+00> : vector<2x96xf32>
    %13 = tpu.matmul %10, %12, %cst {dimension_numbers = #tpu.dot_dimension_numbers<[1], [0], [0], [1], [0, 0, 1, 1], [], []>} : vector<2x32xbf16>, vector<32x96xbf16>, vector<2x96xf32> -> vector<2x96xf32>
    %c0_12 = arith.constant 0 : index
    %c0_13 = arith.constant 0 : index
    %c0_14 = arith.constant 0 : index
    %14 = vector.load %arg7[%c0_12, %c0_13, %c0_14] : memref<2x1x96xf32, #tpu.memory_space<vmem>>, vector<1x1x96xf32>
    %15 = vector.shape_cast %14 : vector<1x1x96xf32> to vector<1x96xf32>
    %16 = vector.broadcast %15 : vector<1x96xf32> to vector<2x96xf32>
    %17 = arith.addf %13, %16 : vector<2x96xf32>
    %18 = vector.extract_strided_slice %7 {offsets = [0, 0], sizes = [2, 32], strides = [1, 1]} : vector<2x96xf32> to vector<2x32xf32>
    %19 = vector.extract_strided_slice %17 {offsets = [0, 0], sizes = [2, 32], strides = [1, 1]} : vector<2x96xf32> to vector<2x32xf32>
    %20 = arith.addf %18, %19 : vector<2x32xf32>
    %21 = arith.negf %20 : vector<2x32xf32>
    %22 = math.exp %21 : vector<2x32xf32>
    %cst_15 = arith.constant 1.000000e+00 : f32
    %23 = vector.broadcast %cst_15 : f32 to vector<2x32xf32>
    %24 = arith.addf %23, %22 : vector<2x32xf32>
    %25 = arith.divf %23, %24 : vector<2x32xf32>
    %26 = vector.extract_strided_slice %7 {offsets = [0, 32], sizes = [2, 32], strides = [1, 1]} : vector<2x96xf32> to vector<2x32xf32>
    %27 = vector.extract_strided_slice %17 {offsets = [0, 32], sizes = [2, 32], strides = [1, 1]} : vector<2x96xf32> to vector<2x32xf32>
    %28 = arith.addf %26, %27 : vector<2x32xf32>
    %29 = arith.negf %28 : vector<2x32xf32>
    %30 = math.exp %29 : vector<2x32xf32>
    %cst_16 = arith.constant 1.000000e+00 : f32
    %31 = vector.broadcast %cst_16 : f32 to vector<2x32xf32>
    %32 = arith.addf %31, %30 : vector<2x32xf32>
    %33 = arith.divf %31, %32 : vector<2x32xf32>
    %34 = vector.extract_strided_slice %7 {offsets = [0, 64], sizes = [2, 32], strides = [1, 1]} : vector<2x96xf32> to vector<2x32xf32>
    %35 = vector.extract_strided_slice %17 {offsets = [0, 64], sizes = [2, 32], strides = [1, 1]} : vector<2x96xf32> to vector<2x32xf32>
    %36 = arith.mulf %25, %35 : vector<2x32xf32>
    %37 = arith.addf %34, %36 : vector<2x32xf32>
    %38 = math.tanh %37 : vector<2x32xf32>
    %cst_17 = arith.constant 1.000000e+00 : f32
    %39 = vector.broadcast %cst_17 : f32 to vector<2x32xf32>
    %40 = arith.subf %39, %33 : vector<2x32xf32>
    %41 = arith.mulf %40, %38 : vector<2x32xf32>
    %42 = arith.mulf %33, %9 : vector<2x32xf32>
    %43 = arith.addf %41, %42 : vector<2x32xf32>
    %c0_18 = arith.constant 0 : index
    %c0_19 = arith.constant 0 : index
    %c0_20 = arith.constant 0 : index
    %44 = vector.load %arg11[%c0_18, %c0_19, %c0_20] : memref<2x2x32xf32, #tpu.memory_space<vmem>>, vector<1x2x32xf32>
    %45 = vector.shape_cast %44 : vector<1x2x32xf32> to vector<2x32xf32>
    %46 = vector.shape_cast %43 : vector<2x32xf32> to vector<1x2x32xf32>
    tpu.vector_store %arg11[%c0_18, %c0_19, %c0_20], %46 {strides = array<i32>} : memref<2x2x32xf32, #tpu.memory_space<vmem>>, vector<1x2x32xf32>,
    %47 = arith.truncf %43 : vector<2x32xf32> to vector<2x32xbf16>
    %c1 = arith.constant 1 : index
    %c0_21 = arith.constant 0 : index
    %c0_22 = arith.constant 0 : index
    %48 = vector.load %arg4[%c1, %c0_21, %c0_22] : memref<2x32x96xbf16, #tpu.memory_space<vmem>>, vector<1x32x96xbf16>
    %49 = vector.shape_cast %48 : vector<1x32x96xbf16> to vector<32x96xbf16>
    %cst_23 = arith.constant dense<0.000000e+00> : vector<2x96xf32>
    %50 = tpu.matmul %47, %49, %cst_23 {dimension_numbers = #tpu.dot_dimension_numbers<[1], [0], [0], [1], [0, 0, 1, 1], [], []>} : vector<2x32xbf16>, vector<32x96xbf16>, vector<2x96xf32> -> vector<2x96xf32>
    %c1_24 = arith.constant 1 : index
    %c0_25 = arith.constant 0 : index
    %c0_26 = arith.constant 0 : index
    %51 = vector.load %arg6[%c1_24, %c0_25, %c0_26] : memref<2x1x96xf32, #tpu.memory_space<vmem>>, vector<1x1x96xf32>
    %52 = vector.shape_cast %51 : vector<1x1x96xf32> to vector<1x96xf32>
    %53 = vector.broadcast %52 : vector<1x96xf32> to vector<2x96xf32>
    %54 = arith.addf %50, %53 : vector<2x96xf32>
    %c1_27 = arith.constant 1 : index
    %c0_28 = arith.constant 0 : index
    %c0_29 = arith.constant 0 : index
    %55 = vector.load %arg11[%c1_27, %c0_28, %c0_29] : memref<2x2x32xf32, #tpu.memory_space<vmem>>, vector<1x2x32xf32>
    %56 = vector.shape_cast %55 : vector<1x2x32xf32> to vector<2x32xf32>
    %57 = arith.truncf %56 : vector<2x32xf32> to vector<2x32xbf16>
    %c1_30 = arith.constant 1 : index
    %c0_31 = arith.constant 0 : index
    %c0_32 = arith.constant 0 : index
    %58 = vector.load %arg5[%c1_30, %c0_31, %c0_32] : memref<2x32x96xbf16, #tpu.memory_space<vmem>>, vector<1x32x96xbf16>
    %59 = vector.shape_cast %58 : vector<1x32x96xbf16> to vector<32x96xbf16>
    %cst_33 = arith.constant dense<0.000000e+00> : vector<2x96xf32>
    %60 = tpu.matmul %57, %59, %cst_33 {dimension_numbers = #tpu.dot_dimension_numbers<[1], [0], [0], [1], [0, 0, 1, 1], [], []>} : vector<2x32xbf16>, vector<32x96xbf16>, vector<2x96xf32> -> vector<2x96xf32>
    %c1_34 = arith.constant 1 : index
    %c0_35 = arith.constant 0 : index
    %c0_36 = arith.constant 0 : index
    %61 = vector.load %arg7[%c1_34, %c0_35, %c0_36] : memref<2x1x96xf32, #tpu.memory_space<vmem>>, vector<1x1x96xf32>
    %62 = vector.shape_cast %61 : vector<1x1x96xf32> to vector<1x96xf32>
    %63 = vector.broadcast %62 : vector<1x96xf32> to vector<2x96xf32>
    %64 = arith.addf %60, %63 : vector<2x96xf32>
    %65 = vector.extract_strided_slice %54 {offsets = [0, 0], sizes = [2, 32], strides = [1, 1]} : vector<2x96xf32> to vector<2x32xf32>
    %66 = vector.extract_strided_slice %64 {offsets = [0, 0], sizes = [2, 32], strides = [1, 1]} : vector<2x96xf32> to vector<2x32xf32>
    %67 = arith.addf %65, %66 : vector<2x32xf32>
    %68 = arith.negf %67 : vector<2x32xf32>
    %69 = math.exp %68 : vector<2x32xf32>
    %cst_37 = arith.constant 1.000000e+00 : f32
    %70 = vector.broadcast %cst_37 : f32 to vector<2x32xf32>
    %71 = arith.addf %70, %69 : vector<2x32xf32>
    %72 = arith.divf %70, %71 : vector<2x32xf32>
    %73 = vector.extract_strided_slice %54 {offsets = [0, 32], sizes = [2, 32], strides = [1, 1]} : vector<2x96xf32> to vector<2x32xf32>
    %74 = vector.extract_strided_slice %64 {offsets = [0, 32], sizes = [2, 32], strides = [1, 1]} : vector<2x96xf32> to vector<2x32xf32>
    %75 = arith.addf %73, %74 : vector<2x32xf32>
    %76 = arith.negf %75 : vector<2x32xf32>
    %77 = math.exp %76 : vector<2x32xf32>
    %cst_38 = arith.constant 1.000000e+00 : f32
    %78 = vector.broadcast %cst_38 : f32 to vector<2x32xf32>
    %79 = arith.addf %78, %77 : vector<2x32xf32>
    %80 = arith.divf %78, %79 : vector<2x32xf32>
    %81 = vector.extract_strided_slice %54 {offsets = [0, 64], sizes = [2, 32], strides = [1, 1]} : vector<2x96xf32> to vector<2x32xf32>
    %82 = vector.extract_strided_slice %64 {offsets = [0, 64], sizes = [2, 32], strides = [1, 1]} : vector<2x96xf32> to vector<2x32xf32>
    %83 = arith.mulf %72, %82 : vector<2x32xf32>
    %84 = arith.addf %81, %83 : vector<2x32xf32>
    %85 = math.tanh %84 : vector<2x32xf32>
    %cst_39 = arith.constant 1.000000e+00 : f32
    %86 = vector.broadcast %cst_39 : f32 to vector<2x32xf32>
    %87 = arith.subf %86, %80 : vector<2x32xf32>
    %88 = arith.mulf %87, %85 : vector<2x32xf32>
    %89 = arith.mulf %80, %56 : vector<2x32xf32>
    %90 = arith.addf %88, %89 : vector<2x32xf32>
    %c1_40 = arith.constant 1 : index
    %c0_41 = arith.constant 0 : index
    %c0_42 = arith.constant 0 : index
    %91 = vector.load %arg11[%c1_40, %c0_41, %c0_42] : memref<2x2x32xf32, #tpu.memory_space<vmem>>, vector<1x2x32xf32>
    %92 = vector.shape_cast %91 : vector<1x2x32xf32> to vector<2x32xf32>
    %93 = vector.shape_cast %90 : vector<2x32xf32> to vector<1x2x32xf32>
    tpu.vector_store %arg11[%c1_40, %c0_41, %c0_42], %93 {strides = array<i32>} : memref<2x2x32xf32, #tpu.memory_space<vmem>>, vector<1x2x32xf32>,
    %c0_43 = arith.constant 0 : index
    %c0_44 = arith.constant 0 : index
    %94 = vector.load %arg8[%c0_43, %c0_44] : memref<1x32xf32, #tpu.memory_space<vmem>>, vector<1x32xf32>
    %95 = vector.broadcast %94 : vector<1x32xf32> to vector<2x32xf32>
    %96 = arith.mulf %90, %95 : vector<2x32xf32>
    %cst_45 = arith.constant dense<0.000000e+00> : vector<2xf32>
    %97 = vector.multi_reduction <add>, %96, %cst_45 [1] : vector<2x32xf32> to vector<2xf32>
    %98 = vector.shape_cast %97 : vector<2xf32> to vector<2x1xf32>
    %c0_46 = arith.constant 0 : index
    %c0_47 = arith.constant 0 : index
    %99 = vector.load %arg9[%c0_46, %c0_47] : memref<1x1xf32, #tpu.memory_space<vmem>>, vector<1x1xf32>
    %100 = vector.broadcast %99 : vector<1x1xf32> to vector<2x1xf32>
    %101 = arith.addf %98, %100 : vector<2x1xf32>
    %102 = vector.broadcast %5 : i32 to vector<2x1xi32>
    %103 = arith.cmpi slt, %102, %3 : vector<2x1xi32>
    %c0_48 = arith.constant 0 : index
    %c0_49 = arith.constant 0 : index
    %104 = vector.load %arg12[%c0_48, %c0_49] : memref<2x1xf32, #tpu.memory_space<vmem>>, vector<2x1xf32>
    %105 = arith.maximumf %104, %101 : vector<2x1xf32>
    %106 = arith.select %103, %105, %104 : vector<2x1xi1>, vector<2x1xf32>
    %107 = arith.subf %104, %106 : vector<2x1xf32>
    %108 = math.exp %107 : vector<2x1xf32>
    %cst_50 = arith.constant 1.000000e+00 : f32
    %109 = vector.broadcast %cst_50 : f32 to vector<2x1xf32>
    %110 = arith.select %103, %108, %109 : vector<2x1xi1>, vector<2x1xf32>
    %111 = arith.subf %101, %106 : vector<2x1xf32>
    %112 = math.exp %111 : vector<2x1xf32>
    %cst_51 = arith.constant 0.000000e+00 : f32
    %113 = vector.broadcast %cst_51 : f32 to vector<2x1xf32>
    %114 = arith.select %103, %112, %113 : vector<2x1xi1>, vector<2x1xf32>
    %c0_52 = arith.constant 0 : index
    %c0_53 = arith.constant 0 : index
    %115 = vector.load %arg13[%c0_52, %c0_53] : memref<2x1xf32, #tpu.memory_space<vmem>>, vector<2x1xf32>
    %116 = arith.mulf %110, %115 : vector<2x1xf32>
    %117 = arith.addf %116, %114 : vector<2x1xf32>
    %c0_54 = arith.constant 0 : index
    %c0_55 = arith.constant 0 : index
    %118 = vector.load %arg13[%c0_54, %c0_55] : memref<2x1xf32, #tpu.memory_space<vmem>>, vector<2x1xf32>
    tpu.vector_store %arg13[%c0_54, %c0_55], %117 {strides = array<i32>} : memref<2x1xf32, #tpu.memory_space<vmem>>, vector<2x1xf32>,
    %c0_56 = arith.constant 0 : index
    %c0_57 = arith.constant 0 : index
    %119 = vector.load %arg14[%c0_56, %c0_57] : memref<2x32xf32, #tpu.memory_space<vmem>>, vector<2x32xf32>
    %120 = vector.broadcast %110 : vector<2x1xf32> to vector<2x32xf32>
    %121 = arith.mulf %120, %119 : vector<2x32xf32>
    %122 = vector.broadcast %114 : vector<2x1xf32> to vector<2x32xf32>
    %123 = arith.mulf %122, %90 : vector<2x32xf32>
    %124 = arith.addf %121, %123 : vector<2x32xf32>
    %c0_58 = arith.constant 0 : index
    %c0_59 = arith.constant 0 : index
    %125 = vector.load %arg14[%c0_58, %c0_59] : memref<2x32xf32, #tpu.memory_space<vmem>>, vector<2x32xf32>
    tpu.vector_store %arg14[%c0_58, %c0_59], %124 {strides = array<i32>} : memref<2x32xf32, #tpu.memory_space<vmem>>, vector<2x32xf32>,
    %c0_60 = arith.constant 0 : index
    %c0_61 = arith.constant 0 : index
    %126 = vector.load %arg12[%c0_60, %c0_61] : memref<2x1xf32, #tpu.memory_space<vmem>>, vector<2x1xf32>
    tpu.vector_store %arg12[%c0_60, %c0_61], %106 {strides = array<i32>} : memref<2x1xf32, #tpu.memory_space<vmem>>, vector<2x1xf32>,
    %c8_i32_62 = arith.constant 8 : i32
    %127 = arith.muli %arg1, %c8_i32_62 : i32
    %c1_i32 = arith.constant 1 : i32
    %128 = arith.addi %127, %c1_i32 : i32
    %c1_63 = arith.constant 1 : index
    %c0_64 = arith.constant 0 : index
    %c0_65 = arith.constant 0 : index
    %129 = vector.load %arg2[%c1_63, %c0_64, %c0_65] : memref<8x2x96xf32, #tpu.memory_space<vmem>>, vector<1x2x96xf32>
    %130 = vector.shape_cast %129 : vector<1x2x96xf32> to vector<2x96xf32>
    %c0_66 = arith.constant 0 : index
    %c0_67 = arith.constant 0 : index
    %c0_68 = arith.constant 0 : index
    %131 = vector.load %arg11[%c0_66, %c0_67, %c0_68] : memref<2x2x32xf32, #tpu.memory_space<vmem>>, vector<1x2x32xf32>
    %132 = vector.shape_cast %131 : vector<1x2x32xf32> to vector<2x32xf32>
    %133 = arith.truncf %132 : vector<2x32xf32> to vector<2x32xbf16>
    %c0_69 = arith.constant 0 : index
    %c0_70 = arith.constant 0 : index
    %c0_71 = arith.constant 0 : index
    %134 = vector.load %arg5[%c0_69, %c0_70, %c0_71] : memref<2x32x96xbf16, #tpu.memory_space<vmem>>, vector<1x32x96xbf16>
    %135 = vector.shape_cast %134 : vector<1x32x96xbf16> to vector<32x96xbf16>
    %cst_72 = arith.constant dense<0.000000e+00> : vector<2x96xf32>
    %136 = tpu.matmul %133, %135, %cst_72 {dimension_numbers = #tpu.dot_dimension_numbers<[1], [0], [0], [1], [0, 0, 1, 1], [], []>} : vector<2x32xbf16>, vector<32x96xbf16>, vector<2x96xf32> -> vector<2x96xf32>
    %c0_73 = arith.constant 0 : index
    %c0_74 = arith.constant 0 : index
    %c0_75 = arith.constant 0 : index
    %137 = vector.load %arg7[%c0_73, %c0_74, %c0_75] : memref<2x1x96xf32, #tpu.memory_space<vmem>>, vector<1x1x96xf32>
    %138 = vector.shape_cast %137 : vector<1x1x96xf32> to vector<1x96xf32>
    %139 = vector.broadcast %138 : vector<1x96xf32> to vector<2x96xf32>
    %140 = arith.addf %136, %139 : vector<2x96xf32>
    %141 = vector.extract_strided_slice %130 {offsets = [0, 0], sizes = [2, 32], strides = [1, 1]} : vector<2x96xf32> to vector<2x32xf32>
    %142 = vector.extract_strided_slice %140 {offsets = [0, 0], sizes = [2, 32], strides = [1, 1]} : vector<2x96xf32> to vector<2x32xf32>
    %143 = arith.addf %141, %142 : vector<2x32xf32>
    %144 = arith.negf %143 : vector<2x32xf32>
    %145 = math.exp %144 : vector<2x32xf32>
    %cst_76 = arith.constant 1.000000e+00 : f32
    %146 = vector.broadcast %cst_76 : f32 to vector<2x32xf32>
    %147 = arith.addf %146, %145 : vector<2x32xf32>
    %148 = arith.divf %146, %147 : vector<2x32xf32>
    %149 = vector.extract_strided_slice %130 {offsets = [0, 32], sizes = [2, 32], strides = [1, 1]} : vector<2x96xf32> to vector<2x32xf32>
    %150 = vector.extract_strided_slice %140 {offsets = [0, 32], sizes = [2, 32], strides = [1, 1]} : vector<2x96xf32> to vector<2x32xf32>
    %151 = arith.addf %149, %150 : vector<2x32xf32>
    %152 = arith.negf %151 : vector<2x32xf32>
    %153 = math.exp %152 : vector<2x32xf32>
    %cst_77 = arith.constant 1.000000e+00 : f32
    %154 = vector.broadcast %cst_77 : f32 to vector<2x32xf32>
    %155 = arith.addf %154, %153 : vector<2x32xf32>
    %156 = arith.divf %154, %155 : vector<2x32xf32>
    %157 = vector.extract_strided_slice %130 {offsets = [0, 64], sizes = [2, 32], strides = [1, 1]} : vector<2x96xf32> to vector<2x32xf32>
    %158 = vector.extract_strided_slice %140 {offsets = [0, 64], sizes = [2, 32], strides = [1, 1]} : vector<2x96xf32> to vector<2x32xf32>
    %159 = arith.mulf %148, %158 : vector<2x32xf32>
    %160 = arith.addf %157, %159 : vector<2x32xf32>
    %161 = math.tanh %160 : vector<2x32xf32>
    %cst_78 = arith.constant 1.000000e+00 : f32
    %162 = vector.broadcast %cst_78 : f32 to vector<2x32xf32>
    %163 = arith.subf %162, %156 : vector<2x32xf32>
    %164 = arith.mulf %163, %161 : vector<2x32xf32>
    %165 = arith.mulf %156, %132 : vector<2x32xf32>
    %166 = arith.addf %164, %165 : vector<2x32xf32>
    %c0_79 = arith.constant 0 : index
    %c0_80 = arith.constant 0 : index
    %c0_81 = arith.constant 0 : index
    %167 = vector.load %arg11[%c0_79, %c0_80, %c0_81] : memref<2x2x32xf32, #tpu.memory_space<vmem>>, vector<1x2x32xf32>
    %168 = vector.shape_cast %167 : vector<1x2x32xf32> to vector<2x32xf32>
    %169 = vector.shape_cast %166 : vector<2x32xf32> to vector<1x2x32xf32>
    tpu.vector_store %arg11[%c0_79, %c0_80, %c0_81], %169 {strides = array<i32>} : memref<2x2x32xf32, #tpu.memory_space<vmem>>, vector<1x2x32xf32>,
    %170 = arith.truncf %166 : vector<2x32xf32> to vector<2x32xbf16>
    %c1_82 = arith.constant 1 : index
    %c0_83 = arith.constant 0 : index
    %c0_84 = arith.constant 0 : index
    %171 = vector.load %arg4[%c1_82, %c0_83, %c0_84] : memref<2x32x96xbf16, #tpu.memory_space<vmem>>, vector<1x32x96xbf16>
    %172 = vector.shape_cast %171 : vector<1x32x96xbf16> to vector<32x96xbf16>
    %cst_85 = arith.constant dense<0.000000e+00> : vector<2x96xf32>
    %173 = tpu.matmul %170, %172, %cst_85 {dimension_numbers = #tpu.dot_dimension_numbers<[1], [0], [0], [1], [0, 0, 1, 1], [], []>} : vector<2x32xbf16>, vector<32x96xbf16>, vector<2x96xf32> -> vector<2x96xf32>
    %c1_86 = arith.constant 1 : index
    %c0_87 = arith.constant 0 : index
    %c0_88 = arith.constant 0 : index
    %174 = vector.load %arg6[%c1_86, %c0_87, %c0_88] : memref<2x1x96xf32, #tpu.memory_space<vmem>>, vector<1x1x96xf32>
    %175 = vector.shape_cast %174 : vector<1x1x96xf32> to vector<1x96xf32>
    %176 = vector.broadcast %175 : vector<1x96xf32> to vector<2x96xf32>
    %177 = arith.addf %173, %176 : vector<2x96xf32>
    %c1_89 = arith.constant 1 : index
    %c0_90 = arith.constant 0 : index
    %c0_91 = arith.constant 0 : index
    %178 = vector.load %arg11[%c1_89, %c0_90, %c0_91] : memref<2x2x32xf32, #tpu.memory_space<vmem>>, vector<1x2x32xf32>
    %179 = vector.shape_cast %178 : vector<1x2x32xf32> to vector<2x32xf32>
    %180 = arith.truncf %179 : vector<2x32xf32> to vector<2x32xbf16>
    %c1_92 = arith.constant 1 : index
    %c0_93 = arith.constant 0 : index
    %c0_94 = arith.constant 0 : index
    %181 = vector.load %arg5[%c1_92, %c0_93, %c0_94] : memref<2x32x96xbf16, #tpu.memory_space<vmem>>, vector<1x32x96xbf16>
    %182 = vector.shape_cast %181 : vector<1x32x96xbf16> to vector<32x96xbf16>
    %cst_95 = arith.constant dense<0.000000e+00> : vector<2x96xf32>
    %183 = tpu.matmul %180, %182, %cst_95 {dimension_numbers = #tpu.dot_dimension_numbers<[1], [0], [0], [1], [0, 0, 1, 1], [], []>} : vector<2x32xbf16>, vector<32x96xbf16>, vector<2x96xf32> -> vector<2x96xf32>
    %c1_96 = arith.constant 1 : index
    %c0_97 = arith.constant 0 : index
    %c0_98 = arith.constant 0 : index
    %184 = vector.load %arg7[%c1_96, %c0_97, %c0_98] : memref<2x1x96xf32, #tpu.memory_space<vmem>>, vector<1x1x96xf32>
    %185 = vector.shape_cast %184 : vector<1x1x96xf32> to vector<1x96xf32>
    %186 = vector.broadcast %185 : vector<1x96xf32> to vector<2x96xf32>
    %187 = arith.addf %183, %186 : vector<2x96xf32>
    %188 = vector.extract_strided_slice %177 {offsets = [0, 0], sizes = [2, 32], strides = [1, 1]} : vector<2x96xf32> to vector<2x32xf32>
    %189 = vector.extract_strided_slice %187 {offsets = [0, 0], sizes = [2, 32], strides = [1, 1]} : vector<2x96xf32> to vector<2x32xf32>
    %190 = arith.addf %188, %189 : vector<2x32xf32>
    %191 = arith.negf %190 : vector<2x32xf32>
    %192 = math.exp %191 : vector<2x32xf32>
    %cst_99 = arith.constant 1.000000e+00 : f32
    %193 = vector.broadcast %cst_99 : f32 to vector<2x32xf32>
    %194 = arith.addf %193, %192 : vector<2x32xf32>
    %195 = arith.divf %193, %194 : vector<2x32xf32>
    %196 = vector.extract_strided_slice %177 {offsets = [0, 32], sizes = [2, 32], strides = [1, 1]} : vector<2x96xf32> to vector<2x32xf32>
    %197 = vector.extract_strided_slice %187 {offsets = [0, 32], sizes = [2, 32], strides = [1, 1]} : vector<2x96xf32> to vector<2x32xf32>
    %198 = arith.addf %196, %197 : vector<2x32xf32>
    %199 = arith.negf %198 : vector<2x32xf32>
    %200 = math.exp %199 : vector<2x32xf32>
    %cst_100 = arith.constant 1.000000e+00 : f32
    %201 = vector.broadcast %cst_100 : f32 to vector<2x32xf32>
    %202 = arith.addf %201, %200 : vector<2x32xf32>
    %203 = arith.divf %201, %202 : vector<2x32xf32>
    %204 = vector.extract_strided_slice %177 {offsets = [0, 64], sizes = [2, 32], strides = [1, 1]} : vector<2x96xf32> to vector<2x32xf32>
    %205 = vector.extract_strided_slice %187 {offsets = [0, 64], sizes = [2, 32], strides = [1, 1]} : vector<2x96xf32> to vector<2x32xf32>
    %206 = arith.mulf %195, %205 : vector<2x32xf32>
    %207 = arith.addf %204, %206 : vector<2x32xf32>
    %208 = math.tanh %207 : vector<2x32xf32>
    %cst_101 = arith.constant 1.000000e+00 : f32
    %209 = vector.broadcast %cst_101 : f32 to vector<2x32xf32>
    %210 = arith.subf %209, %203 : vector<2x32xf32>
    %211 = arith.mulf %210, %208 : vector<2x32xf32>
    %212 = arith.mulf %203, %179 : vector<2x32xf32>
    %213 = arith.addf %211, %212 : vector<2x32xf32>
    %c1_102 = arith.constant 1 : index
    %c0_103 = arith.constant 0 : index
    %c0_104 = arith.constant 0 : index
    %214 = vector.load %arg11[%c1_102, %c0_103, %c0_104] : memref<2x2x32xf32, #tpu.memory_space<vmem>>, vector<1x2x32xf32>
    %215 = vector.shape_cast %214 : vector<1x2x32xf32> to vector<2x32xf32>
    %216 = vector.shape_cast %213 : vector<2x32xf32> to vector<1x2x32xf32>
    tpu.vector_store %arg11[%c1_102, %c0_103, %c0_104], %216 {strides = array<i32>} : memref<2x2x32xf32, #tpu.memory_space<vmem>>, vector<1x2x32xf32>,
    %c0_105 = arith.constant 0 : index
    %c0_106 = arith.constant 0 : index
    %217 = vector.load %arg8[%c0_105, %c0_106] : memref<1x32xf32, #tpu.memory_space<vmem>>, vector<1x32xf32>
    %218 = vector.broadcast %217 : vector<1x32xf32> to vector<2x32xf32>
    %219 = arith.mulf %213, %218 : vector<2x32xf32>
    %cst_107 = arith.constant dense<0.000000e+00> : vector<2xf32>
    %220 = vector.multi_reduction <add>, %219, %cst_107 [1] : vector<2x32xf32> to vector<2xf32>
    %221 = vector.shape_cast %220 : vector<2xf32> to vector<2x1xf32>
    %c0_108 = arith.constant 0 : index
    %c0_109 = arith.constant 0 : index
    %222 = vector.load %arg9[%c0_108, %c0_109] : memref<1x1xf32, #tpu.memory_space<vmem>>, vector<1x1xf32>
    %223 = vector.broadcast %222 : vector<1x1xf32> to vector<2x1xf32>
    %224 = arith.addf %221, %223 : vector<2x1xf32>
    %225 = vector.broadcast %128 : i32 to vector<2x1xi32>
    %226 = arith.cmpi slt, %225, %3 : vector<2x1xi32>
    %c0_110 = arith.constant 0 : index
    %c0_111 = arith.constant 0 : index
    %227 = vector.load %arg12[%c0_110, %c0_111] : memref<2x1xf32, #tpu.memory_space<vmem>>, vector<2x1xf32>
    %228 = arith.maximumf %227, %224 : vector<2x1xf32>
    %229 = arith.select %226, %228, %227 : vector<2x1xi1>, vector<2x1xf32>
    %230 = arith.subf %227, %229 : vector<2x1xf32>
    %231 = math.exp %230 : vector<2x1xf32>
    %cst_112 = arith.constant 1.000000e+00 : f32
    %232 = vector.broadcast %cst_112 : f32 to vector<2x1xf32>
    %233 = arith.select %226, %231, %232 : vector<2x1xi1>, vector<2x1xf32>
    %234 = arith.subf %224, %229 : vector<2x1xf32>
    %235 = math.exp %234 : vector<2x1xf32>
    %cst_113 = arith.constant 0.000000e+00 : f32
    %236 = vector.broadcast %cst_113 : f32 to vector<2x1xf32>
    %237 = arith.select %226, %235, %236 : vector<2x1xi1>, vector<2x1xf32>
    %c0_114 = arith.constant 0 : index
    %c0_115 = arith.constant 0 : index
    %238 = vector.load %arg13[%c0_114, %c0_115] : memref<2x1xf32, #tpu.memory_space<vmem>>, vector<2x1xf32>
    %239 = arith.mulf %233, %238 : vector<2x1xf32>
    %240 = arith.addf %239, %237 : vector<2x1xf32>
    %c0_116 = arith.constant 0 : index
    %c0_117 = arith.constant 0 : index
    %241 = vector.load %arg13[%c0_116, %c0_117] : memref<2x1xf32, #tpu.memory_space<vmem>>, vector<2x1xf32>
    tpu.vector_store %arg13[%c0_116, %c0_117], %240 {strides = array<i32>} : memref<2x1xf32, #tpu.memory_space<vmem>>, vector<2x1xf32>,
    %c0_118 = arith.constant 0 : index
    %c0_119 = arith.constant 0 : index
    %242 = vector.load %arg14[%c0_118, %c0_119] : memref<2x32xf32, #tpu.memory_space<vmem>>, vector<2x32xf32>
    %243 = vector.broadcast %233 : vector<2x1xf32> to vector<2x32xf32>
    %244 = arith.mulf %243, %242 : vector<2x32xf32>
    %245 = vector.broadcast %237 : vector<2x1xf32> to vector<2x32xf32>
    %246 = arith.mulf %245, %213 : vector<2x32xf32>
    %247 = arith.addf %244, %246 : vector<2x32xf32>
    %c0_120 = arith.constant 0 : index
    %c0_121 = arith.constant 0 : index
    %248 = vector.load %arg14[%c0_120, %c0_121] : memref<2x32xf32, #tpu.memory_space<vmem>>, vector<2x32xf32>
    tpu.vector_store %arg14[%c0_120, %c0_121], %247 {strides = array<i32>} : memref<2x32xf32, #tpu.memory_space<vmem>>, vector<2x32xf32>,
    %c0_122 = arith.constant 0 : index
    %c0_123 = arith.constant 0 : index
    %249 = vector.load %arg12[%c0_122, %c0_123] : memref<2x1xf32, #tpu.memory_space<vmem>>, vector<2x1xf32>
    tpu.vector_store %arg12[%c0_122, %c0_123], %229 {strides = array<i32>} : memref<2x1xf32, #tpu.memory_space<vmem>>, vector<2x1xf32>,
    %c8_i32_124 = arith.constant 8 : i32
    %250 = arith.muli %arg1, %c8_i32_124 : i32
    %c2_i32 = arith.constant 2 : i32
    %251 = arith.addi %250, %c2_i32 : i32
    %c2 = arith.constant 2 : index
    %c0_125 = arith.constant 0 : index
    %c0_126 = arith.constant 0 : index
    %252 = vector.load %arg2[%c2, %c0_125, %c0_126] : memref<8x2x96xf32, #tpu.memory_space<vmem>>, vector<1x2x96xf32>
    %253 = vector.shape_cast %252 : vector<1x2x96xf32> to vector<2x96xf32>
    %c0_127 = arith.constant 0 : index
    %c0_128 = arith.constant 0 : index
    %c0_129 = arith.constant 0 : index
    %254 = vector.load %arg11[%c0_127, %c0_128, %c0_129] : memref<2x2x32xf32, #tpu.memory_space<vmem>>, vector<1x2x32xf32>
    %255 = vector.shape_cast %254 : vector<1x2x32xf32> to vector<2x32xf32>
    %256 = arith.truncf %255 : vector<2x32xf32> to vector<2x32xbf16>
    %c0_130 = arith.constant 0 : index
    %c0_131 = arith.constant 0 : index
    %c0_132 = arith.constant 0 : index
    %257 = vector.load %arg5[%c0_130, %c0_131, %c0_132] : memref<2x32x96xbf16, #tpu.memory_space<vmem>>, vector<1x32x96xbf16>
    %258 = vector.shape_cast %257 : vector<1x32x96xbf16> to vector<32x96xbf16>
    %cst_133 = arith.constant dense<0.000000e+00> : vector<2x96xf32>
    %259 = tpu.matmul %256, %258, %cst_133 {dimension_numbers = #tpu.dot_dimension_numbers<[1], [0], [0], [1], [0, 0, 1, 1], [], []>} : vector<2x32xbf16>, vector<32x96xbf16>, vector<2x96xf32> -> vector<2x96xf32>
    %c0_134 = arith.constant 0 : index
    %c0_135 = arith.constant 0 : index
    %c0_136 = arith.constant 0 : index
    %260 = vector.load %arg7[%c0_134, %c0_135, %c0_136] : memref<2x1x96xf32, #tpu.memory_space<vmem>>, vector<1x1x96xf32>
    %261 = vector.shape_cast %260 : vector<1x1x96xf32> to vector<1x96xf32>
    %262 = vector.broadcast %261 : vector<1x96xf32> to vector<2x96xf32>
    %263 = arith.addf %259, %262 : vector<2x96xf32>
    %264 = vector.extract_strided_slice %253 {offsets = [0, 0], sizes = [2, 32], strides = [1, 1]} : vector<2x96xf32> to vector<2x32xf32>
    %265 = vector.extract_strided_slice %263 {offsets = [0, 0], sizes = [2, 32], strides = [1, 1]} : vector<2x96xf32> to vector<2x32xf32>
    %266 = arith.addf %264, %265 : vector<2x32xf32>
    %267 = arith.negf %266 : vector<2x32xf32>
    %268 = math.exp %267 : vector<2x32xf32>
    %cst_137 = arith.constant 1.000000e+00 : f32
    %269 = vector.broadcast %cst_137 : f32 to vector<2x32xf32>
    %270 = arith.addf %269, %268 : vector<2x32xf32>
    %271 = arith.divf %269, %270 : vector<2x32xf32>
    %272 = vector.extract_strided_slice %253 {offsets = [0, 32], sizes = [2, 32], strides = [1, 1]} : vector<2x96xf32> to vector<2x32xf32>
    %273 = vector.extract_strided_slice %263 {offsets = [0, 32], sizes = [2, 32], strides = [1, 1]} : vector<2x96xf32> to vector<2x32xf32>
    %274 = arith.addf %272, %273 : vector<2x32xf32>
    %275 = arith.negf %274 : vector<2x32xf32>
    %276 = math.exp %275 : vector<2x32xf32>
    %cst_138 = arith.constant 1.000000e+00 : f32
    %277 = vector.broadcast %cst_138 : f32 to vector<2x32xf32>
    %278 = arith.addf %277, %276 : vector<2x32xf32>
    %279 = arith.divf %277, %278 : vector<2x32xf32>
    %280 = vector.extract_strided_slice %253 {offsets = [0, 64], sizes = [2, 32], strides = [1, 1]} : vector<2x96xf32> to vector<2x32xf32>
    %281 = vector.extract_strided_slice %263 {offsets = [0, 64], sizes = [2, 32], strides = [1, 1]} : vector<2x96xf32> to vector<2x32xf32>
    %282 = arith.mulf %271, %281 : vector<2x32xf32>
    %283 = arith.addf %280, %282 : vector<2x32xf32>
    %284 = math.tanh %283 : vector<2x32xf32>
    %cst_139 = arith.constant 1.000000e+00 : f32
    %285 = vector.broadcast %cst_139 : f32 to vector<2x32xf32>
    %286 = arith.subf %285, %279 : vector<2x32xf32>
    %287 = arith.mulf %286, %284 : vector<2x32xf32>
    %288 = arith.mulf %279, %255 : vector<2x32xf32>
    %289 = arith.addf %287, %288 : vector<2x32xf32>
    %c0_140 = arith.constant 0 : index
    %c0_141 = arith.constant 0 : index
    %c0_142 = arith.constant 0 : index
    %290 = vector.load %arg11[%c0_140, %c0_141, %c0_142] : memref<2x2x32xf32, #tpu.memory_space<vmem>>, vector<1x2x32xf32>
    %291 = vector.shape_cast %290 : vector<1x2x32xf32> to vector<2x32xf32>
    %292 = vector.shape_cast %289 : vector<2x32xf32> to vector<1x2x32xf32>
    tpu.vector_store %arg11[%c0_140, %c0_141, %c0_142], %292 {strides = array<i32>} : memref<2x2x32xf32, #tpu.memory_space<vmem>>, vector<1x2x32xf32>,
    %293 = arith.truncf %289 : vector<2x32xf32> to vector<2x32xbf16>
    %c1_143 = arith.constant 1 : index
    %c0_144 = arith.constant 0 : index
    %c0_145 = arith.constant 0 : index
    %294 = vector.load %arg4[%c1_143, %c0_144, %c0_145] : memref<2x32x96xbf16, #tpu.memory_space<vmem>>, vector<1x32x96xbf16>
    %295 = vector.shape_cast %294 : vector<1x32x96xbf16> to vector<32x96xbf16>
    %cst_146 = arith.constant dense<0.000000e+00> : vector<2x96xf32>
    %296 = tpu.matmul %293, %295, %cst_146 {dimension_numbers = #tpu.dot_dimension_numbers<[1], [0], [0], [1], [0, 0, 1, 1], [], []>} : vector<2x32xbf16>, vector<32x96xbf16>, vector<2x96xf32> -> vector<2x96xf32>
    %c1_147 = arith.constant 1 : index
    %c0_148 = arith.constant 0 : index
    %c0_149 = arith.constant 0 : index
    %297 = vector.load %arg6[%c1_147, %c0_148, %c0_149] : memref<2x1x96xf32, #tpu.memory_space<vmem>>, vector<1x1x96xf32>
    %298 = vector.shape_cast %297 : vector<1x1x96xf32> to vector<1x96xf32>
    %299 = vector.broadcast %298 : vector<1x96xf32> to vector<2x96xf32>
    %300 = arith.addf %296, %299 : vector<2x96xf32>
    %c1_150 = arith.constant 1 : index
    %c0_151 = arith.constant 0 : index
    %c0_152 = arith.constant 0 : index
    %301 = vector.load %arg11[%c1_150, %c0_151, %c0_152] : memref<2x2x32xf32, #tpu.memory_space<vmem>>, vector<1x2x32xf32>
    %302 = vector.shape_cast %301 : vector<1x2x32xf32> to vector<2x32xf32>
    %303 = arith.truncf %302 : vector<2x32xf32> to vector<2x32xbf16>
    %c1_153 = arith.constant 1 : index
    %c0_154 = arith.constant 0 : index
    %c0_155 = arith.constant 0 : index
    %304 = vector.load %arg5[%c1_153, %c0_154, %c0_155] : memref<2x32x96xbf16, #tpu.memory_space<vmem>>, vector<1x32x96xbf16>
    %305 = vector.shape_cast %304 : vector<1x32x96xbf16> to vector<32x96xbf16>
    %cst_156 = arith.constant dense<0.000000e+00> : vector<2x96xf32>
    %306 = tpu.matmul %303, %305, %cst_156 {dimension_numbers = #tpu.dot_dimension_numbers<[1], [0], [0], [1], [0, 0, 1, 1], [], []>} : vector<2x32xbf16>, vector<32x96xbf16>, vector<2x96xf32> -> vector<2x96xf32>
    %c1_157 = arith.constant 1 : index
    %c0_158 = arith.constant 0 : index
    %c0_159 = arith.constant 0 : index
    %307 = vector.load %arg7[%c1_157, %c0_158, %c0_159] : memref<2x1x96xf32, #tpu.memory_space<vmem>>, vector<1x1x96xf32>
    %308 = vector.shape_cast %307 : vector<1x1x96xf32> to vector<1x96xf32>
    %309 = vector.broadcast %308 : vector<1x96xf32> to vector<2x96xf32>
    %310 = arith.addf %306, %309 : vector<2x96xf32>
    %311 = vector.extract_strided_slice %300 {offsets = [0, 0], sizes = [2, 32], strides = [1, 1]} : vector<2x96xf32> to vector<2x32xf32>
    %312 = vector.extract_strided_slice %310 {offsets = [0, 0], sizes = [2, 32], strides = [1, 1]} : vector<2x96xf32> to vector<2x32xf32>
    %313 = arith.addf %311, %312 : vector<2x32xf32>
    %314 = arith.negf %313 : vector<2x32xf32>
    %315 = math.exp %314 : vector<2x32xf32>
    %cst_160 = arith.constant 1.000000e+00 : f32
    %316 = vector.broadcast %cst_160 : f32 to vector<2x32xf32>
    %317 = arith.addf %316, %315 : vector<2x32xf32>
    %318 = arith.divf %316, %317 : vector<2x32xf32>
    %319 = vector.extract_strided_slice %300 {offsets = [0, 32], sizes = [2, 32], strides = [1, 1]} : vector<2x96xf32> to vector<2x32xf32>
    %320 = vector.extract_strided_slice %310 {offsets = [0, 32], sizes = [2, 32], strides = [1, 1]} : vector<2x96xf32> to vector<2x32xf32>
    %321 = arith.addf %319, %320 : vector<2x32xf32>
    %322 = arith.negf %321 : vector<2x32xf32>
    %323 = math.exp %322 : vector<2x32xf32>
    %cst_161 = arith.constant 1.000000e+00 : f32
    %324 = vector.broadcast %cst_161 : f32 to vector<2x32xf32>
    %325 = arith.addf %324, %323 : vector<2x32xf32>
    %326 = arith.divf %324, %325 : vector<2x32xf32>
    %327 = vector.extract_strided_slice %300 {offsets = [0, 64], sizes = [2, 32], strides = [1, 1]} : vector<2x96xf32> to vector<2x32xf32>
    %328 = vector.extract_strided_slice %310 {offsets = [0, 64], sizes = [2, 32], strides = [1, 1]} : vector<2x96xf32> to vector<2x32xf32>
    %329 = arith.mulf %318, %328 : vector<2x32xf32>
    %330 = arith.addf %327, %329 : vector<2x32xf32>
    %331 = math.tanh %330 : vector<2x32xf32>
    %cst_162 = arith.constant 1.000000e+00 : f32
    %332 = vector.broadcast %cst_162 : f32 to vector<2x32xf32>
    %333 = arith.subf %332, %326 : vector<2x32xf32>
    %334 = arith.mulf %333, %331 : vector<2x32xf32>
    %335 = arith.mulf %326, %302 : vector<2x32xf32>
    %336 = arith.addf %334, %335 : vector<2x32xf32>
    %c1_163 = arith.constant 1 : index
    %c0_164 = arith.constant 0 : index
    %c0_165 = arith.constant 0 : index
    %337 = vector.load %arg11[%c1_163, %c0_164, %c0_165] : memref<2x2x32xf32, #tpu.memory_space<vmem>>, vector<1x2x32xf32>
    %338 = vector.shape_cast %337 : vector<1x2x32xf32> to vector<2x32xf32>
    %339 = vector.shape_cast %336 : vector<2x32xf32> to vector<1x2x32xf32>
    tpu.vector_store %arg11[%c1_163, %c0_164, %c0_165], %339 {strides = array<i32>} : memref<2x2x32xf32, #tpu.memory_space<vmem>>, vector<1x2x32xf32>,
    %c0_166 = arith.constant 0 : index
    %c0_167 = arith.constant 0 : index
    %340 = vector.load %arg8[%c0_166, %c0_167] : memref<1x32xf32, #tpu.memory_space<vmem>>, vector<1x32xf32>
    %341 = vector.broadcast %340 : vector<1x32xf32> to vector<2x32xf32>
    %342 = arith.mulf %336, %341 : vector<2x32xf32>
    %cst_168 = arith.constant dense<0.000000e+00> : vector<2xf32>
    %343 = vector.multi_reduction <add>, %342, %cst_168 [1] : vector<2x32xf32> to vector<2xf32>
    %344 = vector.shape_cast %343 : vector<2xf32> to vector<2x1xf32>
    %c0_169 = arith.constant 0 : index
    %c0_170 = arith.constant 0 : index
    %345 = vector.load %arg9[%c0_169, %c0_170] : memref<1x1xf32, #tpu.memory_space<vmem>>, vector<1x1xf32>
    %346 = vector.broadcast %345 : vector<1x1xf32> to vector<2x1xf32>
    %347 = arith.addf %344, %346 : vector<2x1xf32>
    %348 = vector.broadcast %251 : i32 to vector<2x1xi32>
    %349 = arith.cmpi slt, %348, %3 : vector<2x1xi32>
    %c0_171 = arith.constant 0 : index
    %c0_172 = arith.constant 0 : index
    %350 = vector.load %arg12[%c0_171, %c0_172] : memref<2x1xf32, #tpu.memory_space<vmem>>, vector<2x1xf32>
    %351 = arith.maximumf %350, %347 : vector<2x1xf32>
    %352 = arith.select %349, %351, %350 : vector<2x1xi1>, vector<2x1xf32>
    %353 = arith.subf %350, %352 : vector<2x1xf32>
    %354 = math.exp %353 : vector<2x1xf32>
    %cst_173 = arith.constant 1.000000e+00 : f32
    %355 = vector.broadcast %cst_173 : f32 to vector<2x1xf32>
    %356 = arith.select %349, %354, %355 : vector<2x1xi1>, vector<2x1xf32>
    %357 = arith.subf %347, %352 : vector<2x1xf32>
    %358 = math.exp %357 : vector<2x1xf32>
    %cst_174 = arith.constant 0.000000e+00 : f32
    %359 = vector.broadcast %cst_174 : f32 to vector<2x1xf32>
    %360 = arith.select %349, %358, %359 : vector<2x1xi1>, vector<2x1xf32>
    %c0_175 = arith.constant 0 : index
    %c0_176 = arith.constant 0 : index
    %361 = vector.load %arg13[%c0_175, %c0_176] : memref<2x1xf32, #tpu.memory_space<vmem>>, vector<2x1xf32>
    %362 = arith.mulf %356, %361 : vector<2x1xf32>
    %363 = arith.addf %362, %360 : vector<2x1xf32>
    %c0_177 = arith.constant 0 : index
    %c0_178 = arith.constant 0 : index
    %364 = vector.load %arg13[%c0_177, %c0_178] : memref<2x1xf32, #tpu.memory_space<vmem>>, vector<2x1xf32>
    tpu.vector_store %arg13[%c0_177, %c0_178], %363 {strides = array<i32>} : memref<2x1xf32, #tpu.memory_space<vmem>>, vector<2x1xf32>,
    %c0_179 = arith.constant 0 : index
    %c0_180 = arith.constant 0 : index
    %365 = vector.load %arg14[%c0_179, %c0_180] : memref<2x32xf32, #tpu.memory_space<vmem>>, vector<2x32xf32>
    %366 = vector.broadcast %356 : vector<2x1xf32> to vector<2x32xf32>
    %367 = arith.mulf %366, %365 : vector<2x32xf32>
    %368 = vector.broadcast %360 : vector<2x1xf32> to vector<2x32xf32>
    %369 = arith.mulf %368, %336 : vector<2x32xf32>
    %370 = arith.addf %367, %369 : vector<2x32xf32>
    %c0_181 = arith.constant 0 : index
    %c0_182 = arith.constant 0 : index
    %371 = vector.load %arg14[%c0_181, %c0_182] : memref<2x32xf32, #tpu.memory_space<vmem>>, vector<2x32xf32>
    tpu.vector_store %arg14[%c0_181, %c0_182], %370 {strides = array<i32>} : memref<2x32xf32, #tpu.memory_space<vmem>>, vector<2x32xf32>,
    %c0_183 = arith.constant 0 : index
    %c0_184 = arith.constant 0 : index
    %372 = vector.load %arg12[%c0_183, %c0_184] : memref<2x1xf32, #tpu.memory_space<vmem>>, vector<2x1xf32>
    tpu.vector_store %arg12[%c0_183, %c0_184], %352 {strides = array<i32>} : memref<2x1xf32, #tpu.memory_space<vmem>>, vector<2x1xf32>,
    %c8_i32_185 = arith.constant 8 : i32
    %373 = arith.muli %arg1, %c8_i32_185 : i32
    %c3_i32 = arith.constant 3 : i32
    %374 = arith.addi %373, %c3_i32 : i32
    %c3 = arith.constant 3 : index
    %c0_186 = arith.constant 0 : index
    %c0_187 = arith.constant 0 : index
    %375 = vector.load %arg2[%c3, %c0_186, %c0_187] : memref<8x2x96xf32, #tpu.memory_space<vmem>>, vector<1x2x96xf32>
    %376 = vector.shape_cast %375 : vector<1x2x96xf32> to vector<2x96xf32>
    %c0_188 = arith.constant 0 : index
    %c0_189 = arith.constant 0 : index
    %c0_190 = arith.constant 0 : index
    %377 = vector.load %arg11[%c0_188, %c0_189, %c0_190] : memref<2x2x32xf32, #tpu.memory_space<vmem>>, vector<1x2x32xf32>
    %378 = vector.shape_cast %377 : vector<1x2x32xf32> to vector<2x32xf32>
    %379 = arith.truncf %378 : vector<2x32xf32> to vector<2x32xbf16>
    %c0_191 = arith.constant 0 : index
    %c0_192 = arith.constant 0 : index
    %c0_193 = arith.constant 0 : index
    %380 = vector.load %arg5[%c0_191, %c0_192, %c0_193] : memref<2x32x96xbf16, #tpu.memory_space<vmem>>, vector<1x32x96xbf16>
    %381 = vector.shape_cast %380 : vector<1x32x96xbf16> to vector<32x96xbf16>
    %cst_194 = arith.constant dense<0.000000e+00> : vector<2x96xf32>
    %382 = tpu.matmul %379, %381, %cst_194 {dimension_numbers = #tpu.dot_dimension_numbers<[1], [0], [0], [1], [0, 0, 1, 1], [], []>} : vector<2x32xbf16>, vector<32x96xbf16>, vector<2x96xf32> -> vector<2x96xf32>
    %c0_195 = arith.constant 0 : index
    %c0_196 = arith.constant 0 : index
    %c0_197 = arith.constant 0 : index
    %383 = vector.load %arg7[%c0_195, %c0_196, %c0_197] : memref<2x1x96xf32, #tpu.memory_space<vmem>>, vector<1x1x96xf32>
    %384 = vector.shape_cast %383 : vector<1x1x96xf32> to vector<1x96xf32>
    %385 = vector.broadcast %384 : vector<1x96xf32> to vector<2x96xf32>
    %386 = arith.addf %382, %385 : vector<2x96xf32>
    %387 = vector.extract_strided_slice %376 {offsets = [0, 0], sizes = [2, 32], strides = [1, 1]} : vector<2x96xf32> to vector<2x32xf32>
    %388 = vector.extract_strided_slice %386 {offsets = [0, 0], sizes = [2, 32], strides = [1, 1]} : vector<2x96xf32> to vector<2x32xf32>
    %389 = arith.addf %387, %388 : vector<2x32xf32>
    %390 = arith.negf %389 : vector<2x32xf32>
    %391 = math.exp %390 : vector<2x32xf32>
    %cst_198 = arith.constant 1.000000e+00 : f32
    %392 = vector.broadcast %cst_198 : f32 to vector<2x32xf32>
    %393 = arith.addf %392, %391 : vector<2x32xf32>
    %394 = arith.divf %392, %393 : vector<2x32xf32>
    %395 = vector.extract_strided_slice %376 {offsets = [0, 32], sizes = [2, 32], strides = [1, 1]} : vector<2x96xf32> to vector<2x32xf32>
    %396 = vector.extract_strided_slice %386 {offsets = [0, 32], sizes = [2, 32], strides = [1, 1]} : vector<2x96xf32> to vector<2x32xf32>
    %397 = arith.addf %395, %396 : vector<2x32xf32>
    %398 = arith.negf %397 : vector<2x32xf32>
    %399 = math.exp %398 : vector<2x32xf32>
    %cst_199 = arith.constant 1.000000e+00 : f32
    %400 = vector.broadcast %cst_199 : f32 to vector<2x32xf32>
    %401 = arith.addf %400, %399 : vector<2x32xf32>
    %402 = arith.divf %400, %401 : vector<2x32xf32>
    %403 = vector.extract_strided_slice %376 {offsets = [0, 64], sizes = [2, 32], strides = [1, 1]} : vector<2x96xf32> to vector<2x32xf32>
    %404 = vector.extract_strided_slice %386 {offsets = [0, 64], sizes = [2, 32], strides = [1, 1]} : vector<2x96xf32> to vector<2x32xf32>
    %405 = arith.mulf %394, %404 : vector<2x32xf32>
    %406 = arith.addf %403, %405 : vector<2x32xf32>
    %407 = math.tanh %406 : vector<2x32xf32>
    %cst_200 = arith.constant 1.000000e+00 : f32
    %408 = vector.broadcast %cst_200 : f32 to vector<2x32xf32>
    %409 = arith.subf %408, %402 : vector<2x32xf32>
    %410 = arith.mulf %409, %407 : vector<2x32xf32>
    %411 = arith.mulf %402, %378 : vector<2x32xf32>
    %412 = arith.addf %410, %411 : vector<2x32xf32>
    %c0_201 = arith.constant 0 : index
    %c0_202 = arith.constant 0 : index
    %c0_203 = arith.constant 0 : index
    %413 = vector.load %arg11[%c0_201, %c0_202, %c0_203] : memref<2x2x32xf32, #tpu.memory_space<vmem>>, vector<1x2x32xf32>
    %414 = vector.shape_cast %413 : vector<1x2x32xf32> to vector<2x32xf32>
    %415 = vector.shape_cast %412 : vector<2x32xf32> to vector<1x2x32xf32>
    tpu.vector_store %arg11[%c0_201, %c0_202, %c0_203], %415 {strides = array<i32>} : memref<2x2x32xf32, #tpu.memory_space<vmem>>, vector<1x2x32xf32>,
    %416 = arith.truncf %412 : vector<2x32xf32> to vector<2x32xbf16>
    %c1_204 = arith.constant 1 : index
    %c0_205 = arith.constant 0 : index
    %c0_206 = arith.constant 0 : index
    %417 = vector.load %arg4[%c1_204, %c0_205, %c0_206] : memref<2x32x96xbf16, #tpu.memory_space<vmem>>, vector<1x32x96xbf16>
    %418 = vector.shape_cast %417 : vector<1x32x96xbf16> to vector<32x96xbf16>
    %cst_207 = arith.constant dense<0.000000e+00> : vector<2x96xf32>
    %419 = tpu.matmul %416, %418, %cst_207 {dimension_numbers = #tpu.dot_dimension_numbers<[1], [0], [0], [1], [0, 0, 1, 1], [], []>} : vector<2x32xbf16>, vector<32x96xbf16>, vector<2x96xf32> -> vector<2x96xf32>
    %c1_208 = arith.constant 1 : index
    %c0_209 = arith.constant 0 : index
    %c0_210 = arith.constant 0 : index
    %420 = vector.load %arg6[%c1_208, %c0_209, %c0_210] : memref<2x1x96xf32, #tpu.memory_space<vmem>>, vector<1x1x96xf32>
    %421 = vector.shape_cast %420 : vector<1x1x96xf32> to vector<1x96xf32>
    %422 = vector.broadcast %421 : vector<1x96xf32> to vector<2x96xf32>
    %423 = arith.addf %419, %422 : vector<2x96xf32>
    %c1_211 = arith.constant 1 : index
    %c0_212 = arith.constant 0 : index
    %c0_213 = arith.constant 0 : index
    %424 = vector.load %arg11[%c1_211, %c0_212, %c0_213] : memref<2x2x32xf32, #tpu.memory_space<vmem>>, vector<1x2x32xf32>
    %425 = vector.shape_cast %424 : vector<1x2x32xf32> to vector<2x32xf32>
    %426 = arith.truncf %425 : vector<2x32xf32> to vector<2x32xbf16>
    %c1_214 = arith.constant 1 : index
    %c0_215 = arith.constant 0 : index
    %c0_216 = arith.constant 0 : index
    %427 = vector.load %arg5[%c1_214, %c0_215, %c0_216] : memref<2x32x96xbf16, #tpu.memory_space<vmem>>, vector<1x32x96xbf16>
    %428 = vector.shape_cast %427 : vector<1x32x96xbf16> to vector<32x96xbf16>
    %cst_217 = arith.constant dense<0.000000e+00> : vector<2x96xf32>
    %429 = tpu.matmul %426, %428, %cst_217 {dimension_numbers = #tpu.dot_dimension_numbers<[1], [0], [0], [1], [0, 0, 1, 1], [], []>} : vector<2x32xbf16>, vector<32x96xbf16>, vector<2x96xf32> -> vector<2x96xf32>
    %c1_218 = arith.constant 1 : index
    %c0_219 = arith.constant 0 : index
    %c0_220 = arith.constant 0 : index
    %430 = vector.load %arg7[%c1_218, %c0_219, %c0_220] : memref<2x1x96xf32, #tpu.memory_space<vmem>>, vector<1x1x96xf32>
    %431 = vector.shape_cast %430 : vector<1x1x96xf32> to vector<1x96xf32>
    %432 = vector.broadcast %431 : vector<1x96xf32> to vector<2x96xf32>
    %433 = arith.addf %429, %432 : vector<2x96xf32>
    %434 = vector.extract_strided_slice %423 {offsets = [0, 0], sizes = [2, 32], strides = [1, 1]} : vector<2x96xf32> to vector<2x32xf32>
    %435 = vector.extract_strided_slice %433 {offsets = [0, 0], sizes = [2, 32], strides = [1, 1]} : vector<2x96xf32> to vector<2x32xf32>
    %436 = arith.addf %434, %435 : vector<2x32xf32>
    %437 = arith.negf %436 : vector<2x32xf32>
    %438 = math.exp %437 : vector<2x32xf32>
    %cst_221 = arith.constant 1.000000e+00 : f32
    %439 = vector.broadcast %cst_221 : f32 to vector<2x32xf32>
    %440 = arith.addf %439, %438 : vector<2x32xf32>
    %441 = arith.divf %439, %440 : vector<2x32xf32>
    %442 = vector.extract_strided_slice %423 {offsets = [0, 32], sizes = [2, 32], strides = [1, 1]} : vector<2x96xf32> to vector<2x32xf32>
    %443 = vector.extract_strided_slice %433 {offsets = [0, 32], sizes = [2, 32], strides = [1, 1]} : vector<2x96xf32> to vector<2x32xf32>
    %444 = arith.addf %442, %443 : vector<2x32xf32>
    %445 = arith.negf %444 : vector<2x32xf32>
    %446 = math.exp %445 : vector<2x32xf32>
    %cst_222 = arith.constant 1.000000e+00 : f32
    %447 = vector.broadcast %cst_222 : f32 to vector<2x32xf32>
    %448 = arith.addf %447, %446 : vector<2x32xf32>
    %449 = arith.divf %447, %448 : vector<2x32xf32>
    %450 = vector.extract_strided_slice %423 {offsets = [0, 64], sizes = [2, 32], strides = [1, 1]} : vector<2x96xf32> to vector<2x32xf32>
    %451 = vector.extract_strided_slice %433 {offsets = [0, 64], sizes = [2, 32], strides = [1, 1]} : vector<2x96xf32> to vector<2x32xf32>
    %452 = arith.mulf %441, %451 : vector<2x32xf32>
    %453 = arith.addf %450, %452 : vector<2x32xf32>
    %454 = math.tanh %453 : vector<2x32xf32>
    %cst_223 = arith.constant 1.000000e+00 : f32
    %455 = vector.broadcast %cst_223 : f32 to vector<2x32xf32>
    %456 = arith.subf %455, %449 : vector<2x32xf32>
    %457 = arith.mulf %456, %454 : vector<2x32xf32>
    %458 = arith.mulf %449, %425 : vector<2x32xf32>
    %459 = arith.addf %457, %458 : vector<2x32xf32>
    %c1_224 = arith.constant 1 : index
    %c0_225 = arith.constant 0 : index
    %c0_226 = arith.constant 0 : index
    %460 = vector.load %arg11[%c1_224, %c0_225, %c0_226] : memref<2x2x32xf32, #tpu.memory_space<vmem>>, vector<1x2x32xf32>
    %461 = vector.shape_cast %460 : vector<1x2x32xf32> to vector<2x32xf32>
    %462 = vector.shape_cast %459 : vector<2x32xf32> to vector<1x2x32xf32>
    tpu.vector_store %arg11[%c1_224, %c0_225, %c0_226], %462 {strides = array<i32>} : memref<2x2x32xf32, #tpu.memory_space<vmem>>, vector<1x2x32xf32>,
    %c0_227 = arith.constant 0 : index
    %c0_228 = arith.constant 0 : index
    %463 = vector.load %arg8[%c0_227, %c0_228] : memref<1x32xf32, #tpu.memory_space<vmem>>, vector<1x32xf32>
    %464 = vector.broadcast %463 : vector<1x32xf32> to vector<2x32xf32>
    %465 = arith.mulf %459, %464 : vector<2x32xf32>
    %cst_229 = arith.constant dense<0.000000e+00> : vector<2xf32>
    %466 = vector.multi_reduction <add>, %465, %cst_229 [1] : vector<2x32xf32> to vector<2xf32>
    %467 = vector.shape_cast %466 : vector<2xf32> to vector<2x1xf32>
    %c0_230 = arith.constant 0 : index
    %c0_231 = arith.constant 0 : index
    %468 = vector.load %arg9[%c0_230, %c0_231] : memref<1x1xf32, #tpu.memory_space<vmem>>, vector<1x1xf32>
    %469 = vector.broadcast %468 : vector<1x1xf32> to vector<2x1xf32>
    %470 = arith.addf %467, %469 : vector<2x1xf32>
    %471 = vector.broadcast %374 : i32 to vector<2x1xi32>
    %472 = arith.cmpi slt, %471, %3 : vector<2x1xi32>
    %c0_232 = arith.constant 0 : index
    %c0_233 = arith.constant 0 : index
    %473 = vector.load %arg12[%c0_232, %c0_233] : memref<2x1xf32, #tpu.memory_space<vmem>>, vector<2x1xf32>
    %474 = arith.maximumf %473, %470 : vector<2x1xf32>
    %475 = arith.select %472, %474, %473 : vector<2x1xi1>, vector<2x1xf32>
    %476 = arith.subf %473, %475 : vector<2x1xf32>
    %477 = math.exp %476 : vector<2x1xf32>
    %cst_234 = arith.constant 1.000000e+00 : f32
    %478 = vector.broadcast %cst_234 : f32 to vector<2x1xf32>
    %479 = arith.select %472, %477, %478 : vector<2x1xi1>, vector<2x1xf32>
    %480 = arith.subf %470, %475 : vector<2x1xf32>
    %481 = math.exp %480 : vector<2x1xf32>
    %cst_235 = arith.constant 0.000000e+00 : f32
    %482 = vector.broadcast %cst_235 : f32 to vector<2x1xf32>
    %483 = arith.select %472, %481, %482 : vector<2x1xi1>, vector<2x1xf32>
    %c0_236 = arith.constant 0 : index
    %c0_237 = arith.constant 0 : index
    %484 = vector.load %arg13[%c0_236, %c0_237] : memref<2x1xf32, #tpu.memory_space<vmem>>, vector<2x1xf32>
    %485 = arith.mulf %479, %484 : vector<2x1xf32>
    %486 = arith.addf %485, %483 : vector<2x1xf32>
    %c0_238 = arith.constant 0 : index
    %c0_239 = arith.constant 0 : index
    %487 = vector.load %arg13[%c0_238, %c0_239] : memref<2x1xf32, #tpu.memory_space<vmem>>, vector<2x1xf32>
    tpu.vector_store %arg13[%c0_238, %c0_239], %486 {strides = array<i32>} : memref<2x1xf32, #tpu.memory_space<vmem>>, vector<2x1xf32>,
    %c0_240 = arith.constant 0 : index
    %c0_241 = arith.constant 0 : index
    %488 = vector.load %arg14[%c0_240, %c0_241] : memref<2x32xf32, #tpu.memory_space<vmem>>, vector<2x32xf32>
    %489 = vector.broadcast %479 : vector<2x1xf32> to vector<2x32xf32>
    %490 = arith.mulf %489, %488 : vector<2x32xf32>
    %491 = vector.broadcast %483 : vector<2x1xf32> to vector<2x32xf32>
    %492 = arith.mulf %491, %459 : vector<2x32xf32>
    %493 = arith.addf %490, %492 : vector<2x32xf32>
    %c0_242 = arith.constant 0 : index
    %c0_243 = arith.constant 0 : index
    %494 = vector.load %arg14[%c0_242, %c0_243] : memref<2x32xf32, #tpu.memory_space<vmem>>, vector<2x32xf32>
    tpu.vector_store %arg14[%c0_242, %c0_243], %493 {strides = array<i32>} : memref<2x32xf32, #tpu.memory_space<vmem>>, vector<2x32xf32>,
    %c0_244 = arith.constant 0 : index
    %c0_245 = arith.constant 0 : index
    %495 = vector.load %arg12[%c0_244, %c0_245] : memref<2x1xf32, #tpu.memory_space<vmem>>, vector<2x1xf32>
    tpu.vector_store %arg12[%c0_244, %c0_245], %475 {strides = array<i32>} : memref<2x1xf32, #tpu.memory_space<vmem>>, vector<2x1xf32>,
    %c8_i32_246 = arith.constant 8 : i32
    %496 = arith.muli %arg1, %c8_i32_246 : i32
    %c4_i32 = arith.constant 4 : i32
    %497 = arith.addi %496, %c4_i32 : i32
    %c4 = arith.constant 4 : index
    %c0_247 = arith.constant 0 : index
    %c0_248 = arith.constant 0 : index
    %498 = vector.load %arg2[%c4, %c0_247, %c0_248] : memref<8x2x96xf32, #tpu.memory_space<vmem>>, vector<1x2x96xf32>
    %499 = vector.shape_cast %498 : vector<1x2x96xf32> to vector<2x96xf32>
    %c0_249 = arith.constant 0 : index
    %c0_250 = arith.constant 0 : index
    %c0_251 = arith.constant 0 : index
    %500 = vector.load %arg11[%c0_249, %c0_250, %c0_251] : memref<2x2x32xf32, #tpu.memory_space<vmem>>, vector<1x2x32xf32>
    %501 = vector.shape_cast %500 : vector<1x2x32xf32> to vector<2x32xf32>
    %502 = arith.truncf %501 : vector<2x32xf32> to vector<2x32xbf16>
    %c0_252 = arith.constant 0 : index
    %c0_253 = arith.constant 0 : index
    %c0_254 = arith.constant 0 : index
    %503 = vector.load %arg5[%c0_252, %c0_253, %c0_254] : memref<2x32x96xbf16, #tpu.memory_space<vmem>>, vector<1x32x96xbf16>
    %504 = vector.shape_cast %503 : vector<1x32x96xbf16> to vector<32x96xbf16>
    %cst_255 = arith.constant dense<0.000000e+00> : vector<2x96xf32>
    %505 = tpu.matmul %502, %504, %cst_255 {dimension_numbers = #tpu.dot_dimension_numbers<[1], [0], [0], [1], [0, 0, 1, 1], [], []>} : vector<2x32xbf16>, vector<32x96xbf16>, vector<2x96xf32> -> vector<2x96xf32>
    %c0_256 = arith.constant 0 : index
    %c0_257 = arith.constant 0 : index
    %c0_258 = arith.constant 0 : index
    %506 = vector.load %arg7[%c0_256, %c0_257, %c0_258] : memref<2x1x96xf32, #tpu.memory_space<vmem>>, vector<1x1x96xf32>
    %507 = vector.shape_cast %506 : vector<1x1x96xf32> to vector<1x96xf32>
    %508 = vector.broadcast %507 : vector<1x96xf32> to vector<2x96xf32>
    %509 = arith.addf %505, %508 : vector<2x96xf32>
    %510 = vector.extract_strided_slice %499 {offsets = [0, 0], sizes = [2, 32], strides = [1, 1]} : vector<2x96xf32> to vector<2x32xf32>
    %511 = vector.extract_strided_slice %509 {offsets = [0, 0], sizes = [2, 32], strides = [1, 1]} : vector<2x96xf32> to vector<2x32xf32>
    %512 = arith.addf %510, %511 : vector<2x32xf32>
    %513 = arith.negf %512 : vector<2x32xf32>
    %514 = math.exp %513 : vector<2x32xf32>
    %cst_259 = arith.constant 1.000000e+00 : f32
    %515 = vector.broadcast %cst_259 : f32 to vector<2x32xf32>
    %516 = arith.addf %515, %514 : vector<2x32xf32>
    %517 = arith.divf %515, %516 : vector<2x32xf32>
    %518 = vector.extract_strided_slice %499 {offsets = [0, 32], sizes = [2, 32], strides = [1, 1]} : vector<2x96xf32> to vector<2x32xf32>
    %519 = vector.extract_strided_slice %509 {offsets = [0, 32], sizes = [2, 32], strides = [1, 1]} : vector<2x96xf32> to vector<2x32xf32>
    %520 = arith.addf %518, %519 : vector<2x32xf32>
    %521 = arith.negf %520 : vector<2x32xf32>
    %522 = math.exp %521 : vector<2x32xf32>
    %cst_260 = arith.constant 1.000000e+00 : f32
    %523 = vector.broadcast %cst_260 : f32 to vector<2x32xf32>
    %524 = arith.addf %523, %522 : vector<2x32xf32>
    %525 = arith.divf %523, %524 : vector<2x32xf32>
    %526 = vector.extract_strided_slice %499 {offsets = [0, 64], sizes = [2, 32], strides = [1, 1]} : vector<2x96xf32> to vector<2x32xf32>
    %527 = vector.extract_strided_slice %509 {offsets = [0, 64], sizes = [2, 32], strides = [1, 1]} : vector<2x96xf32> to vector<2x32xf32>
    %528 = arith.mulf %517, %527 : vector<2x32xf32>
    %529 = arith.addf %526, %528 : vector<2x32xf32>
    %530 = math.tanh %529 : vector<2x32xf32>
    %cst_261 = arith.constant 1.000000e+00 : f32
    %531 = vector.broadcast %cst_261 : f32 to vector<2x32xf32>
    %532 = arith.subf %531, %525 : vector<2x32xf32>
    %533 = arith.mulf %532, %530 : vector<2x32xf32>
    %534 = arith.mulf %525, %501 : vector<2x32xf32>
    %535 = arith.addf %533, %534 : vector<2x32xf32>
    %c0_262 = arith.constant 0 : index
    %c0_263 = arith.constant 0 : index
    %c0_264 = arith.constant 0 : index
    %536 = vector.load %arg11[%c0_262, %c0_263, %c0_264] : memref<2x2x32xf32, #tpu.memory_space<vmem>>, vector<1x2x32xf32>
    %537 = vector.shape_cast %536 : vector<1x2x32xf32> to vector<2x32xf32>
    %538 = vector.shape_cast %535 : vector<2x32xf32> to vector<1x2x32xf32>
    tpu.vector_store %arg11[%c0_262, %c0_263, %c0_264], %538 {strides = array<i32>} : memref<2x2x32xf32, #tpu.memory_space<vmem>>, vector<1x2x32xf32>,
    %539 = arith.truncf %535 : vector<2x32xf32> to vector<2x32xbf16>
    %c1_265 = arith.constant 1 : index
    %c0_266 = arith.constant 0 : index
    %c0_267 = arith.constant 0 : index
    %540 = vector.load %arg4[%c1_265, %c0_266, %c0_267] : memref<2x32x96xbf16, #tpu.memory_space<vmem>>, vector<1x32x96xbf16>
    %541 = vector.shape_cast %540 : vector<1x32x96xbf16> to vector<32x96xbf16>
    %cst_268 = arith.constant dense<0.000000e+00> : vector<2x96xf32>
    %542 = tpu.matmul %539, %541, %cst_268 {dimension_numbers = #tpu.dot_dimension_numbers<[1], [0], [0], [1], [0, 0, 1, 1], [], []>} : vector<2x32xbf16>, vector<32x96xbf16>, vector<2x96xf32> -> vector<2x96xf32>
    %c1_269 = arith.constant 1 : index
    %c0_270 = arith.constant 0 : index
    %c0_271 = arith.constant 0 : index
    %543 = vector.load %arg6[%c1_269, %c0_270, %c0_271] : memref<2x1x96xf32, #tpu.memory_space<vmem>>, vector<1x1x96xf32>
    %544 = vector.shape_cast %543 : vector<1x1x96xf32> to vector<1x96xf32>
    %545 = vector.broadcast %544 : vector<1x96xf32> to vector<2x96xf32>
    %546 = arith.addf %542, %545 : vector<2x96xf32>
    %c1_272 = arith.constant 1 : index
    %c0_273 = arith.constant 0 : index
    %c0_274 = arith.constant 0 : index
    %547 = vector.load %arg11[%c1_272, %c0_273, %c0_274] : memref<2x2x32xf32, #tpu.memory_space<vmem>>, vector<1x2x32xf32>
    %548 = vector.shape_cast %547 : vector<1x2x32xf32> to vector<2x32xf32>
    %549 = arith.truncf %548 : vector<2x32xf32> to vector<2x32xbf16>
    %c1_275 = arith.constant 1 : index
    %c0_276 = arith.constant 0 : index
    %c0_277 = arith.constant 0 : index
    %550 = vector.load %arg5[%c1_275, %c0_276, %c0_277] : memref<2x32x96xbf16, #tpu.memory_space<vmem>>, vector<1x32x96xbf16>
    %551 = vector.shape_cast %550 : vector<1x32x96xbf16> to vector<32x96xbf16>
    %cst_278 = arith.constant dense<0.000000e+00> : vector<2x96xf32>
    %552 = tpu.matmul %549, %551, %cst_278 {dimension_numbers = #tpu.dot_dimension_numbers<[1], [0], [0], [1], [0, 0, 1, 1], [], []>} : vector<2x32xbf16>, vector<32x96xbf16>, vector<2x96xf32> -> vector<2x96xf32>
    %c1_279 = arith.constant 1 : index
    %c0_280 = arith.constant 0 : index
    %c0_281 = arith.constant 0 : index
    %553 = vector.load %arg7[%c1_279, %c0_280, %c0_281] : memref<2x1x96xf32, #tpu.memory_space<vmem>>, vector<1x1x96xf32>
    %554 = vector.shape_cast %553 : vector<1x1x96xf32> to vector<1x96xf32>
    %555 = vector.broadcast %554 : vector<1x96xf32> to vector<2x96xf32>
    %556 = arith.addf %552, %555 : vector<2x96xf32>
    %557 = vector.extract_strided_slice %546 {offsets = [0, 0], sizes = [2, 32], strides = [1, 1]} : vector<2x96xf32> to vector<2x32xf32>
    %558 = vector.extract_strided_slice %556 {offsets = [0, 0], sizes = [2, 32], strides = [1, 1]} : vector<2x96xf32> to vector<2x32xf32>
    %559 = arith.addf %557, %558 : vector<2x32xf32>
    %560 = arith.negf %559 : vector<2x32xf32>
    %561 = math.exp %560 : vector<2x32xf32>
    %cst_282 = arith.constant 1.000000e+00 : f32
    %562 = vector.broadcast %cst_282 : f32 to vector<2x32xf32>
    %563 = arith.addf %562, %561 : vector<2x32xf32>
    %564 = arith.divf %562, %563 : vector<2x32xf32>
    %565 = vector.extract_strided_slice %546 {offsets = [0, 32], sizes = [2, 32], strides = [1, 1]} : vector<2x96xf32> to vector<2x32xf32>
    %566 = vector.extract_strided_slice %556 {offsets = [0, 32], sizes = [2, 32], strides = [1, 1]} : vector<2x96xf32> to vector<2x32xf32>
    %567 = arith.addf %565, %566 : vector<2x32xf32>
    %568 = arith.negf %567 : vector<2x32xf32>
    %569 = math.exp %568 : vector<2x32xf32>
    %cst_283 = arith.constant 1.000000e+00 : f32
    %570 = vector.broadcast %cst_283 : f32 to vector<2x32xf32>
    %571 = arith.addf %570, %569 : vector<2x32xf32>
    %572 = arith.divf %570, %571 : vector<2x32xf32>
    %573 = vector.extract_strided_slice %546 {offsets = [0, 64], sizes = [2, 32], strides = [1, 1]} : vector<2x96xf32> to vector<2x32xf32>
    %574 = vector.extract_strided_slice %556 {offsets = [0, 64], sizes = [2, 32], strides = [1, 1]} : vector<2x96xf32> to vector<2x32xf32>
    %575 = arith.mulf %564, %574 : vector<2x32xf32>
    %576 = arith.addf %573, %575 : vector<2x32xf32>
    %577 = math.tanh %576 : vector<2x32xf32>
    %cst_284 = arith.constant 1.000000e+00 : f32
    %578 = vector.broadcast %cst_284 : f32 to vector<2x32xf32>
    %579 = arith.subf %578, %572 : vector<2x32xf32>
    %580 = arith.mulf %579, %577 : vector<2x32xf32>
    %581 = arith.mulf %572, %548 : vector<2x32xf32>
    %582 = arith.addf %580, %581 : vector<2x32xf32>
    %c1_285 = arith.constant 1 : index
    %c0_286 = arith.constant 0 : index
    %c0_287 = arith.constant 0 : index
    %583 = vector.load %arg11[%c1_285, %c0_286, %c0_287] : memref<2x2x32xf32, #tpu.memory_space<vmem>>, vector<1x2x32xf32>
    %584 = vector.shape_cast %583 : vector<1x2x32xf32> to vector<2x32xf32>
    %585 = vector.shape_cast %582 : vector<2x32xf32> to vector<1x2x32xf32>
    tpu.vector_store %arg11[%c1_285, %c0_286, %c0_287], %585 {strides = array<i32>} : memref<2x2x32xf32, #tpu.memory_space<vmem>>, vector<1x2x32xf32>,
    %c0_288 = arith.constant 0 : index
    %c0_289 = arith.constant 0 : index
    %586 = vector.load %arg8[%c0_288, %c0_289] : memref<1x32xf32, #tpu.memory_space<vmem>>, vector<1x32xf32>
    %587 = vector.broadcast %586 : vector<1x32xf32> to vector<2x32xf32>
    %588 = arith.mulf %582, %587 : vector<2x32xf32>
    %cst_290 = arith.constant dense<0.000000e+00> : vector<2xf32>
    %589 = vector.multi_reduction <add>, %588, %cst_290 [1] : vector<2x32xf32> to vector<2xf32>
    %590 = vector.shape_cast %589 : vector<2xf32> to vector<2x1xf32>
    %c0_291 = arith.constant 0 : index
    %c0_292 = arith.constant 0 : index
    %591 = vector.load %arg9[%c0_291, %c0_292] : memref<1x1xf32, #tpu.memory_space<vmem>>, vector<1x1xf32>
    %592 = vector.broadcast %591 : vector<1x1xf32> to vector<2x1xf32>
    %593 = arith.addf %590, %592 : vector<2x1xf32>
    %594 = vector.broadcast %497 : i32 to vector<2x1xi32>
    %595 = arith.cmpi slt, %594, %3 : vector<2x1xi32>
    %c0_293 = arith.constant 0 : index
    %c0_294 = arith.constant 0 : index
    %596 = vector.load %arg12[%c0_293, %c0_294] : memref<2x1xf32, #tpu.memory_space<vmem>>, vector<2x1xf32>
    %597 = arith.maximumf %596, %593 : vector<2x1xf32>
    %598 = arith.select %595, %597, %596 : vector<2x1xi1>, vector<2x1xf32>
    %599 = arith.subf %596, %598 : vector<2x1xf32>
    %600 = math.exp %599 : vector<2x1xf32>
    %cst_295 = arith.constant 1.000000e+00 : f32
    %601 = vector.broadcast %cst_295 : f32 to vector<2x1xf32>
    %602 = arith.select %595, %600, %601 : vector<2x1xi1>, vector<2x1xf32>
    %603 = arith.subf %593, %598 : vector<2x1xf32>
    %604 = math.exp %603 : vector<2x1xf32>
    %cst_296 = arith.constant 0.000000e+00 : f32
    %605 = vector.broadcast %cst_296 : f32 to vector<2x1xf32>
    %606 = arith.select %595, %604, %605 : vector<2x1xi1>, vector<2x1xf32>
    %c0_297 = arith.constant 0 : index
    %c0_298 = arith.constant 0 : index
    %607 = vector.load %arg13[%c0_297, %c0_298] : memref<2x1xf32, #tpu.memory_space<vmem>>, vector<2x1xf32>
    %608 = arith.mulf %602, %607 : vector<2x1xf32>
    %609 = arith.addf %608, %606 : vector<2x1xf32>
    %c0_299 = arith.constant 0 : index
    %c0_300 = arith.constant 0 : index
    %610 = vector.load %arg13[%c0_299, %c0_300] : memref<2x1xf32, #tpu.memory_space<vmem>>, vector<2x1xf32>
    tpu.vector_store %arg13[%c0_299, %c0_300], %609 {strides = array<i32>} : memref<2x1xf32, #tpu.memory_space<vmem>>, vector<2x1xf32>,
    %c0_301 = arith.constant 0 : index
    %c0_302 = arith.constant 0 : index
    %611 = vector.load %arg14[%c0_301, %c0_302] : memref<2x32xf32, #tpu.memory_space<vmem>>, vector<2x32xf32>
    %612 = vector.broadcast %602 : vector<2x1xf32> to vector<2x32xf32>
    %613 = arith.mulf %612, %611 : vector<2x32xf32>
    %614 = vector.broadcast %606 : vector<2x1xf32> to vector<2x32xf32>
    %615 = arith.mulf %614, %582 : vector<2x32xf32>
    %616 = arith.addf %613, %615 : vector<2x32xf32>
    %c0_303 = arith.constant 0 : index
    %c0_304 = arith.constant 0 : index
    %617 = vector.load %arg14[%c0_303, %c0_304] : memref<2x32xf32, #tpu.memory_space<vmem>>, vector<2x32xf32>
    tpu.vector_store %arg14[%c0_303, %c0_304], %616 {strides = array<i32>} : memref<2x32xf32, #tpu.memory_space<vmem>>, vector<2x32xf32>,
    %c0_305 = arith.constant 0 : index
    %c0_306 = arith.constant 0 : index
    %618 = vector.load %arg12[%c0_305, %c0_306] : memref<2x1xf32, #tpu.memory_space<vmem>>, vector<2x1xf32>
    tpu.vector_store %arg12[%c0_305, %c0_306], %598 {strides = array<i32>} : memref<2x1xf32, #tpu.memory_space<vmem>>, vector<2x1xf32>,
    %c8_i32_307 = arith.constant 8 : i32
    %619 = arith.muli %arg1, %c8_i32_307 : i32
    %c5_i32 = arith.constant 5 : i32
    %620 = arith.addi %619, %c5_i32 : i32
    %c5 = arith.constant 5 : index
    %c0_308 = arith.constant 0 : index
    %c0_309 = arith.constant 0 : index
    %621 = vector.load %arg2[%c5, %c0_308, %c0_309] : memref<8x2x96xf32, #tpu.memory_space<vmem>>, vector<1x2x96xf32>
    %622 = vector.shape_cast %621 : vector<1x2x96xf32> to vector<2x96xf32>
    %c0_310 = arith.constant 0 : index
    %c0_311 = arith.constant 0 : index
    %c0_312 = arith.constant 0 : index
    %623 = vector.load %arg11[%c0_310, %c0_311, %c0_312] : memref<2x2x32xf32, #tpu.memory_space<vmem>>, vector<1x2x32xf32>
    %624 = vector.shape_cast %623 : vector<1x2x32xf32> to vector<2x32xf32>
    %625 = arith.truncf %624 : vector<2x32xf32> to vector<2x32xbf16>
    %c0_313 = arith.constant 0 : index
    %c0_314 = arith.constant 0 : index
    %c0_315 = arith.constant 0 : index
    %626 = vector.load %arg5[%c0_313, %c0_314, %c0_315] : memref<2x32x96xbf16, #tpu.memory_space<vmem>>, vector<1x32x96xbf16>
    %627 = vector.shape_cast %626 : vector<1x32x96xbf16> to vector<32x96xbf16>
    %cst_316 = arith.constant dense<0.000000e+00> : vector<2x96xf32>
    %628 = tpu.matmul %625, %627, %cst_316 {dimension_numbers = #tpu.dot_dimension_numbers<[1], [0], [0], [1], [0, 0, 1, 1], [], []>} : vector<2x32xbf16>, vector<32x96xbf16>, vector<2x96xf32> -> vector<2x96xf32>
    %c0_317 = arith.constant 0 : index
    %c0_318 = arith.constant 0 : index
    %c0_319 = arith.constant 0 : index
    %629 = vector.load %arg7[%c0_317, %c0_318, %c0_319] : memref<2x1x96xf32, #tpu.memory_space<vmem>>, vector<1x1x96xf32>
    %630 = vector.shape_cast %629 : vector<1x1x96xf32> to vector<1x96xf32>
    %631 = vector.broadcast %630 : vector<1x96xf32> to vector<2x96xf32>
    %632 = arith.addf %628, %631 : vector<2x96xf32>
    %633 = vector.extract_strided_slice %622 {offsets = [0, 0], sizes = [2, 32], strides = [1, 1]} : vector<2x96xf32> to vector<2x32xf32>
    %634 = vector.extract_strided_slice %632 {offsets = [0, 0], sizes = [2, 32], strides = [1, 1]} : vector<2x96xf32> to vector<2x32xf32>
    %635 = arith.addf %633, %634 : vector<2x32xf32>
    %636 = arith.negf %635 : vector<2x32xf32>
    %637 = math.exp %636 : vector<2x32xf32>
    %cst_320 = arith.constant 1.000000e+00 : f32
    %638 = vector.broadcast %cst_320 : f32 to vector<2x32xf32>
    %639 = arith.addf %638, %637 : vector<2x32xf32>
    %640 = arith.divf %638, %639 : vector<2x32xf32>
    %641 = vector.extract_strided_slice %622 {offsets = [0, 32], sizes = [2, 32], strides = [1, 1]} : vector<2x96xf32> to vector<2x32xf32>
    %642 = vector.extract_strided_slice %632 {offsets = [0, 32], sizes = [2, 32], strides = [1, 1]} : vector<2x96xf32> to vector<2x32xf32>
    %643 = arith.addf %641, %642 : vector<2x32xf32>
    %644 = arith.negf %643 : vector<2x32xf32>
    %645 = math.exp %644 : vector<2x32xf32>
    %cst_321 = arith.constant 1.000000e+00 : f32
    %646 = vector.broadcast %cst_321 : f32 to vector<2x32xf32>
    %647 = arith.addf %646, %645 : vector<2x32xf32>
    %648 = arith.divf %646, %647 : vector<2x32xf32>
    %649 = vector.extract_strided_slice %622 {offsets = [0, 64], sizes = [2, 32], strides = [1, 1]} : vector<2x96xf32> to vector<2x32xf32>
    %650 = vector.extract_strided_slice %632 {offsets = [0, 64], sizes = [2, 32], strides = [1, 1]} : vector<2x96xf32> to vector<2x32xf32>
    %651 = arith.mulf %640, %650 : vector<2x32xf32>
    %652 = arith.addf %649, %651 : vector<2x32xf32>
    %653 = math.tanh %652 : vector<2x32xf32>
    %cst_322 = arith.constant 1.000000e+00 : f32
    %654 = vector.broadcast %cst_322 : f32 to vector<2x32xf32>
    %655 = arith.subf %654, %648 : vector<2x32xf32>
    %656 = arith.mulf %655, %653 : vector<2x32xf32>
    %657 = arith.mulf %648, %624 : vector<2x32xf32>
    %658 = arith.addf %656, %657 : vector<2x32xf32>
    %c0_323 = arith.constant 0 : index
    %c0_324 = arith.constant 0 : index
    %c0_325 = arith.constant 0 : index
    %659 = vector.load %arg11[%c0_323, %c0_324, %c0_325] : memref<2x2x32xf32, #tpu.memory_space<vmem>>, vector<1x2x32xf32>
    %660 = vector.shape_cast %659 : vector<1x2x32xf32> to vector<2x32xf32>
    %661 = vector.shape_cast %658 : vector<2x32xf32> to vector<1x2x32xf32>
    tpu.vector_store %arg11[%c0_323, %c0_324, %c0_325], %661 {strides = array<i32>} : memref<2x2x32xf32, #tpu.memory_space<vmem>>, vector<1x2x32xf32>,
    %662 = arith.truncf %658 : vector<2x32xf32> to vector<2x32xbf16>
    %c1_326 = arith.constant 1 : index
    %c0_327 = arith.constant 0 : index
    %c0_328 = arith.constant 0 : index
    %663 = vector.load %arg4[%c1_326, %c0_327, %c0_328] : memref<2x32x96xbf16, #tpu.memory_space<vmem>>, vector<1x32x96xbf16>
    %664 = vector.shape_cast %663 : vector<1x32x96xbf16> to vector<32x96xbf16>
    %cst_329 = arith.constant dense<0.000000e+00> : vector<2x96xf32>
    %665 = tpu.matmul %662, %664, %cst_329 {dimension_numbers = #tpu.dot_dimension_numbers<[1], [0], [0], [1], [0, 0, 1, 1], [], []>} : vector<2x32xbf16>, vector<32x96xbf16>, vector<2x96xf32> -> vector<2x96xf32>
    %c1_330 = arith.constant 1 : index
    %c0_331 = arith.constant 0 : index
    %c0_332 = arith.constant 0 : index
    %666 = vector.load %arg6[%c1_330, %c0_331, %c0_332] : memref<2x1x96xf32, #tpu.memory_space<vmem>>, vector<1x1x96xf32>
    %667 = vector.shape_cast %666 : vector<1x1x96xf32> to vector<1x96xf32>
    %668 = vector.broadcast %667 : vector<1x96xf32> to vector<2x96xf32>
    %669 = arith.addf %665, %668 : vector<2x96xf32>
    %c1_333 = arith.constant 1 : index
    %c0_334 = arith.constant 0 : index
    %c0_335 = arith.constant 0 : index
    %670 = vector.load %arg11[%c1_333, %c0_334, %c0_335] : memref<2x2x32xf32, #tpu.memory_space<vmem>>, vector<1x2x32xf32>
    %671 = vector.shape_cast %670 : vector<1x2x32xf32> to vector<2x32xf32>
    %672 = arith.truncf %671 : vector<2x32xf32> to vector<2x32xbf16>
    %c1_336 = arith.constant 1 : index
    %c0_337 = arith.constant 0 : index
    %c0_338 = arith.constant 0 : index
    %673 = vector.load %arg5[%c1_336, %c0_337, %c0_338] : memref<2x32x96xbf16, #tpu.memory_space<vmem>>, vector<1x32x96xbf16>
    %674 = vector.shape_cast %673 : vector<1x32x96xbf16> to vector<32x96xbf16>
    %cst_339 = arith.constant dense<0.000000e+00> : vector<2x96xf32>
    %675 = tpu.matmul %672, %674, %cst_339 {dimension_numbers = #tpu.dot_dimension_numbers<[1], [0], [0], [1], [0, 0, 1, 1], [], []>} : vector<2x32xbf16>, vector<32x96xbf16>, vector<2x96xf32> -> vector<2x96xf32>
    %c1_340 = arith.constant 1 : index
    %c0_341 = arith.constant 0 : index
    %c0_342 = arith.constant 0 : index
    %676 = vector.load %arg7[%c1_340, %c0_341, %c0_342] : memref<2x1x96xf32, #tpu.memory_space<vmem>>, vector<1x1x96xf32>
    %677 = vector.shape_cast %676 : vector<1x1x96xf32> to vector<1x96xf32>
    %678 = vector.broadcast %677 : vector<1x96xf32> to vector<2x96xf32>
    %679 = arith.addf %675, %678 : vector<2x96xf32>
    %680 = vector.extract_strided_slice %669 {offsets = [0, 0], sizes = [2, 32], strides = [1, 1]} : vector<2x96xf32> to vector<2x32xf32>
    %681 = vector.extract_strided_slice %679 {offsets = [0, 0], sizes = [2, 32], strides = [1, 1]} : vector<2x96xf32> to vector<2x32xf32>
    %682 = arith.addf %680, %681 : vector<2x32xf32>
    %683 = arith.negf %682 : vector<2x32xf32>
    %684 = math.exp %683 : vector<2x32xf32>
    %cst_343 = arith.constant 1.000000e+00 : f32
    %685 = vector.broadcast %cst_343 : f32 to vector<2x32xf32>
    %686 = arith.addf %685, %684 : vector<2x32xf32>
    %687 = arith.divf %685, %686 : vector<2x32xf32>
    %688 = vector.extract_strided_slice %669 {offsets = [0, 32], sizes = [2, 32], strides = [1, 1]} : vector<2x96xf32> to vector<2x32xf32>
    %689 = vector.extract_strided_slice %679 {offsets = [0, 32], sizes = [2, 32], strides = [1, 1]} : vector<2x96xf32> to vector<2x32xf32>
    %690 = arith.addf %688, %689 : vector<2x32xf32>
    %691 = arith.negf %690 : vector<2x32xf32>
    %692 = math.exp %691 : vector<2x32xf32>
    %cst_344 = arith.constant 1.000000e+00 : f32
    %693 = vector.broadcast %cst_344 : f32 to vector<2x32xf32>
    %694 = arith.addf %693, %692 : vector<2x32xf32>
    %695 = arith.divf %693, %694 : vector<2x32xf32>
    %696 = vector.extract_strided_slice %669 {offsets = [0, 64], sizes = [2, 32], strides = [1, 1]} : vector<2x96xf32> to vector<2x32xf32>
    %697 = vector.extract_strided_slice %679 {offsets = [0, 64], sizes = [2, 32], strides = [1, 1]} : vector<2x96xf32> to vector<2x32xf32>
    %698 = arith.mulf %687, %697 : vector<2x32xf32>
    %699 = arith.addf %696, %698 : vector<2x32xf32>
    %700 = math.tanh %699 : vector<2x32xf32>
    %cst_345 = arith.constant 1.000000e+00 : f32
    %701 = vector.broadcast %cst_345 : f32 to vector<2x32xf32>
    %702 = arith.subf %701, %695 : vector<2x32xf32>
    %703 = arith.mulf %702, %700 : vector<2x32xf32>
    %704 = arith.mulf %695, %671 : vector<2x32xf32>
    %705 = arith.addf %703, %704 : vector<2x32xf32>
    %c1_346 = arith.constant 1 : index
    %c0_347 = arith.constant 0 : index
    %c0_348 = arith.constant 0 : index
    %706 = vector.load %arg11[%c1_346, %c0_347, %c0_348] : memref<2x2x32xf32, #tpu.memory_space<vmem>>, vector<1x2x32xf32>
    %707 = vector.shape_cast %706 : vector<1x2x32xf32> to vector<2x32xf32>
    %708 = vector.shape_cast %705 : vector<2x32xf32> to vector<1x2x32xf32>
    tpu.vector_store %arg11[%c1_346, %c0_347, %c0_348], %708 {strides = array<i32>} : memref<2x2x32xf32, #tpu.memory_space<vmem>>, vector<1x2x32xf32>,
    %c0_349 = arith.constant 0 : index
    %c0_350 = arith.constant 0 : index
    %709 = vector.load %arg8[%c0_349, %c0_350] : memref<1x32xf32, #tpu.memory_space<vmem>>, vector<1x32xf32>
    %710 = vector.broadcast %709 : vector<1x32xf32> to vector<2x32xf32>
    %711 = arith.mulf %705, %710 : vector<2x32xf32>
    %cst_351 = arith.constant dense<0.000000e+00> : vector<2xf32>
    %712 = vector.multi_reduction <add>, %711, %cst_351 [1] : vector<2x32xf32> to vector<2xf32>
    %713 = vector.shape_cast %712 : vector<2xf32> to vector<2x1xf32>
    %c0_352 = arith.constant 0 : index
    %c0_353 = arith.constant 0 : index
    %714 = vector.load %arg9[%c0_352, %c0_353] : memref<1x1xf32, #tpu.memory_space<vmem>>, vector<1x1xf32>
    %715 = vector.broadcast %714 : vector<1x1xf32> to vector<2x1xf32>
    %716 = arith.addf %713, %715 : vector<2x1xf32>
    %717 = vector.broadcast %620 : i32 to vector<2x1xi32>
    %718 = arith.cmpi slt, %717, %3 : vector<2x1xi32>
    %c0_354 = arith.constant 0 : index
    %c0_355 = arith.constant 0 : index
    %719 = vector.load %arg12[%c0_354, %c0_355] : memref<2x1xf32, #tpu.memory_space<vmem>>, vector<2x1xf32>
    %720 = arith.maximumf %719, %716 : vector<2x1xf32>
    %721 = arith.select %718, %720, %719 : vector<2x1xi1>, vector<2x1xf32>
    %722 = arith.subf %719, %721 : vector<2x1xf32>
    %723 = math.exp %722 : vector<2x1xf32>
    %cst_356 = arith.constant 1.000000e+00 : f32
    %724 = vector.broadcast %cst_356 : f32 to vector<2x1xf32>
    %725 = arith.select %718, %723, %724 : vector<2x1xi1>, vector<2x1xf32>
    %726 = arith.subf %716, %721 : vector<2x1xf32>
    %727 = math.exp %726 : vector<2x1xf32>
    %cst_357 = arith.constant 0.000000e+00 : f32
    %728 = vector.broadcast %cst_357 : f32 to vector<2x1xf32>
    %729 = arith.select %718, %727, %728 : vector<2x1xi1>, vector<2x1xf32>
    %c0_358 = arith.constant 0 : index
    %c0_359 = arith.constant 0 : index
    %730 = vector.load %arg13[%c0_358, %c0_359] : memref<2x1xf32, #tpu.memory_space<vmem>>, vector<2x1xf32>
    %731 = arith.mulf %725, %730 : vector<2x1xf32>
    %732 = arith.addf %731, %729 : vector<2x1xf32>
    %c0_360 = arith.constant 0 : index
    %c0_361 = arith.constant 0 : index
    %733 = vector.load %arg13[%c0_360, %c0_361] : memref<2x1xf32, #tpu.memory_space<vmem>>, vector<2x1xf32>
    tpu.vector_store %arg13[%c0_360, %c0_361], %732 {strides = array<i32>} : memref<2x1xf32, #tpu.memory_space<vmem>>, vector<2x1xf32>,
    %c0_362 = arith.constant 0 : index
    %c0_363 = arith.constant 0 : index
    %734 = vector.load %arg14[%c0_362, %c0_363] : memref<2x32xf32, #tpu.memory_space<vmem>>, vector<2x32xf32>
    %735 = vector.broadcast %725 : vector<2x1xf32> to vector<2x32xf32>
    %736 = arith.mulf %735, %734 : vector<2x32xf32>
    %737 = vector.broadcast %729 : vector<2x1xf32> to vector<2x32xf32>
    %738 = arith.mulf %737, %705 : vector<2x32xf32>
    %739 = arith.addf %736, %738 : vector<2x32xf32>
    %c0_364 = arith.constant 0 : index
    %c0_365 = arith.constant 0 : index
    %740 = vector.load %arg14[%c0_364, %c0_365] : memref<2x32xf32, #tpu.memory_space<vmem>>, vector<2x32xf32>
    tpu.vector_store %arg14[%c0_364, %c0_365], %739 {strides = array<i32>} : memref<2x32xf32, #tpu.memory_space<vmem>>, vector<2x32xf32>,
    %c0_366 = arith.constant 0 : index
    %c0_367 = arith.constant 0 : index
    %741 = vector.load %arg12[%c0_366, %c0_367] : memref<2x1xf32, #tpu.memory_space<vmem>>, vector<2x1xf32>
    tpu.vector_store %arg12[%c0_366, %c0_367], %721 {strides = array<i32>} : memref<2x1xf32, #tpu.memory_space<vmem>>, vector<2x1xf32>,
    %c8_i32_368 = arith.constant 8 : i32
    %742 = arith.muli %arg1, %c8_i32_368 : i32
    %c6_i32 = arith.constant 6 : i32
    %743 = arith.addi %742, %c6_i32 : i32
    %c6 = arith.constant 6 : index
    %c0_369 = arith.constant 0 : index
    %c0_370 = arith.constant 0 : index
    %744 = vector.load %arg2[%c6, %c0_369, %c0_370] : memref<8x2x96xf32, #tpu.memory_space<vmem>>, vector<1x2x96xf32>
    %745 = vector.shape_cast %744 : vector<1x2x96xf32> to vector<2x96xf32>
    %c0_371 = arith.constant 0 : index
    %c0_372 = arith.constant 0 : index
    %c0_373 = arith.constant 0 : index
    %746 = vector.load %arg11[%c0_371, %c0_372, %c0_373] : memref<2x2x32xf32, #tpu.memory_space<vmem>>, vector<1x2x32xf32>
    %747 = vector.shape_cast %746 : vector<1x2x32xf32> to vector<2x32xf32>
    %748 = arith.truncf %747 : vector<2x32xf32> to vector<2x32xbf16>
    %c0_374 = arith.constant 0 : index
    %c0_375 = arith.constant 0 : index
    %c0_376 = arith.constant 0 : index
    %749 = vector.load %arg5[%c0_374, %c0_375, %c0_376] : memref<2x32x96xbf16, #tpu.memory_space<vmem>>, vector<1x32x96xbf16>
    %750 = vector.shape_cast %749 : vector<1x32x96xbf16> to vector<32x96xbf16>
    %cst_377 = arith.constant dense<0.000000e+00> : vector<2x96xf32>
    %751 = tpu.matmul %748, %750, %cst_377 {dimension_numbers = #tpu.dot_dimension_numbers<[1], [0], [0], [1], [0, 0, 1, 1], [], []>} : vector<2x32xbf16>, vector<32x96xbf16>, vector<2x96xf32> -> vector<2x96xf32>
    %c0_378 = arith.constant 0 : index
    %c0_379 = arith.constant 0 : index
    %c0_380 = arith.constant 0 : index
    %752 = vector.load %arg7[%c0_378, %c0_379, %c0_380] : memref<2x1x96xf32, #tpu.memory_space<vmem>>, vector<1x1x96xf32>
    %753 = vector.shape_cast %752 : vector<1x1x96xf32> to vector<1x96xf32>
    %754 = vector.broadcast %753 : vector<1x96xf32> to vector<2x96xf32>
    %755 = arith.addf %751, %754 : vector<2x96xf32>
    %756 = vector.extract_strided_slice %745 {offsets = [0, 0], sizes = [2, 32], strides = [1, 1]} : vector<2x96xf32> to vector<2x32xf32>
    %757 = vector.extract_strided_slice %755 {offsets = [0, 0], sizes = [2, 32], strides = [1, 1]} : vector<2x96xf32> to vector<2x32xf32>
    %758 = arith.addf %756, %757 : vector<2x32xf32>
    %759 = arith.negf %758 : vector<2x32xf32>
    %760 = math.exp %759 : vector<2x32xf32>
    %cst_381 = arith.constant 1.000000e+00 : f32
    %761 = vector.broadcast %cst_381 : f32 to vector<2x32xf32>
    %762 = arith.addf %761, %760 : vector<2x32xf32>
    %763 = arith.divf %761, %762 : vector<2x32xf32>
    %764 = vector.extract_strided_slice %745 {offsets = [0, 32], sizes = [2, 32], strides = [1, 1]} : vector<2x96xf32> to vector<2x32xf32>
    %765 = vector.extract_strided_slice %755 {offsets = [0, 32], sizes = [2, 32], strides = [1, 1]} : vector<2x96xf32> to vector<2x32xf32>
    %766 = arith.addf %764, %765 : vector<2x32xf32>
    %767 = arith.negf %766 : vector<2x32xf32>
    %768 = math.exp %767 : vector<2x32xf32>
    %cst_382 = arith.constant 1.000000e+00 : f32
    %769 = vector.broadcast %cst_382 : f32 to vector<2x32xf32>
    %770 = arith.addf %769, %768 : vector<2x32xf32>
    %771 = arith.divf %769, %770 : vector<2x32xf32>
    %772 = vector.extract_strided_slice %745 {offsets = [0, 64], sizes = [2, 32], strides = [1, 1]} : vector<2x96xf32> to vector<2x32xf32>
    %773 = vector.extract_strided_slice %755 {offsets = [0, 64], sizes = [2, 32], strides = [1, 1]} : vector<2x96xf32> to vector<2x32xf32>
    %774 = arith.mulf %763, %773 : vector<2x32xf32>
    %775 = arith.addf %772, %774 : vector<2x32xf32>
    %776 = math.tanh %775 : vector<2x32xf32>
    %cst_383 = arith.constant 1.000000e+00 : f32
    %777 = vector.broadcast %cst_383 : f32 to vector<2x32xf32>
    %778 = arith.subf %777, %771 : vector<2x32xf32>
    %779 = arith.mulf %778, %776 : vector<2x32xf32>
    %780 = arith.mulf %771, %747 : vector<2x32xf32>
    %781 = arith.addf %779, %780 : vector<2x32xf32>
    %c0_384 = arith.constant 0 : index
    %c0_385 = arith.constant 0 : index
    %c0_386 = arith.constant 0 : index
    %782 = vector.load %arg11[%c0_384, %c0_385, %c0_386] : memref<2x2x32xf32, #tpu.memory_space<vmem>>, vector<1x2x32xf32>
    %783 = vector.shape_cast %782 : vector<1x2x32xf32> to vector<2x32xf32>
    %784 = vector.shape_cast %781 : vector<2x32xf32> to vector<1x2x32xf32>
    tpu.vector_store %arg11[%c0_384, %c0_385, %c0_386], %784 {strides = array<i32>} : memref<2x2x32xf32, #tpu.memory_space<vmem>>, vector<1x2x32xf32>,
    %785 = arith.truncf %781 : vector<2x32xf32> to vector<2x32xbf16>
    %c1_387 = arith.constant 1 : index
    %c0_388 = arith.constant 0 : index
    %c0_389 = arith.constant 0 : index
    %786 = vector.load %arg4[%c1_387, %c0_388, %c0_389] : memref<2x32x96xbf16, #tpu.memory_space<vmem>>, vector<1x32x96xbf16>
    %787 = vector.shape_cast %786 : vector<1x32x96xbf16> to vector<32x96xbf16>
    %cst_390 = arith.constant dense<0.000000e+00> : vector<2x96xf32>
    %788 = tpu.matmul %785, %787, %cst_390 {dimension_numbers = #tpu.dot_dimension_numbers<[1], [0], [0], [1], [0, 0, 1, 1], [], []>} : vector<2x32xbf16>, vector<32x96xbf16>, vector<2x96xf32> -> vector<2x96xf32>
    %c1_391 = arith.constant 1 : index
    %c0_392 = arith.constant 0 : index
    %c0_393 = arith.constant 0 : index
    %789 = vector.load %arg6[%c1_391, %c0_392, %c0_393] : memref<2x1x96xf32, #tpu.memory_space<vmem>>, vector<1x1x96xf32>
    %790 = vector.shape_cast %789 : vector<1x1x96xf32> to vector<1x96xf32>
    %791 = vector.broadcast %790 : vector<1x96xf32> to vector<2x96xf32>
    %792 = arith.addf %788, %791 : vector<2x96xf32>
    %c1_394 = arith.constant 1 : index
    %c0_395 = arith.constant 0 : index
    %c0_396 = arith.constant 0 : index
    %793 = vector.load %arg11[%c1_394, %c0_395, %c0_396] : memref<2x2x32xf32, #tpu.memory_space<vmem>>, vector<1x2x32xf32>
    %794 = vector.shape_cast %793 : vector<1x2x32xf32> to vector<2x32xf32>
    %795 = arith.truncf %794 : vector<2x32xf32> to vector<2x32xbf16>
    %c1_397 = arith.constant 1 : index
    %c0_398 = arith.constant 0 : index
    %c0_399 = arith.constant 0 : index
    %796 = vector.load %arg5[%c1_397, %c0_398, %c0_399] : memref<2x32x96xbf16, #tpu.memory_space<vmem>>, vector<1x32x96xbf16>
    %797 = vector.shape_cast %796 : vector<1x32x96xbf16> to vector<32x96xbf16>
    %cst_400 = arith.constant dense<0.000000e+00> : vector<2x96xf32>
    %798 = tpu.matmul %795, %797, %cst_400 {dimension_numbers = #tpu.dot_dimension_numbers<[1], [0], [0], [1], [0, 0, 1, 1], [], []>} : vector<2x32xbf16>, vector<32x96xbf16>, vector<2x96xf32> -> vector<2x96xf32>
    %c1_401 = arith.constant 1 : index
    %c0_402 = arith.constant 0 : index
    %c0_403 = arith.constant 0 : index
    %799 = vector.load %arg7[%c1_401, %c0_402, %c0_403] : memref<2x1x96xf32, #tpu.memory_space<vmem>>, vector<1x1x96xf32>
    %800 = vector.shape_cast %799 : vector<1x1x96xf32> to vector<1x96xf32>
    %801 = vector.broadcast %800 : vector<1x96xf32> to vector<2x96xf32>
    %802 = arith.addf %798, %801 : vector<2x96xf32>
    %803 = vector.extract_strided_slice %792 {offsets = [0, 0], sizes = [2, 32], strides = [1, 1]} : vector<2x96xf32> to vector<2x32xf32>
    %804 = vector.extract_strided_slice %802 {offsets = [0, 0], sizes = [2, 32], strides = [1, 1]} : vector<2x96xf32> to vector<2x32xf32>
    %805 = arith.addf %803, %804 : vector<2x32xf32>
    %806 = arith.negf %805 : vector<2x32xf32>
    %807 = math.exp %806 : vector<2x32xf32>
    %cst_404 = arith.constant 1.000000e+00 : f32
    %808 = vector.broadcast %cst_404 : f32 to vector<2x32xf32>
    %809 = arith.addf %808, %807 : vector<2x32xf32>
    %810 = arith.divf %808, %809 : vector<2x32xf32>
    %811 = vector.extract_strided_slice %792 {offsets = [0, 32], sizes = [2, 32], strides = [1, 1]} : vector<2x96xf32> to vector<2x32xf32>
    %812 = vector.extract_strided_slice %802 {offsets = [0, 32], sizes = [2, 32], strides = [1, 1]} : vector<2x96xf32> to vector<2x32xf32>
    %813 = arith.addf %811, %812 : vector<2x32xf32>
    %814 = arith.negf %813 : vector<2x32xf32>
    %815 = math.exp %814 : vector<2x32xf32>
    %cst_405 = arith.constant 1.000000e+00 : f32
    %816 = vector.broadcast %cst_405 : f32 to vector<2x32xf32>
    %817 = arith.addf %816, %815 : vector<2x32xf32>
    %818 = arith.divf %816, %817 : vector<2x32xf32>
    %819 = vector.extract_strided_slice %792 {offsets = [0, 64], sizes = [2, 32], strides = [1, 1]} : vector<2x96xf32> to vector<2x32xf32>
    %820 = vector.extract_strided_slice %802 {offsets = [0, 64], sizes = [2, 32], strides = [1, 1]} : vector<2x96xf32> to vector<2x32xf32>
    %821 = arith.mulf %810, %820 : vector<2x32xf32>
    %822 = arith.addf %819, %821 : vector<2x32xf32>
    %823 = math.tanh %822 : vector<2x32xf32>
    %cst_406 = arith.constant 1.000000e+00 : f32
    %824 = vector.broadcast %cst_406 : f32 to vector<2x32xf32>
    %825 = arith.subf %824, %818 : vector<2x32xf32>
    %826 = arith.mulf %825, %823 : vector<2x32xf32>
    %827 = arith.mulf %818, %794 : vector<2x32xf32>
    %828 = arith.addf %826, %827 : vector<2x32xf32>
    %c1_407 = arith.constant 1 : index
    %c0_408 = arith.constant 0 : index
    %c0_409 = arith.constant 0 : index
    %829 = vector.load %arg11[%c1_407, %c0_408, %c0_409] : memref<2x2x32xf32, #tpu.memory_space<vmem>>, vector<1x2x32xf32>
    %830 = vector.shape_cast %829 : vector<1x2x32xf32> to vector<2x32xf32>
    %831 = vector.shape_cast %828 : vector<2x32xf32> to vector<1x2x32xf32>
    tpu.vector_store %arg11[%c1_407, %c0_408, %c0_409], %831 {strides = array<i32>} : memref<2x2x32xf32, #tpu.memory_space<vmem>>, vector<1x2x32xf32>,
    %c0_410 = arith.constant 0 : index
    %c0_411 = arith.constant 0 : index
    %832 = vector.load %arg8[%c0_410, %c0_411] : memref<1x32xf32, #tpu.memory_space<vmem>>, vector<1x32xf32>
    %833 = vector.broadcast %832 : vector<1x32xf32> to vector<2x32xf32>
    %834 = arith.mulf %828, %833 : vector<2x32xf32>
    %cst_412 = arith.constant dense<0.000000e+00> : vector<2xf32>
    %835 = vector.multi_reduction <add>, %834, %cst_412 [1] : vector<2x32xf32> to vector<2xf32>
    %836 = vector.shape_cast %835 : vector<2xf32> to vector<2x1xf32>
    %c0_413 = arith.constant 0 : index
    %c0_414 = arith.constant 0 : index
    %837 = vector.load %arg9[%c0_413, %c0_414] : memref<1x1xf32, #tpu.memory_space<vmem>>, vector<1x1xf32>
    %838 = vector.broadcast %837 : vector<1x1xf32> to vector<2x1xf32>
    %839 = arith.addf %836, %838 : vector<2x1xf32>
    %840 = vector.broadcast %743 : i32 to vector<2x1xi32>
    %841 = arith.cmpi slt, %840, %3 : vector<2x1xi32>
    %c0_415 = arith.constant 0 : index
    %c0_416 = arith.constant 0 : index
    %842 = vector.load %arg12[%c0_415, %c0_416] : memref<2x1xf32, #tpu.memory_space<vmem>>, vector<2x1xf32>
    %843 = arith.maximumf %842, %839 : vector<2x1xf32>
    %844 = arith.select %841, %843, %842 : vector<2x1xi1>, vector<2x1xf32>
    %845 = arith.subf %842, %844 : vector<2x1xf32>
    %846 = math.exp %845 : vector<2x1xf32>
    %cst_417 = arith.constant 1.000000e+00 : f32
    %847 = vector.broadcast %cst_417 : f32 to vector<2x1xf32>
    %848 = arith.select %841, %846, %847 : vector<2x1xi1>, vector<2x1xf32>
    %849 = arith.subf %839, %844 : vector<2x1xf32>
    %850 = math.exp %849 : vector<2x1xf32>
    %cst_418 = arith.constant 0.000000e+00 : f32
    %851 = vector.broadcast %cst_418 : f32 to vector<2x1xf32>
    %852 = arith.select %841, %850, %851 : vector<2x1xi1>, vector<2x1xf32>
    %c0_419 = arith.constant 0 : index
    %c0_420 = arith.constant 0 : index
    %853 = vector.load %arg13[%c0_419, %c0_420] : memref<2x1xf32, #tpu.memory_space<vmem>>, vector<2x1xf32>
    %854 = arith.mulf %848, %853 : vector<2x1xf32>
    %855 = arith.addf %854, %852 : vector<2x1xf32>
    %c0_421 = arith.constant 0 : index
    %c0_422 = arith.constant 0 : index
    %856 = vector.load %arg13[%c0_421, %c0_422] : memref<2x1xf32, #tpu.memory_space<vmem>>, vector<2x1xf32>
    tpu.vector_store %arg13[%c0_421, %c0_422], %855 {strides = array<i32>} : memref<2x1xf32, #tpu.memory_space<vmem>>, vector<2x1xf32>,
    %c0_423 = arith.constant 0 : index
    %c0_424 = arith.constant 0 : index
    %857 = vector.load %arg14[%c0_423, %c0_424] : memref<2x32xf32, #tpu.memory_space<vmem>>, vector<2x32xf32>
    %858 = vector.broadcast %848 : vector<2x1xf32> to vector<2x32xf32>
    %859 = arith.mulf %858, %857 : vector<2x32xf32>
    %860 = vector.broadcast %852 : vector<2x1xf32> to vector<2x32xf32>
    %861 = arith.mulf %860, %828 : vector<2x32xf32>
    %862 = arith.addf %859, %861 : vector<2x32xf32>
    %c0_425 = arith.constant 0 : index
    %c0_426 = arith.constant 0 : index
    %863 = vector.load %arg14[%c0_425, %c0_426] : memref<2x32xf32, #tpu.memory_space<vmem>>, vector<2x32xf32>
    tpu.vector_store %arg14[%c0_425, %c0_426], %862 {strides = array<i32>} : memref<2x32xf32, #tpu.memory_space<vmem>>, vector<2x32xf32>,
    %c0_427 = arith.constant 0 : index
    %c0_428 = arith.constant 0 : index
    %864 = vector.load %arg12[%c0_427, %c0_428] : memref<2x1xf32, #tpu.memory_space<vmem>>, vector<2x1xf32>
    tpu.vector_store %arg12[%c0_427, %c0_428], %844 {strides = array<i32>} : memref<2x1xf32, #tpu.memory_space<vmem>>, vector<2x1xf32>,
    %c8_i32_429 = arith.constant 8 : i32
    %865 = arith.muli %arg1, %c8_i32_429 : i32
    %c7_i32 = arith.constant 7 : i32
    %866 = arith.addi %865, %c7_i32 : i32
    %c7 = arith.constant 7 : index
    %c0_430 = arith.constant 0 : index
    %c0_431 = arith.constant 0 : index
    %867 = vector.load %arg2[%c7, %c0_430, %c0_431] : memref<8x2x96xf32, #tpu.memory_space<vmem>>, vector<1x2x96xf32>
    %868 = vector.shape_cast %867 : vector<1x2x96xf32> to vector<2x96xf32>
    %c0_432 = arith.constant 0 : index
    %c0_433 = arith.constant 0 : index
    %c0_434 = arith.constant 0 : index
    %869 = vector.load %arg11[%c0_432, %c0_433, %c0_434] : memref<2x2x32xf32, #tpu.memory_space<vmem>>, vector<1x2x32xf32>
    %870 = vector.shape_cast %869 : vector<1x2x32xf32> to vector<2x32xf32>
    %871 = arith.truncf %870 : vector<2x32xf32> to vector<2x32xbf16>
    %c0_435 = arith.constant 0 : index
    %c0_436 = arith.constant 0 : index
    %c0_437 = arith.constant 0 : index
    %872 = vector.load %arg5[%c0_435, %c0_436, %c0_437] : memref<2x32x96xbf16, #tpu.memory_space<vmem>>, vector<1x32x96xbf16>
    %873 = vector.shape_cast %872 : vector<1x32x96xbf16> to vector<32x96xbf16>
    %cst_438 = arith.constant dense<0.000000e+00> : vector<2x96xf32>
    %874 = tpu.matmul %871, %873, %cst_438 {dimension_numbers = #tpu.dot_dimension_numbers<[1], [0], [0], [1], [0, 0, 1, 1], [], []>} : vector<2x32xbf16>, vector<32x96xbf16>, vector<2x96xf32> -> vector<2x96xf32>
    %c0_439 = arith.constant 0 : index
    %c0_440 = arith.constant 0 : index
    %c0_441 = arith.constant 0 : index
    %875 = vector.load %arg7[%c0_439, %c0_440, %c0_441] : memref<2x1x96xf32, #tpu.memory_space<vmem>>, vector<1x1x96xf32>
    %876 = vector.shape_cast %875 : vector<1x1x96xf32> to vector<1x96xf32>
    %877 = vector.broadcast %876 : vector<1x96xf32> to vector<2x96xf32>
    %878 = arith.addf %874, %877 : vector<2x96xf32>
    %879 = vector.extract_strided_slice %868 {offsets = [0, 0], sizes = [2, 32], strides = [1, 1]} : vector<2x96xf32> to vector<2x32xf32>
    %880 = vector.extract_strided_slice %878 {offsets = [0, 0], sizes = [2, 32], strides = [1, 1]} : vector<2x96xf32> to vector<2x32xf32>
    %881 = arith.addf %879, %880 : vector<2x32xf32>
    %882 = arith.negf %881 : vector<2x32xf32>
    %883 = math.exp %882 : vector<2x32xf32>
    %cst_442 = arith.constant 1.000000e+00 : f32
    %884 = vector.broadcast %cst_442 : f32 to vector<2x32xf32>
    %885 = arith.addf %884, %883 : vector<2x32xf32>
    %886 = arith.divf %884, %885 : vector<2x32xf32>
    %887 = vector.extract_strided_slice %868 {offsets = [0, 32], sizes = [2, 32], strides = [1, 1]} : vector<2x96xf32> to vector<2x32xf32>
    %888 = vector.extract_strided_slice %878 {offsets = [0, 32], sizes = [2, 32], strides = [1, 1]} : vector<2x96xf32> to vector<2x32xf32>
    %889 = arith.addf %887, %888 : vector<2x32xf32>
    %890 = arith.negf %889 : vector<2x32xf32>
    %891 = math.exp %890 : vector<2x32xf32>
    %cst_443 = arith.constant 1.000000e+00 : f32
    %892 = vector.broadcast %cst_443 : f32 to vector<2x32xf32>
    %893 = arith.addf %892, %891 : vector<2x32xf32>
    %894 = arith.divf %892, %893 : vector<2x32xf32>
    %895 = vector.extract_strided_slice %868 {offsets = [0, 64], sizes = [2, 32], strides = [1, 1]} : vector<2x96xf32> to vector<2x32xf32>
    %896 = vector.extract_strided_slice %878 {offsets = [0, 64], sizes = [2, 32], strides = [1, 1]} : vector<2x96xf32> to vector<2x32xf32>
    %897 = arith.mulf %886, %896 : vector<2x32xf32>
    %898 = arith.addf %895, %897 : vector<2x32xf32>
    %899 = math.tanh %898 : vector<2x32xf32>
    %cst_444 = arith.constant 1.000000e+00 : f32
    %900 = vector.broadcast %cst_444 : f32 to vector<2x32xf32>
    %901 = arith.subf %900, %894 : vector<2x32xf32>
    %902 = arith.mulf %901, %899 : vector<2x32xf32>
    %903 = arith.mulf %894, %870 : vector<2x32xf32>
    %904 = arith.addf %902, %903 : vector<2x32xf32>
    %c0_445 = arith.constant 0 : index
    %c0_446 = arith.constant 0 : index
    %c0_447 = arith.constant 0 : index
    %905 = vector.load %arg11[%c0_445, %c0_446, %c0_447] : memref<2x2x32xf32, #tpu.memory_space<vmem>>, vector<1x2x32xf32>
    %906 = vector.shape_cast %905 : vector<1x2x32xf32> to vector<2x32xf32>
    %907 = vector.shape_cast %904 : vector<2x32xf32> to vector<1x2x32xf32>
    tpu.vector_store %arg11[%c0_445, %c0_446, %c0_447], %907 {strides = array<i32>} : memref<2x2x32xf32, #tpu.memory_space<vmem>>, vector<1x2x32xf32>,
    %908 = arith.truncf %904 : vector<2x32xf32> to vector<2x32xbf16>
    %c1_448 = arith.constant 1 : index
    %c0_449 = arith.constant 0 : index
    %c0_450 = arith.constant 0 : index
    %909 = vector.load %arg4[%c1_448, %c0_449, %c0_450] : memref<2x32x96xbf16, #tpu.memory_space<vmem>>, vector<1x32x96xbf16>
    %910 = vector.shape_cast %909 : vector<1x32x96xbf16> to vector<32x96xbf16>
    %cst_451 = arith.constant dense<0.000000e+00> : vector<2x96xf32>
    %911 = tpu.matmul %908, %910, %cst_451 {dimension_numbers = #tpu.dot_dimension_numbers<[1], [0], [0], [1], [0, 0, 1, 1], [], []>} : vector<2x32xbf16>, vector<32x96xbf16>, vector<2x96xf32> -> vector<2x96xf32>
    %c1_452 = arith.constant 1 : index
    %c0_453 = arith.constant 0 : index
    %c0_454 = arith.constant 0 : index
    %912 = vector.load %arg6[%c1_452, %c0_453, %c0_454] : memref<2x1x96xf32, #tpu.memory_space<vmem>>, vector<1x1x96xf32>
    %913 = vector.shape_cast %912 : vector<1x1x96xf32> to vector<1x96xf32>
    %914 = vector.broadcast %913 : vector<1x96xf32> to vector<2x96xf32>
    %915 = arith.addf %911, %914 : vector<2x96xf32>
    %c1_455 = arith.constant 1 : index
    %c0_456 = arith.constant 0 : index
    %c0_457 = arith.constant 0 : index
    %916 = vector.load %arg11[%c1_455, %c0_456, %c0_457] : memref<2x2x32xf32, #tpu.memory_space<vmem>>, vector<1x2x32xf32>
    %917 = vector.shape_cast %916 : vector<1x2x32xf32> to vector<2x32xf32>
    %918 = arith.truncf %917 : vector<2x32xf32> to vector<2x32xbf16>
    %c1_458 = arith.constant 1 : index
    %c0_459 = arith.constant 0 : index
    %c0_460 = arith.constant 0 : index
    %919 = vector.load %arg5[%c1_458, %c0_459, %c0_460] : memref<2x32x96xbf16, #tpu.memory_space<vmem>>, vector<1x32x96xbf16>
    %920 = vector.shape_cast %919 : vector<1x32x96xbf16> to vector<32x96xbf16>
    %cst_461 = arith.constant dense<0.000000e+00> : vector<2x96xf32>
    %921 = tpu.matmul %918, %920, %cst_461 {dimension_numbers = #tpu.dot_dimension_numbers<[1], [0], [0], [1], [0, 0, 1, 1], [], []>} : vector<2x32xbf16>, vector<32x96xbf16>, vector<2x96xf32> -> vector<2x96xf32>
    %c1_462 = arith.constant 1 : index
    %c0_463 = arith.constant 0 : index
    %c0_464 = arith.constant 0 : index
    %922 = vector.load %arg7[%c1_462, %c0_463, %c0_464] : memref<2x1x96xf32, #tpu.memory_space<vmem>>, vector<1x1x96xf32>
    %923 = vector.shape_cast %922 : vector<1x1x96xf32> to vector<1x96xf32>
    %924 = vector.broadcast %923 : vector<1x96xf32> to vector<2x96xf32>
    %925 = arith.addf %921, %924 : vector<2x96xf32>
    %926 = vector.extract_strided_slice %915 {offsets = [0, 0], sizes = [2, 32], strides = [1, 1]} : vector<2x96xf32> to vector<2x32xf32>
    %927 = vector.extract_strided_slice %925 {offsets = [0, 0], sizes = [2, 32], strides = [1, 1]} : vector<2x96xf32> to vector<2x32xf32>
    %928 = arith.addf %926, %927 : vector<2x32xf32>
    %929 = arith.negf %928 : vector<2x32xf32>
    %930 = math.exp %929 : vector<2x32xf32>
    %cst_465 = arith.constant 1.000000e+00 : f32
    %931 = vector.broadcast %cst_465 : f32 to vector<2x32xf32>
    %932 = arith.addf %931, %930 : vector<2x32xf32>
    %933 = arith.divf %931, %932 : vector<2x32xf32>
    %934 = vector.extract_strided_slice %915 {offsets = [0, 32], sizes = [2, 32], strides = [1, 1]} : vector<2x96xf32> to vector<2x32xf32>
    %935 = vector.extract_strided_slice %925 {offsets = [0, 32], sizes = [2, 32], strides = [1, 1]} : vector<2x96xf32> to vector<2x32xf32>
    %936 = arith.addf %934, %935 : vector<2x32xf32>
    %937 = arith.negf %936 : vector<2x32xf32>
    %938 = math.exp %937 : vector<2x32xf32>
    %cst_466 = arith.constant 1.000000e+00 : f32
    %939 = vector.broadcast %cst_466 : f32 to vector<2x32xf32>
    %940 = arith.addf %939, %938 : vector<2x32xf32>
    %941 = arith.divf %939, %940 : vector<2x32xf32>
    %942 = vector.extract_strided_slice %915 {offsets = [0, 64], sizes = [2, 32], strides = [1, 1]} : vector<2x96xf32> to vector<2x32xf32>
    %943 = vector.extract_strided_slice %925 {offsets = [0, 64], sizes = [2, 32], strides = [1, 1]} : vector<2x96xf32> to vector<2x32xf32>
    %944 = arith.mulf %933, %943 : vector<2x32xf32>
    %945 = arith.addf %942, %944 : vector<2x32xf32>
    %946 = math.tanh %945 : vector<2x32xf32>
    %cst_467 = arith.constant 1.000000e+00 : f32
    %947 = vector.broadcast %cst_467 : f32 to vector<2x32xf32>
    %948 = arith.subf %947, %941 : vector<2x32xf32>
    %949 = arith.mulf %948, %946 : vector<2x32xf32>
    %950 = arith.mulf %941, %917 : vector<2x32xf32>
    %951 = arith.addf %949, %950 : vector<2x32xf32>
    %c1_468 = arith.constant 1 : index
    %c0_469 = arith.constant 0 : index
    %c0_470 = arith.constant 0 : index
    %952 = vector.load %arg11[%c1_468, %c0_469, %c0_470] : memref<2x2x32xf32, #tpu.memory_space<vmem>>, vector<1x2x32xf32>
    %953 = vector.shape_cast %952 : vector<1x2x32xf32> to vector<2x32xf32>
    %954 = vector.shape_cast %951 : vector<2x32xf32> to vector<1x2x32xf32>
    tpu.vector_store %arg11[%c1_468, %c0_469, %c0_470], %954 {strides = array<i32>} : memref<2x2x32xf32, #tpu.memory_space<vmem>>, vector<1x2x32xf32>,
    %c0_471 = arith.constant 0 : index
    %c0_472 = arith.constant 0 : index
    %955 = vector.load %arg8[%c0_471, %c0_472] : memref<1x32xf32, #tpu.memory_space<vmem>>, vector<1x32xf32>
    %956 = vector.broadcast %955 : vector<1x32xf32> to vector<2x32xf32>
    %957 = arith.mulf %951, %956 : vector<2x32xf32>
    %cst_473 = arith.constant dense<0.000000e+00> : vector<2xf32>
    %958 = vector.multi_reduction <add>, %957, %cst_473 [1] : vector<2x32xf32> to vector<2xf32>
    %959 = vector.shape_cast %958 : vector<2xf32> to vector<2x1xf32>
    %c0_474 = arith.constant 0 : index
    %c0_475 = arith.constant 0 : index
    %960 = vector.load %arg9[%c0_474, %c0_475] : memref<1x1xf32, #tpu.memory_space<vmem>>, vector<1x1xf32>
    %961 = vector.broadcast %960 : vector<1x1xf32> to vector<2x1xf32>
    %962 = arith.addf %959, %961 : vector<2x1xf32>
    %963 = vector.broadcast %866 : i32 to vector<2x1xi32>
    %964 = arith.cmpi slt, %963, %3 : vector<2x1xi32>
    %c0_476 = arith.constant 0 : index
    %c0_477 = arith.constant 0 : index
    %965 = vector.load %arg12[%c0_476, %c0_477] : memref<2x1xf32, #tpu.memory_space<vmem>>, vector<2x1xf32>
    %966 = arith.maximumf %965, %962 : vector<2x1xf32>
    %967 = arith.select %964, %966, %965 : vector<2x1xi1>, vector<2x1xf32>
    %968 = arith.subf %965, %967 : vector<2x1xf32>
    %969 = math.exp %968 : vector<2x1xf32>
    %cst_478 = arith.constant 1.000000e+00 : f32
    %970 = vector.broadcast %cst_478 : f32 to vector<2x1xf32>
    %971 = arith.select %964, %969, %970 : vector<2x1xi1>, vector<2x1xf32>
    %972 = arith.subf %962, %967 : vector<2x1xf32>
    %973 = math.exp %972 : vector<2x1xf32>
    %cst_479 = arith.constant 0.000000e+00 : f32
    %974 = vector.broadcast %cst_479 : f32 to vector<2x1xf32>
    %975 = arith.select %964, %973, %974 : vector<2x1xi1>, vector<2x1xf32>
    %c0_480 = arith.constant 0 : index
    %c0_481 = arith.constant 0 : index
    %976 = vector.load %arg13[%c0_480, %c0_481] : memref<2x1xf32, #tpu.memory_space<vmem>>, vector<2x1xf32>
    %977 = arith.mulf %971, %976 : vector<2x1xf32>
    %978 = arith.addf %977, %975 : vector<2x1xf32>
    %c0_482 = arith.constant 0 : index
    %c0_483 = arith.constant 0 : index
    %979 = vector.load %arg13[%c0_482, %c0_483] : memref<2x1xf32, #tpu.memory_space<vmem>>, vector<2x1xf32>
    tpu.vector_store %arg13[%c0_482, %c0_483], %978 {strides = array<i32>} : memref<2x1xf32, #tpu.memory_space<vmem>>, vector<2x1xf32>,
    %c0_484 = arith.constant 0 : index
    %c0_485 = arith.constant 0 : index
    %980 = vector.load %arg14[%c0_484, %c0_485] : memref<2x32xf32, #tpu.memory_space<vmem>>, vector<2x32xf32>
    %981 = vector.broadcast %971 : vector<2x1xf32> to vector<2x32xf32>
    %982 = arith.mulf %981, %980 : vector<2x32xf32>
    %983 = vector.broadcast %975 : vector<2x1xf32> to vector<2x32xf32>
    %984 = arith.mulf %983, %951 : vector<2x32xf32>
    %985 = arith.addf %982, %984 : vector<2x32xf32>
    %c0_486 = arith.constant 0 : index
    %c0_487 = arith.constant 0 : index
    %986 = vector.load %arg14[%c0_486, %c0_487] : memref<2x32xf32, #tpu.memory_space<vmem>>, vector<2x32xf32>
    tpu.vector_store %arg14[%c0_486, %c0_487], %985 {strides = array<i32>} : memref<2x32xf32, #tpu.memory_space<vmem>>, vector<2x32xf32>,
    %c0_488 = arith.constant 0 : index
    %c0_489 = arith.constant 0 : index
    %987 = vector.load %arg12[%c0_488, %c0_489] : memref<2x1xf32, #tpu.memory_space<vmem>>, vector<2x1xf32>
    tpu.vector_store %arg12[%c0_488, %c0_489], %967 {strides = array<i32>} : memref<2x1xf32, #tpu.memory_space<vmem>>, vector<2x1xf32>,
    %c0_i32_490 = arith.constant 0 : i32
    %988 = arith.cmpi eq, %arg1, %c0_i32_490 : i32
    %989 = arith.extui %988 : i1 to i32
    %c0_i32_491 = arith.constant 0 : i32
    %990 = arith.cmpi ne, %989, %c0_i32_491 : i32
    scf.if %990 {
      %c0_492 = arith.constant 0 : index
      %c0_493 = arith.constant 0 : index
      %991 = vector.load %arg14[%c0_492, %c0_493] : memref<2x32xf32, #tpu.memory_space<vmem>>, vector<2x32xf32>
      %c0_494 = arith.constant 0 : index
      %c0_495 = arith.constant 0 : index
      %992 = vector.load %arg13[%c0_494, %c0_495] : memref<2x1xf32, #tpu.memory_space<vmem>>, vector<2x1xf32>
      %993 = vector.broadcast %992 : vector<2x1xf32> to vector<2x32xf32>
      %994 = arith.divf %991, %993 : vector<2x32xf32>
      %c0_496 = arith.constant 0 : index
      %c0_497 = arith.constant 0 : index
      %995 = vector.load %arg10[%c0_496, %c0_497] : memref<2x32xf32, #tpu.memory_space<vmem>>, vector<2x32xf32>
      tpu.vector_store %arg10[%c0_496, %c0_497], %994 {strides = array<i32>} : memref<2x32xf32, #tpu.memory_space<vmem>>, vector<2x32xf32>,
    } else {
    }
    return
  }
  func.func @transform_0(%arg0: i32, %arg1: i32) -> (i32, i32, i32) {
    %c0_i32 = arith.constant 0 : i32
    %c0_i32_0 = arith.constant 0 : i32
    return %arg1, %arg0, %c0_i32 : i32, i32, i32
  }
  func.func @transform_1(%arg0: i32, %arg1: i32) -> (i32, i32) {
    %c0_i32 = arith.constant 0 : i32
    %c0_i32_0 = arith.constant 0 : i32
    return %arg0, %c0_i32 : i32, i32
  }
  func.func @transform_2(%arg0: i32, %arg1: i32) -> (i32, i32, i32) {
    %c0_i32 = arith.constant 0 : i32
    %c0_i32_0 = arith.constant 0 : i32
    %c0_i32_1 = arith.constant 0 : i32
    %c0_i32_2 = arith.constant 0 : i32
    return %c0_i32, %c0_i32_0, %c0_i32_1 : i32, i32, i32
  }
  func.func @transform_3(%arg0: i32, %arg1: i32) -> (i32, i32, i32) {
    %c0_i32 = arith.constant 0 : i32
    %c0_i32_0 = arith.constant 0 : i32
    %c0_i32_1 = arith.constant 0 : i32
    %c0_i32_2 = arith.constant 0 : i32
    return %c0_i32, %c0_i32_0, %c0_i32_1 : i32, i32, i32
  }
  func.func @transform_4(%arg0: i32, %arg1: i32) -> (i32, i32, i32) {
    %c0_i32 = arith.constant 0 : i32
    %c0_i32_0 = arith.constant 0 : i32
    %c0_i32_1 = arith.constant 0 : i32
    %c0_i32_2 = arith.constant 0 : i32
    return %c0_i32, %c0_i32_0, %c0_i32_1 : i32, i32, i32
  }
  func.func @transform_5(%arg0: i32, %arg1: i32) -> (i32, i32, i32) {
    %c0_i32 = arith.constant 0 : i32
    %c0_i32_0 = arith.constant 0 : i32
    %c0_i32_1 = arith.constant 0 : i32
    %c0_i32_2 = arith.constant 0 : i32
    return %c0_i32, %c0_i32_0, %c0_i32_1 : i32, i32, i32
  }
  func.func @transform_6(%arg0: i32, %arg1: i32) -> (i32, i32) {
    %c0_i32 = arith.constant 0 : i32
    %c0_i32_0 = arith.constant 0 : i32
    %c0_i32_1 = arith.constant 0 : i32
    return %c0_i32, %c0_i32_0 : i32, i32
  }
  func.func @transform_7(%arg0: i32, %arg1: i32) -> (i32, i32) {
    %c0_i32 = arith.constant 0 : i32
    %c0_i32_0 = arith.constant 0 : i32
    %c0_i32_1 = arith.constant 0 : i32
    return %c0_i32, %c0_i32_0 : i32, i32
  }
  func.func @transform_8(%arg0: i32, %arg1: i32) -> (i32, i32) {
    %c0_i32 = arith.constant 0 : i32
    %c0_i32_0 = arith.constant 0 : i32
    return %arg0, %c0_i32 : i32, i32
  }
}

</mosaic_0001>

<llo_original>
// kernel: gru_self_forward.2
$region0: #{gru_self_forward.2}
  #allocation0 [shape = 'u32[]', space=smem, size = 0x4, offset = 0x4, fixed_abs, tag = 'smem constant byte address 0x4 - core index']
  #allocation1 [shape = 'u32[144,128]{1,0:T(1,128)}', space=vmem, size = 0x12000, scoped, tag = 'internal scratch']
  %s0 = inlined_call_operand.vmem [shape: f32[16,16], index: 0, kind: input, shape index: {}]
  %s1 = inlined_call_operand.vmem [shape: bf16[16,32], index: 1, kind: input, shape index: {}]
  %s2 = inlined_call_operand.vmem [shape: f32[1,32], index: 2, kind: input, shape index: {}]
  %s3 = inlined_call_operand.vmem [shape: f32[1,32], index: 3, kind: input, shape index: {}]
  %s4 = inlined_call_operand.vmem [shape: f32[1,32], index: 4, kind: input, shape index: {}]
  %s5 = inlined_call_operand.vmem [shape: bf16[32,32], index: 5, kind: input, shape index: {}]
  %s6 = inlined_call_operand.vmem [shape: f32[1,32], index: 6, kind: input, shape index: {}]
  %s7 = inlined_call_operand.vmem [shape: f32[1,32], index: 7, kind: input, shape index: {}]
  %s8 = inlined_call_operand.vmem [shape: f32[1,32], index: 8, kind: input, shape index: {}]
  %s9 = inlined_call_operand.vmem [shape: bf16[32,96], index: 9, kind: input, shape index: {}]
  %s10 = inlined_call_operand.vmem [shape: f32[1,96], index: 10, kind: input, shape index: {}]
  %s11 = inlined_call_operand.vmem [shape: f32[16,96], index: 11, kind: output, shape index: {}]
  %s12 = sld [smem:[#allocation0]]
  $region54: #{gru_self_forward.2} parent=0
    _
  %s14 = ssub.s32 1, %s12
  %s15 = scalar_select 0, %s14, %s12
  // Predicated region
  $region2: #{gru_self_forward.2} parent=0 // pred_check
    _
  $region3: #{gru_self_forward.2} parent=0 // pred_check_branch
    %17 = sbr.rel (0) target = $region5
  $region4: #{gru_self_forward.2} parent=0 // pred_region
    _
  $region5: #{gru_self_forward.2} parent=0 // pred_fallthru
    _
  // Predicated region
  $region6: #{gru_self_forward.2} parent=0 // pred_check
    _
  $region7: #{gru_self_forward.2} parent=0 // pred_check_branch
    %19 = sbr.rel (0) target = $region9
  $region8: #{gru_self_forward.2} parent=0 // pred_region
    _
  $region9: #{gru_self_forward.2} parent=0 // pred_fallthru
    _
  // Predicated region
  $region10: #{gru_self_forward.2} parent=0 // pred_check
    _
  $region11: #{gru_self_forward.2} parent=0 // pred_check_branch
    %21 = sbr.rel (0) target = $region13
  $region12: #{gru_self_forward.2} parent=0 // pred_region
    _
  $region13: #{gru_self_forward.2} parent=0 // pred_fallthru
    _
  // Predicated region
  $region14: #{gru_self_forward.2} parent=0 // pred_check
    _
  $region15: #{gru_self_forward.2} parent=0 // pred_check_branch
    %23 = sbr.rel (0) target = $region17
  $region16: #{gru_self_forward.2} parent=0 // pred_region
    _
  $region17: #{gru_self_forward.2} parent=0 // pred_fallthru
    _
  // Predicated region
  $region18: #{gru_self_forward.2} parent=0 // pred_check
    _
  $region19: #{gru_self_forward.2} parent=0 // pred_check_branch
    %25 = sbr.rel (0) target = $region21
  $region20: #{gru_self_forward.2} parent=0 // pred_region
    _
  $region21: #{gru_self_forward.2} parent=0 // pred_fallthru
    _
  // Predicated region
  $region22: #{gru_self_forward.2} parent=0 // pred_check
    _
  $region23: #{gru_self_forward.2} parent=0 // pred_check_branch
    %27 = sbr.rel (0) target = $region25
  $region24: #{gru_self_forward.2} parent=0 // pred_region
    _
  $region25: #{gru_self_forward.2} parent=0 // pred_fallthru
    _
  // Predicated region
  $region26: #{gru_self_forward.2} parent=0 // pred_check
    _
  $region27: #{gru_self_forward.2} parent=0 // pred_check_branch
    %29 = sbr.rel (0) target = $region29
  $region28: #{gru_self_forward.2} parent=0 // pred_region
    _
  $region29: #{gru_self_forward.2} parent=0 // pred_fallthru
    _
  // Predicated region
  $region30: #{gru_self_forward.2} parent=0 // pred_check
    _
  $region31: #{gru_self_forward.2} parent=0 // pred_check_branch
    %31 = sbr.rel (0) target = $region33
  $region32: #{gru_self_forward.2} parent=0 // pred_region
    _
  $region33: #{gru_self_forward.2} parent=0 // pred_fallthru
    _
  // Predicated region
  $region34: #{gru_self_forward.2} parent=0 // pred_check
    _
  $region35: #{gru_self_forward.2} parent=0 // pred_check_branch
    %33 = sbr.rel (0) target = $region37
  $region36: #{gru_self_forward.2} parent=0 // pred_region
    _
  $region37: #{gru_self_forward.2} parent=0 // pred_fallthru
    _
  // Predicated region
  $region38: #{gru_self_forward.2} parent=0 // pred_check
    _
  $region39: #{gru_self_forward.2} parent=0 // pred_check_branch
    %35 = sbr.rel (0) target = $region41
  $region40: #{gru_self_forward.2} parent=0 // pred_region
    _
  $region41: #{gru_self_forward.2} parent=0 // pred_fallthru
    _
  // Predicated region
  $region42: #{gru_self_forward.2} parent=0 // pred_check
    _
  $region43: #{gru_self_forward.2} parent=0 // pred_check_branch
    %37 = sbr.rel (0) target = $region45
  $region44: #{gru_self_forward.2} parent=0 // pred_region
    _
  $region45: #{gru_self_forward.2} parent=0 // pred_fallthru
    _
  %v39 = vld [vmem:[%s0] sm:$0xff]
  %v40 = vld [vmem:[%s0 + $0x8] sm:$0xff]
  %v41 = vpack.c.bf16 %v40, %v39
  %v42 = vld [vmem:[%s1] sm:$0xf]
  %v43 = vld [vmem:[%s1 + $0x4] sm:$0xf]
  %v44 = vld [vmem:[%s2] sm:$0x1]
  %v46 = vlaneseq
  %v47 = vshrl.u32 %v46, 7
  %v48 = vsub.s32 0, %v47
  %v49 = vrot.slane %v44, %v48
  %v53 = vunpack.c.l.b16 %v42
  %v54 = vunpack.c.l.b16 %v43
  %v55 = vpack.c.b16 %v54, %v53
  %vm57 = vcmask 130048
  %v59 = vsel %vm57, %v41, 0
  %61 = vmatprep.subr.bf16.mxu0 0
  %62 = vmatpush1.bf16.msra.mxu0 %v55
  %63 = vmatprep.subr.bf16.mxu0 0
  %64 = vmatpush1.bf16.msra.mxu0 0
  %65 = vmatprep.subr.bf16.mxu0 0
  %66 = vmatpush1.bf16.msra.mxu0 0
  %67 = vmatprep.subr.bf16.mxu0 0
  %68 = vmatpush1.bf16.msra.mxu0 0
  %69 = vmatprep.subr.bf16.mxu0 0
  %70 = vmatpush1.bf16.msra.mxu0 0
  %71 = vmatprep.subr.bf16.mxu0 0
  %72 = vmatpush1.bf16.msra.mxu0 0
  %73 = vmatprep.subr.bf16.mxu0 0
  %74 = vmatpush1.bf16.msra.mxu0 0
  %75 = vmatprep.subr.bf16.mxu0 0
  %76 = vmatpush1.bf16.msra.mxu0 0
  %77 = vmatprep.subr.bf16.mxu0 0
  %78 = vmatpush1.bf16.msra.mxu0 0
  %79 = vmatprep.subr.bf16.mxu0 0
  %80 = vmatpush1.bf16.msra.mxu0 0
  %81 = vmatprep.subr.bf16.mxu0 0
  %82 = vmatpush1.bf16.msra.mxu0 0
  %83 = vmatprep.subr.bf16.mxu0 0
  %84 = vmatpush1.bf16.msra.mxu0 0
  %85 = vmatprep.subr.bf16.mxu0 0
  %86 = vmatpush1.bf16.msra.mxu0 0
  %87 = vmatprep.subr.bf16.mxu0 0
  %88 = vmatpush1.bf16.msra.mxu0 0
  %89 = vmatprep.subr.bf16.mxu0 0
  %90 = vmatpush1.bf16.msra.mxu0 0
  %91 = vmatprep.subr.bf16.mxu0 0
  %92 = vmatpush1.bf16.msra.mxu0 0
  %93 = vmatprep.mubr.bf16.mxu0 0
  %94 = vmatmul.mubr.bf16.gmra.mrb[0].mxu0 %v59
  %v95 = vpop.f32.mrb[0].mxu0
  %v96 = vadd.f32 %v49, %v95
  %v97 = vpop.f32.mrb[0].mxu0
  %v98 = vpop.f32.mrb[0].mxu0
  %v99 = vadd.f32 %v49, %v98
  %v100 = vpop.f32.mrb[0].mxu0
  %101 = vdwg.mxu0
  %v102 = vld [vmem:[%s3] sm:$0x1]
  %v103 = vld [vmem:[%s4] sm:$0x1]
  %vm104 = vcmask 261120
  %v105 = vsel %vm104, %v96, 0.0
  %106 = vadd.xlane.f32.xlu0 %v105
  %v107 = vpop.xlane.xlu0 %106
  %v108 = vsel %vm104, %v99, 0.0
  %109 = vadd.xlane.f32.xlu0 %v108
  %v110 = vpop.xlane.xlu0 %109
  %v111 = vrcp.pop 32.0
  %v112 = vmul.f32 %v107, %v111
  %v113 = vmul.f32 %v110, %v111
  %v114 = vsub.f32 %v96, %v112
  %v115 = vsub.f32 %v99, %v113
  %v116 = vmul.f32 %v114, %v114
  %v117 = vmul.f32 %v115, %v115
  %v118 = vsel %vm104, %v116, 0.0
  %119 = vadd.xlane.f32.xlu0 %v118
  %v120 = vpop.xlane.xlu0 %119
  %v121 = vsel %vm104, %v117, 0.0
  %122 = vadd.xlane.f32.xlu0 %v121
  %v123 = vpop.xlane.xlu0 %122
  %v124 = vmul.f32 %v120, %v111
  %v125 = vmul.f32 %v123, %v111
  %v126 = vadd.f32 %v124, 1e-05
  %v127 = vadd.f32 %v125, 1e-05
  %v128 = vrsqrt.pop %v126
  %v129 = vrsqrt.pop %v127
  %v130 = vmul.f32 %v114, %v128
  %v131 = vmul.f32 %v115, %v129
  %v133 = vlaneseq
  %v134 = vshrl.u32 %v133, 7
  %v135 = vsub.s32 0, %v134
  %v136 = vrot.slane %v102, %v135
  %v138 = vmul.f32 %v130, %v136
  %v139 = vmul.f32 %v131, %v136
  %v141 = vlaneseq
  %v142 = vshrl.u32 %v141, 7
  %v143 = vsub.s32 0, %v142
  %v144 = vrot.slane %v103, %v143
  %v146 = vadd.f32 %v138, %v144
  %v147 = vadd.f32 %v139, %v144
  %v148 = vmax.f32 %v146, 0.0
  %v149 = vmax.f32 %v147, 0.0
  %v150 = vpack.c.bf16 %v149, %v148
  %v151 = vld [vmem:[%s5] sm:$0xf]
  %v152 = vld [vmem:[%s5 + $0x4] sm:$0xf]
  %v153 = vld [vmem:[%s5 + $0x8] sm:$0xf]
  %v154 = vld [vmem:[%s5 + $0xc] sm:$0xf]
  %v155 = vld [vmem:[%s6] sm:$0x1]
  %v157 = vlaneseq
  %v158 = vshrl.u32 %v157, 7
  %v159 = vsub.s32 0, %v158
  %v160 = vrot.slane %v155, %v159
  %v166 = vunpack.c.l.b16 %v151
  %v167 = vunpack.c.l.b16 %v152
  %v168 = vunpack.c.l.b16 %v153
  %v169 = vunpack.c.l.b16 %v154
  %v170 = vpack.c.b16 %v167, %v166
  %v171 = vpack.c.b16 %v169, %v168
  %v175 = vsel %vm104, %v150, 0
  %177 = vmatprep.subr.bf16.mxu0 0
  %178 = vmatpush1.bf16.msra.mxu0 %v170
  %179 = vmatprep.subr.bf16.mxu0 0
  %180 = vmatpush1.bf16.msra.mxu0 %v171
  %181 = vmatprep.subr.bf16.mxu0 0
  %182 = vmatpush1.bf16.msra.mxu0 0
  %183 = vmatprep.subr.bf16.mxu0 0
  %184 = vmatpush1.bf16.msra.mxu0 0
  %185 = vmatprep.subr.bf16.mxu0 0
  %186 = vmatpush1.bf16.msra.mxu0 0
  %187 = vmatprep.subr.bf16.mxu0 0
  %188 = vmatpush1.bf16.msra.mxu0 0
  %189 = vmatprep.subr.bf16.mxu0 0
  %190 = vmatpush1.bf16.msra.mxu0 0
  %191 = vmatprep.subr.bf16.mxu0 0
  %192 = vmatpush1.bf16.msra.mxu0 0
  %193 = vmatprep.subr.bf16.mxu0 0
  %194 = vmatpush1.bf16.msra.mxu0 0
  %195 = vmatprep.subr.bf16.mxu0 0
  %196 = vmatpush1.bf16.msra.mxu0 0
  %197 = vmatprep.subr.bf16.mxu0 0
  %198 = vmatpush1.bf16.msra.mxu0 0
  %199 = vmatprep.subr.bf16.mxu0 0
  %200 = vmatpush1.bf16.msra.mxu0 0
  %201 = vmatprep.subr.bf16.mxu0 0
  %202 = vmatpush1.bf16.msra.mxu0 0
  %203 = vmatprep.subr.bf16.mxu0 0
  %204 = vmatpush1.bf16.msra.mxu0 0
  %205 = vmatprep.subr.bf16.mxu0 0
  %206 = vmatpush1.bf16.msra.mxu0 0
  %207 = vmatprep.subr.bf16.mxu0 0
  %208 = vmatpush1.bf16.msra.mxu0 0
  %209 = vmatprep.mubr.bf16.mxu0 0
  %210 = vmatmul.mubr.bf16.gmra.mrb[0].mxu0 %v175
  %v211 = vpop.f32.mrb[0].mxu0
  %v212 = vadd.f32 %v160, %v211
  %v213 = vpop.f32.mrb[0].mxu0
  %v214 = vpop.f32.mrb[0].mxu0
  %v215 = vadd.f32 %v160, %v214
  %v216 = vpop.f32.mrb[0].mxu0
  %217 = vdwg.mxu0
  %v218 = vld [vmem:[%s7] sm:$0x1]
  %v219 = vld [vmem:[%s8] sm:$0x1]
  %v220 = vsel %vm104, %v212, 0.0
  %221 = vadd.xlane.f32.xlu0 %v220
  %v222 = vpop.xlane.xlu0 %221
  %v223 = vsel %vm104, %v215, 0.0
  %224 = vadd.xlane.f32.xlu0 %v223
  %v225 = vpop.xlane.xlu0 %224
  %v226 = vmul.f32 %v222, %v111
  %v227 = vmul.f32 %v225, %v111
  %v228 = vsub.f32 %v212, %v226
  %v229 = vsub.f32 %v215, %v227
  %v230 = vmul.f32 %v228, %v228
  %v231 = vmul.f32 %v229, %v229
  %v232 = vsel %vm104, %v230, 0.0
  %233 = vadd.xlane.f32.xlu0 %v232
  %v234 = vpop.xlane.xlu0 %233
  %v235 = vsel %vm104, %v231, 0.0
  %236 = vadd.xlane.f32.xlu0 %v235
  %v237 = vpop.xlane.xlu0 %236
  %v238 = vmul.f32 %v234, %v111
  %v239 = vmul.f32 %v237, %v111
  %v240 = vadd.f32 %v238, 1e-05
  %v241 = vadd.f32 %v239, 1e-05
  %v242 = vrsqrt.pop %v240
  %v243 = vrsqrt.pop %v241
  %v244 = vmul.f32 %v228, %v242
  %v245 = vmul.f32 %v229, %v243
  %v247 = vlaneseq
  %v248 = vshrl.u32 %v247, 7
  %v249 = vsub.s32 0, %v248
  %v250 = vrot.slane %v218, %v249
  %v252 = vmul.f32 %v244, %v250
  %v253 = vmul.f32 %v245, %v250
  %v255 = vlaneseq
  %v256 = vshrl.u32 %v255, 7
  %v257 = vsub.s32 0, %v256
  %v258 = vrot.slane %v219, %v257
  %v260 = vadd.f32 %v252, %v258
  %v261 = vadd.f32 %v253, %v258
  %v262 = vmax.f32 %v260, 0.0
  %v263 = vmax.f32 %v261, 0.0
  %v264 = vpack.c.bf16 %v263, %v262
  %v265 = vld [vmem:[%s9] sm:$0xf]
  %v266 = vld [vmem:[%s9 + $0x4] sm:$0xf]
  %v267 = vld [vmem:[%s9 + $0x8] sm:$0xf]
  %v268 = vld [vmem:[%s9 + $0xc] sm:$0xf]
  %v269 = vld [vmem:[%s10] sm:$0x1]
  %v271 = vlaneseq
  %v272 = vshrl.u32 %v271, 7
  %v273 = vsub.s32 0, %v272
  %v274 = vrot.slane %v269, %v273
  %v280 = vunpack.c.l.b16 %v265
  %v281 = vunpack.c.l.b16 %v266
  %v282 = vunpack.c.l.b16 %v267
  %v283 = vunpack.c.l.b16 %v268
  %v284 = vpack.c.b16 %v281, %v280
  %v285 = vpack.c.b16 %v283, %v282
  %v289 = vsel %vm104, %v264, 0
  %291 = vmatprep.subr.bf16.mxu0 0
  %292 = vmatpush1.bf16.msra.mxu0 %v284
  %293 = vmatprep.subr.bf16.mxu0 0
  %294 = vmatpush1.bf16.msra.mxu0 %v285
  %295 = vmatprep.subr.bf16.mxu0 0
  %296 = vmatpush1.bf16.msra.mxu0 0
  %297 = vmatprep.subr.bf16.mxu0 0
  %298 = vmatpush1.bf16.msra.mxu0 0
  %299 = vmatprep.subr.bf16.mxu0 0
  %300 = vmatpush1.bf16.msra.mxu0 0
  %301 = vmatprep.subr.bf16.mxu0 0
  %302 = vmatpush1.bf16.msra.mxu0 0
  %303 = vmatprep.subr.bf16.mxu0 0
  %304 = vmatpush1.bf16.msra.mxu0 0
  %305 = vmatprep.subr.bf16.mxu0 0
  %306 = vmatpush1.bf16.msra.mxu0 0
  %307 = vmatprep.subr.bf16.mxu0 0
  %308 = vmatpush1.bf16.msra.mxu0 0
  %309 = vmatprep.subr.bf16.mxu0 0
  %310 = vmatpush1.bf16.msra.mxu0 0
  %311 = vmatprep.subr.bf16.mxu0 0
  %312 = vmatpush1.bf16.msra.mxu0 0
  %313 = vmatprep.subr.bf16.mxu0 0
  %314 = vmatpush1.bf16.msra.mxu0 0
  %315 = vmatprep.subr.bf16.mxu0 0
  %316 = vmatpush1.bf16.msra.mxu0 0
  %317 = vmatprep.subr.bf16.mxu0 0
  %318 = vmatpush1.bf16.msra.mxu0 0
  %319 = vmatprep.subr.bf16.mxu0 0
  %320 = vmatpush1.bf16.msra.mxu0 0
  %321 = vmatprep.subr.bf16.mxu0 0
  %322 = vmatpush1.bf16.msra.mxu0 0
  %323 = vmatprep.mubr.bf16.mxu0 0
  %324 = vmatmul.mubr.bf16.gmra.mrb[0].mxu0 %v289
  %v325 = vpop.f32.mrb[0].mxu0
  %v326 = vadd.f32 %v274, %v325
  %v327 = vpop.f32.mrb[0].mxu0
  %v328 = vpop.f32.mrb[0].mxu0
  %v329 = vadd.f32 %v274, %v328
  %v330 = vpop.f32.mrb[0].mxu0
  %331 = vdwg.mxu0
  %vm332 = vcmask 785408
  %333 = vst.msk [vmem:[%s11] sm:$0xff] %vm332, %v326
  %334 = vst.msk [vmem:[%s11 + $0x8] sm:$0xff] %vm332, %v329
  // Predicated region
  $region46: #{gru_self_forward.2} parent=0 // pred_check
    _
  $region47: #{gru_self_forward.2} parent=0 // pred_check_branch
    %336 = sbr.rel (0) target = $region49
  $region48: #{gru_self_forward.2} parent=0 // pred_region
    _
  $region49: #{gru_self_forward.2} parent=0 // pred_fallthru
    _
  // Predicated region
  $region50: #{gru_self_forward.2} parent=0 // pred_check
    _
  $region51: #{gru_self_forward.2} parent=0 // pred_check_branch
    %338 = sbr.rel (0) target = $region53
  $region52: #{gru_self_forward.2} parent=0 // pred_region
    _
  $region53: #{gru_self_forward.2} parent=0 // pred_fallthru
    _

// kernel: gru_self_forward.3
$region0: #{gru_self_forward.3}
  #allocation0 [shape = 'u32[]', space=smem, size = 0x4, offset = 0x4, fixed_abs, tag = 'smem constant byte address 0x4 - core index']
  #allocation1 [shape = 'u32[144,128]{1,0:T(1,128)}', space=vmem, size = 0x12000, scoped, tag = 'internal scratch']
  #allocation2 [shape = 'f32[2,2,32]{2,1,0:T(2,128)}', space=vmem, size = 0x800, scoped, tag = 'scratch operand']
  #allocation3 [shape = 'f32[2,1]{1,0:T(2,128)}', space=vmem, size = 0x400, scoped, tag = 'scratch operand']
  #allocation4 [shape = 'f32[2,1]{1,0:T(2,128)}', space=vmem, size = 0x400, scoped, tag = 'scratch operand']
  #allocation5 [shape = 'f32[2,32]{1,0:T(2,128)}', space=vmem, size = 0x400, scoped, tag = 'scratch operand']
  #allocation6 [shape = 'f32[1,1]{1,0:T(1,128)S(1)}', space=vmem, size = 0x200, scoped, tag = 'scoped memory for gru_self_forward.3']
  %s0 = inlined_call_operand.vmem [shape: f32[8,2,96], index: 0, kind: input, shape index: {}]
  %s1 = inlined_call_operand.vmem [shape: s32[2,1], index: 1, kind: input, shape index: {}]
  %s2 = inlined_call_operand.vmem [shape: bf16[2,32,96], index: 2, kind: input, shape index: {}]
  %s3 = inlined_call_operand.vmem [shape: bf16[2,32,96], index: 3, kind: input, shape index: {}]
  %s4 = inlined_call_operand.vmem [shape: f32[2,1,96], index: 4, kind: input, shape index: {}]
  %s5 = inlined_call_operand.vmem [shape: f32[2,1,96], index: 5, kind: input, shape index: {}]
  %s6 = inlined_call_operand.vmem [shape: f32[1,32], index: 6, kind: input, shape index: {}]
  %s7 = inlined_call_operand.<no memory space> [shape: f32[1,1], index: 7, kind: input, shape index: {}]
  %s8 = inlined_call_operand.vmem [shape: f32[2,32], index: 8, kind: output, shape index: {}]
  %s9 = sld [smem:[#allocation0]]
  $region50: #{gru_self_forward.3} parent=0
    _
  %s11 = ssub.s32 1, %s9
  %s12 = scalar_select 0, %s11, %s9
  %v13 = vstv %s7
  %14 = vst [vmem:[#allocation6] sm:$0x1] %v13
  // Predicated region
  $region2: #{gru_self_forward.3} parent=0 // pred_check
    _
  $region3: #{gru_self_forward.3} parent=0 // pred_check_branch
    %16 = sbr.rel (0) target = $region5
  $region4: #{gru_self_forward.3} parent=0 // pred_region
    _
  $region5: #{gru_self_forward.3} parent=0 // pred_fallthru
    _
  // Predicated region
  $region6: #{gru_self_forward.3} parent=0 // pred_check
    _
  $region7: #{gru_self_forward.3} parent=0 // pred_check_branch
    %18 = sbr.rel (0) target = $region9
  $region8: #{gru_self_forward.3} parent=0 // pred_region
    _
  $region9: #{gru_self_forward.3} parent=0 // pred_fallthru
    _
  // Predicated region
  $region10: #{gru_self_forward.3} parent=0 // pred_check
    _
  $region11: #{gru_self_forward.3} parent=0 // pred_check_branch
    %20 = sbr.rel (0) target = $region13
  $region12: #{gru_self_forward.3} parent=0 // pred_region
    _
  $region13: #{gru_self_forward.3} parent=0 // pred_fallthru
    _
  // Predicated region
  $region14: #{gru_self_forward.3} parent=0 // pred_check
    _
  $region15: #{gru_self_forward.3} parent=0 // pred_check_branch
    %22 = sbr.rel (0) target = $region17
  $region16: #{gru_self_forward.3} parent=0 // pred_region
    _
  $region17: #{gru_self_forward.3} parent=0 // pred_fallthru
    _
  // Predicated region
  $region18: #{gru_self_forward.3} parent=0 // pred_check
    _
  $region19: #{gru_self_forward.3} parent=0 // pred_check_branch
    %24 = sbr.rel (0) target = $region21
  $region20: #{gru_self_forward.3} parent=0 // pred_region
    _
  $region21: #{gru_self_forward.3} parent=0 // pred_fallthru
    _
  // Predicated region
  $region22: #{gru_self_forward.3} parent=0 // pred_check
    _
  $region23: #{gru_self_forward.3} parent=0 // pred_check_branch
    %26 = sbr.rel (0) target = $region25
  $region24: #{gru_self_forward.3} parent=0 // pred_region
    _
  $region25: #{gru_self_forward.3} parent=0 // pred_fallthru
    _
  // Predicated region
  $region26: #{gru_self_forward.3} parent=0 // pred_check
    _
  $region27: #{gru_self_forward.3} parent=0 // pred_check_branch
    %28 = sbr.rel (0) target = $region29
  $region28: #{gru_self_forward.3} parent=0 // pred_region
    _
  $region29: #{gru_self_forward.3} parent=0 // pred_fallthru
    _
  // Predicated region
  $region30: #{gru_self_forward.3} parent=0 // pred_check
    _
  $region31: #{gru_self_forward.3} parent=0 // pred_check_branch
    %30 = sbr.rel (0) target = $region33
  $region32: #{gru_self_forward.3} parent=0 // pred_region
    _
  $region33: #{gru_self_forward.3} parent=0 // pred_fallthru
    _
  %p32 = scmp.eq.s32.totalorder 0, 0
  // Predicated region
  $region34: #{gru_self_forward.3} parent=0 // pred_check
    %p33 = pneg %p32
  $region35: #{gru_self_forward.3} parent=0 // pred_check_branch
    %35 = sbr.rel (%p33) target = $region37
  $region36: #{gru_self_forward.3} parent=0 // pred_region
    %vm36 = vcmask 254976
    %37 = vst.msk [vmem:[#allocation2] sm:$0x3] %vm36, 0.0
    %38 = vst.msk [vmem:[#allocation2 + $0x2] sm:$0x3] %vm36, 0.0
    %vm39 = vcmask 1024
    %40 = vst.msk [vmem:[#allocation3] sm:$0x3] %vm39, -inf
    %41 = vst.msk [vmem:[#allocation4] sm:$0x3] %vm39, 0.0
    %42 = vst.msk [vmem:[#allocation5] sm:$0x3] %vm36, 0.0
  $region37: #{gru_self_forward.3} parent=0 // pred_fallthru
    _
  %v43 = vld [vmem:[%s1] sm:$0x3]
  %s44 = smul.u32 0, 8
  %v45 = vld [vmem:[%s0] sm:$0x3]
  %v46 = vld [vmem:[#allocation2] sm:$0x3]
  %v47 = vpack.c.bf16 %v46, %v46
  %v48 = vld [vmem:[%s3] sm:$0xf]
  %v49 = vld [vmem:[%s3 + $0x4] sm:$0xf]
  %v50 = vld [vmem:[%s3 + $0x8] sm:$0xf]
  %v51 = vld [vmem:[%s3 + $0xc] sm:$0xf]
  %v52 = vld [vmem:[%s5] sm:$0x1]
  %v54 = vlaneseq
  %v55 = vshrl.u32 %v54, 7
  %v56 = vsub.s32 0, %v55
  %v57 = vrot.slane %v52, %v56
  %v63 = vunpack.c.l.b16 %v48
  %v64 = vunpack.c.l.b16 %v49
  %v65 = vunpack.c.l.b16 %v50
  %v66 = vunpack.c.l.b16 %v51
  %v67 = vpack.c.b16 %v64, %v63
  %v68 = vpack.c.b16 %v66, %v65
  %vm71 = vcmask 261120
  %v73 = vsel %vm71, %v47, 0
  %75 = vmatprep.subr.bf16.mxu0 0
  %76 = vmatpush1.bf16.msra.mxu0 %v67
  %77 = vmatprep.subr.bf16.mxu0 0
  %78 = vmatpush1.bf16.msra.mxu0 %v68
  %79 = vmatprep.subr.bf16.mxu0 0
  %80 = vmatpush1.bf16.msra.mxu0 0
  %81 = vmatprep.subr.bf16.mxu0 0
  %82 = vmatpush1.bf16.msra.mxu0 0
  %83 = vmatprep.subr.bf16.mxu0 0
  %84 = vmatpush1.bf16.msra.mxu0 0
  %85 = vmatprep.subr.bf16.mxu0 0
  %86 = vmatpush1.bf16.msra.mxu0 0
  %87 = vmatprep.subr.bf16.mxu0 0
  %88 = vmatpush1.bf16.msra.mxu0 0
  %89 = vmatprep.subr.bf16.mxu0 0
  %90 = vmatpush1.bf16.msra.mxu0 0
  %91 = vmatprep.subr.bf16.mxu0 0
  %92 = vmatpush1.bf16.msra.mxu0 0
  %93 = vmatprep.subr.bf16.mxu0 0
  %94 = vmatpush1.bf16.msra.mxu0 0
  %95 = vmatprep.subr.bf16.mxu0 0
  %96 = vmatpush1.bf16.msra.mxu0 0
  %97 = vmatprep.subr.bf16.mxu0 0
  %98 = vmatpush1.bf16.msra.mxu0 0
  %99 = vmatprep.subr.bf16.mxu0 0
  %100 = vmatpush1.bf16.msra.mxu0 0
  %101 = vmatprep.subr.bf16.mxu0 0
  %102 = vmatpush1.bf16.msra.mxu0 0
  %103 = vmatprep.subr.bf16.mxu0 0
  %104 = vmatpush1.bf16.msra.mxu0 0
  %105 = vmatprep.subr.bf16.mxu0 0
  %106 = vmatpush1.bf16.msra.mxu0 0
  %107 = vmatprep.mubr.bf16.mxu0 0
  %108 = vmatmul.mubr.bf16.gmra.mrb[0].mxu0 %v73
  %v109 = vpop.f32.mrb[0].mxu0
  %v110 = vadd.f32 %v57, %v109
  %v111 = vpop.f32.mrb[0].mxu0
  %v112 = vpop.f32.mrb[0].mxu0
  %v113 = vpop.f32.mrb[0].mxu0
  %114 = vdwg.mxu0
  %v115 = vadd.f32 %v45, %v110
  %v116 = vxor.u32 %v115, 2147483648
  %v117 = vmul.f32 %v116, 1.442695
  %v118 = vpow.pop %v117
  %v119 = vadd.f32 %v118, 1.0
  %v120 = vrcp.pop %v119
  %v121 = vmul.f32 1.0, %v120
  %123 = vrot.lane.b32.xlu0 %v110, 64
  %v124 = vpop.permute.xlu0 %123
  %v126 = vmul.f32 %v121, %v124
  %128 = vrot.lane.b32.xlu0 %v126, 64
  %v129 = vpop.permute.xlu0 %128
  %v131 = vadd.f32 %v45, %v129
  %v132 = vtanh.pop %v131
  %v133 = vsub.f32 1.0, %v121
  %135 = vrot.lane.b32.xlu0 %v132, 96
  %v136 = vpop.permute.xlu0 %135
  %v138 = vmul.f32 %v133, %v136
  %140 = vrot.lane.b32.xlu0 %v46, 32
  %v141 = vpop.permute.xlu0 %140
  %v143 = vmul.f32 %v121, %v141
  %v144 = vadd.f32 %v138, %v143
  %146 = vrot.lane.b32.xlu0 %v144, 96
  %v147 = vpop.permute.xlu0 %146
  %vm149 = vcmask 254976
  %150 = vst.msk [vmem:[#allocation2] sm:$0x3] %vm149, %v147
  %v151 = vpack.c.bf16 %v144, %v144
  %s152 = scalar_lea.vmem %s2, 16
  %v153 = vld [vmem:[%s152] sm:$0xf]
  %v154 = vld [vmem:[%s152 + $0x4] sm:$0xf]
  %v155 = vld [vmem:[%s152 + $0x8] sm:$0xf]
  %v156 = vld [vmem:[%s152 + $0xc] sm:$0xf]
  %s157 = scalar_lea.vmem %s4, 1
  %v158 = vld [vmem:[%s157] sm:$0x1]
  %v160 = vlaneseq
  %v161 = vshrl.u32 %v160, 7
  %v162 = vsub.s32 0, %v161
  %v163 = vrot.slane %v158, %v162
  %166 = vrot.lane.b32.xlu0 %v151, 96
  %v167 = vpop.permute.xlu0 %166
  %v172 = vunpack.c.l.b16 %v153
  %v173 = vunpack.c.l.b16 %v154
  %v174 = vunpack.c.l.b16 %v155
  %v175 = vunpack.c.l.b16 %v156
  %v176 = vpack.c.b16 %v173, %v172
  %v177 = vpack.c.b16 %v175, %v174
  %v181 = vsel %vm71, %v167, 0
  %183 = vmatprep.subr.bf16.mxu0 0
  %184 = vmatpush1.bf16.msra.mxu0 %v176
  %185 = vmatprep.subr.bf16.mxu0 0
  %186 = vmatpush1.bf16.msra.mxu0 %v177
  %187 = vmatprep.subr.bf16.mxu0 0
  %188 = vmatpush1.bf16.msra.mxu0 0
  %189 = vmatprep.subr.bf16.mxu0 0
  %190 = vmatpush1.bf16.msra.mxu0 0
  %191 = vmatprep.subr.bf16.mxu0 0
  %192 = vmatpush1.bf16.msra.mxu0 0
  %193 = vmatprep.subr.bf16.mxu0 0
  %194 = vmatpush1.bf16.msra.mxu0 0
  %195 = vmatprep.subr.bf16.mxu0 0
  %196 = vmatpush1.bf16.msra.mxu0 0
  %197 = vmatprep.subr.bf16.mxu0 0
  %198 = vmatpush1.bf16.msra.mxu0 0
  %199 = vmatprep.subr.bf16.mxu0 0
  %200 = vmatpush1.bf16.msra.mxu0 0
  %201 = vmatprep.subr.bf16.mxu0 0
  %202 = vmatpush1.bf16.msra.mxu0 0
  %203 = vmatprep.subr.bf16.mxu0 0
  %204 = vmatpush1.bf16.msra.mxu0 0
  %205 = vmatprep.subr.bf16.mxu0 0
  %206 = vmatpush1.bf16.msra.mxu0 0
  %207 = vmatprep.subr.bf16.mxu0 0
  %208 = vmatpush1.bf16.msra.mxu0 0
  %209 = vmatprep.subr.bf16.mxu0 0
  %210 = vmatpush1.bf16.msra.mxu0 0
  %211 = vmatprep.subr.bf16.mxu0 0
  %212 = vmatpush1.bf16.msra.mxu0 0
  %213 = vmatprep.subr.bf16.mxu0 0
  %214 = vmatpush1.bf16.msra.mxu0 0
  %215 = vmatprep.mubr.bf16.mxu0 0
  %216 = vmatmul.mubr.bf16.gmra.mrb[0].mxu0 %v181
  %v217 = vpop.f32.mrb[0].mxu0
  %v218 = vadd.f32 %v163, %v217
  %v219 = vpop.f32.mrb[0].mxu0
  %v220 = vpop.f32.mrb[0].mxu0
  %v221 = vpop.f32.mrb[0].mxu0
  %222 = vdwg.mxu0
  %s223 = scalar_lea.vmem [#allocation2], 2
  %v224 = vld [vmem:[%s223] sm:$0x3]
  %v225 = vpack.c.bf16 %v224, %v224
  %s226 = scalar_lea.vmem %s3, 16
  %v227 = vld [vmem:[%s226] sm:$0xf]
  %v228 = vld [vmem:[%s226 + $0x4] sm:$0xf]
  %v229 = vld [vmem:[%s226 + $0x8] sm:$0xf]
  %v230 = vld [vmem:[%s226 + $0xc] sm:$0xf]
  %s231 = scalar_lea.vmem %s5, 1
  %v232 = vld [vmem:[%s231] sm:$0x1]
  %v234 = vlaneseq
  %v235 = vshrl.u32 %v234, 7
  %v236 = vsub.s32 0, %v235
  %v237 = vrot.slane %v232, %v236
  %v243 = vunpack.c.l.b16 %v227
  %v244 = vunpack.c.l.b16 %v228
  %v245 = vunpack.c.l.b16 %v229
  %v246 = vunpack.c.l.b16 %v230
  %v247 = vpack.c.b16 %v244, %v243
  %v248 = vpack.c.b16 %v246, %v245
  %v252 = vsel %vm71, %v225, 0
  %254 = vmatprep.subr.bf16.mxu0 0
  %255 = vmatpush1.bf16.msra.mxu0 %v247
  %256 = vmatprep.subr.bf16.mxu0 0
  %257 = vmatpush1.bf16.msra.mxu0 %v248
  %258 = vmatprep.subr.bf16.mxu0 0
  %259 = vmatpush1.bf16.msra.mxu0 0
  %260 = vmatprep.subr.bf16.mxu0 0
  %261 = vmatpush1.bf16.msra.mxu0 0
  %262 = vmatprep.subr.bf16.mxu0 0
  %263 = vmatpush1.bf16.msra.mxu0 0
  %264 = vmatprep.subr.bf16.mxu0 0
  %265 = vmatpush1.bf16.msra.mxu0 0
  %266 = vmatprep.subr.bf16.mxu0 0
  %267 = vmatpush1.bf16.msra.mxu0 0
  %268 = vmatprep.subr.bf16.mxu0 0
  %269 = vmatpush1.bf16.msra.mxu0 0
  %270 = vmatprep.subr.bf16.mxu0 0
  %271 = vmatpush1.bf16.msra.mxu0 0
  %272 = vmatprep.subr.bf16.mxu0 0
  %273 = vmatpush1.bf16.msra.mxu0 0
  %274 = vmatprep.subr.bf16.mxu0 0
  %275 = vmatpush1.bf16.msra.mxu0 0
  %276 = vmatprep.subr.bf16.mxu0 0
  %277 = vmatpush1.bf16.msra.mxu0 0
  %278 = vmatprep.subr.bf16.mxu0 0
  %279 = vmatpush1.bf16.msra.mxu0 0
  %280 = vmatprep.subr.bf16.mxu0 0
  %281 = vmatpush1.bf16.msra.mxu0 0
  %282 = vmatprep.subr.bf16.mxu0 0
  %283 = vmatpush1.bf16.msra.mxu0 0
  %284 = vmatprep.subr.bf16.mxu0 0
  %285 = vmatpush1.bf16.msra.mxu0 0
  %286 = vmatprep.mubr.bf16.mxu0 0
  %287 = vmatmul.mubr.bf16.gmra.mrb[0].mxu0 %v252
  %v288 = vpop.f32.mrb[0].mxu0
  %v289 = vadd.f32 %v237, %v288
  %v290 = vpop.f32.mrb[0].mxu0
  %v291 = vpop.f32.mrb[0].mxu0
  %v292 = vpop.f32.mrb[0].mxu0
  %293 = vdwg.mxu0
  %v294 = vadd.f32 %v218, %v289
  %v295 = vxor.u32 %v294, 2147483648
  %v296 = vmul.f32 %v295, 1.442695
  %v297 = vpow.pop %v296
  %v298 = vadd.f32 %v297, 1.0
  %v299 = vrcp.pop %v298
  %v300 = vmul.f32 1.0, %v299
  %302 = vrot.lane.b32.xlu0 %v289, 64
  %v303 = vpop.permute.xlu0 %302
  %v305 = vmul.f32 %v300, %v303
  %307 = vrot.lane.b32.xlu0 %v305, 64
  %v308 = vpop.permute.xlu0 %307
  %v310 = vadd.f32 %v218, %v308
  %v311 = vtanh.pop %v310
  %v312 = vsub.f32 1.0, %v300
  %314 = vrot.lane.b32.xlu0 %v311, 96
  %v315 = vpop.permute.xlu0 %314
  %v317 = vmul.f32 %v312, %v315
  %319 = vrot.lane.b32.xlu0 %v224, 32
  %v320 = vpop.permute.xlu0 %319
  %v322 = vmul.f32 %v300, %v320
  %v323 = vadd.f32 %v317, %v322
  %325 = vrot.lane.b32.xlu0 %v323, 96
  %v326 = vpop.permute.xlu0 %325
  %328 = vst.msk [vmem:[%s223] sm:$0x3] %vm149, %v326
  %v329 = vld [vmem:[%s6] sm:$0x1]
  %v331 = vlaneseq
  %v332 = vshrl.u32 %v331, 7
  %v333 = vsub.s32 0, %v332
  %v334 = vrot.slane %v329, %v333
  %335 = vrot.lane.b32.xlu0 %v334, 32
  %v336 = vpop.permute.xlu0 %335
  %v338 = vmul.f32 %v323, %v336
  %340 = vrot.lane.b32.xlu0 %v338, 96
  %v341 = vpop.permute.xlu0 %340
  %v343 = vsel %vm149, %v341, 0.0
  %344 = vadd.xlane.f32.xlu0 %v343
  %v345 = vpop.xlane.xlu0 %344
  %v346 = vld [vmem:[#allocation6] sm:$0x1]
  %v348 = vlaneseq
  %v349 = vshrl.u32 %v348, 7
  %v350 = vsub.s32 0, %v349
  %v351 = vrot.slane %v346, %v350
  %v353 = vadd.f32 %v345, %v351
  %v354 = vstv %s44
  %vm355 = vcmp.lt.s32.totalorder %v354, %v43
  %v356 = vld [vmem:[#allocation3] sm:$0x3]
  %v357 = vmax.f32 %v356, %v353
  %v358 = vsel %vm355, %v357, %v356
  %v359 = vsub.f32 %v356, %v358
  %v360 = vmul.f32 %v359, 1.442695
  %v361 = vpow.pop %v360
  %v362 = vsel %vm355, %v361, 1.0
  %v363 = vsub.f32 %v353, %v358
  %v364 = vmul.f32 %v363, 1.442695
  %v365 = vpow.pop %v364
  %v366 = vsel %vm355, %v365, 0.0
  %v367 = vld [vmem:[#allocation4] sm:$0x3]
  %v368 = vmul.f32 %v362, %v367
  %v369 = vadd.f32 %v368, %v366
  %vm370 = vcmask 1024
  %371 = vst.msk [vmem:[#allocation4] sm:$0x3] %vm370, %v369
  %v372 = vld [vmem:[#allocation5] sm:$0x3]
  %374 = vset.pattern.permute.xlu0 0
  %375 = vperm.xlu0 %374, %v362
  %v376 = vpop.permute.xlu0 %375
  %v378 = vmul.f32 %v376, %v372
  %380 = vset.pattern.permute.xlu0 0
  %381 = vperm.xlu0 %380, %v366
  %v382 = vpop.permute.xlu0 %381
  %v384 = vmul.f32 %v382, %v323
  %386 = vrot.lane.b32.xlu0 %v384, 96
  %v387 = vpop.permute.xlu0 %386
  %v389 = vadd.f32 %v378, %v387
  %390 = vst.msk [vmem:[#allocation5] sm:$0x3] %vm149, %v389
  %391 = vst.msk [vmem:[#allocation3] sm:$0x3] %vm370, %v358
  %s392 = sadd.s32 %s44, 1
  %s393 = scalar_lea.vmem %s0, 2
  %v394 = vld [vmem:[%s393] sm:$0x3]
  %v395 = vld [vmem:[#allocation2] sm:$0x3]
  %v396 = vpack.c.bf16 %v395, %v395
  %v397 = vld [vmem:[%s3] sm:$0xf]
  %v398 = vld [vmem:[%s3 + $0x4] sm:$0xf]
  %v399 = vld [vmem:[%s3 + $0x8] sm:$0xf]
  %v400 = vld [vmem:[%s3 + $0xc] sm:$0xf]
  %v401 = vld [vmem:[%s5] sm:$0x1]
  %v403 = vlaneseq
  %v404 = vshrl.u32 %v403, 7
  %v405 = vsub.s32 0, %v404
  %v406 = vrot.slane %v401, %v405
  %v412 = vunpack.c.l.b16 %v397
  %v413 = vunpack.c.l.b16 %v398
  %v414 = vunpack.c.l.b16 %v399
  %v415 = vunpack.c.l.b16 %v400
  %v416 = vpack.c.b16 %v413, %v412
  %v417 = vpack.c.b16 %v415, %v414
  %v421 = vsel %vm71, %v396, 0
  %423 = vmatprep.subr.bf16.mxu0 0
  %424 = vmatpush1.bf16.msra.mxu0 %v416
  %425 = vmatprep.subr.bf16.mxu0 0
  %426 = vmatpush1.bf16.msra.mxu0 %v417
  %427 = vmatprep.subr.bf16.mxu0 0
  %428 = vmatpush1.bf16.msra.mxu0 0
  %429 = vmatprep.subr.bf16.mxu0 0
  %430 = vmatpush1.bf16.msra.mxu0 0
  %431 = vmatprep.subr.bf16.mxu0 0
  %432 = vmatpush1.bf16.msra.mxu0 0
  %433 = vmatprep.subr.bf16.mxu0 0
  %434 = vmatpush1.bf16.msra.mxu0 0
  %435 = vmatprep.subr.bf16.mxu0 0
  %436 = vmatpush1.bf16.msra.mxu0 0
  %437 = vmatprep.subr.bf16.mxu0 0
  %438 = vmatpush1.bf16.msra.mxu0 0
  %439 = vmatprep.subr.bf16.mxu0 0
  %440 = vmatpush1.bf16.msra.mxu0 0
  %441 = vmatprep.subr.bf16.mxu0 0
  %442 = vmatpush1.bf16.msra.mxu0 0
  %443 = vmatprep.subr.bf16.mxu0 0
  %444 = vmatpush1.bf16.msra.mxu0 0
  %445 = vmatprep.subr.bf16.mxu0 0
  %446 = vmatpush1.bf16.msra.mxu0 0
  %447 = vmatprep.subr.bf16.mxu0 0
  %448 = vmatpush1.bf16.msra.mxu0 0
  %449 = vmatprep.subr.bf16.mxu0 0
  %450 = vmatpush1.bf16.msra.mxu0 0
  %451 = vmatprep.subr.bf16.mxu0 0
  %452 = vmatpush1.bf16.msra.mxu0 0
  %453 = vmatprep.subr.bf16.mxu0 0
  %454 = vmatpush1.bf16.msra.mxu0 0
  %455 = vmatprep.mubr.bf16.mxu0 0
  %456 = vmatmul.mubr.bf16.gmra.mrb[0].mxu0 %v421
  %v457 = vpop.f32.mrb[0].mxu0
  %v458 = vadd.f32 %v406, %v457
  %v459 = vpop.f32.mrb[0].mxu0
  %v460 = vpop.f32.mrb[0].mxu0
  %v461 = vpop.f32.mrb[0].mxu0
  %462 = vdwg.mxu0
  %v463 = vadd.f32 %v394, %v458
  %v464 = vxor.u32 %v463, 2147483648
  %v465 = vmul.f32 %v464, 1.442695
  %v466 = vpow.pop %v465
  %v467 = vadd.f32 %v466, 1.0
  %v468 = vrcp.pop %v467
  %v469 = vmul.f32 1.0, %v468
  %471 = vrot.lane.b32.xlu0 %v458, 64
  %v472 = vpop.permute.xlu0 %471
  %v474 = vmul.f32 %v469, %v472
  %476 = vrot.lane.b32.xlu0 %v474, 64
  %v477 = vpop.permute.xlu0 %476
  %v479 = vadd.f32 %v394, %v477
  %v480 = vtanh.pop %v479
  %v481 = vsub.f32 1.0, %v469
  %483 = vrot.lane.b32.xlu0 %v480, 96
  %v484 = vpop.permute.xlu0 %483
  %v486 = vmul.f32 %v481, %v484
  %488 = vrot.lane.b32.xlu0 %v395, 32
  %v489 = vpop.permute.xlu0 %488
  %v491 = vmul.f32 %v469, %v489
  %v492 = vadd.f32 %v486, %v491
  %494 = vrot.lane.b32.xlu0 %v492, 96
  %v495 = vpop.permute.xlu0 %494
  %497 = vst.msk [vmem:[#allocation2] sm:$0x3] %vm149, %v495
  %v498 = vpack.c.bf16 %v492, %v492
  %v499 = vld [vmem:[%s152] sm:$0xf]
  %v500 = vld [vmem:[%s152 + $0x4] sm:$0xf]
  %v501 = vld [vmem:[%s152 + $0x8] sm:$0xf]
  %v502 = vld [vmem:[%s152 + $0xc] sm:$0xf]
  %v503 = vld [vmem:[%s157] sm:$0x1]
  %v505 = vlaneseq
  %v506 = vshrl.u32 %v505, 7
  %v507 = vsub.s32 0, %v506
  %v508 = vrot.slane %v503, %v507
  %511 = vrot.lane.b32.xlu0 %v498, 96
  %v512 = vpop.permute.xlu0 %511
  %v517 = vunpack.c.l.b16 %v499
  %v518 = vunpack.c.l.b16 %v500
  %v519 = vunpack.c.l.b16 %v501
  %v520 = vunpack.c.l.b16 %v502
  %v521 = vpack.c.b16 %v518, %v517
  %v522 = vpack.c.b16 %v520, %v519
  %v526 = vsel %vm71, %v512, 0
  %528 = vmatprep.subr.bf16.mxu0 0
  %529 = vmatpush1.bf16.msra.mxu0 %v521
  %530 = vmatprep.subr.bf16.mxu0 0
  %531 = vmatpush1.bf16.msra.mxu0 %v522
  %532 = vmatprep.subr.bf16.mxu0 0
  %533 = vmatpush1.bf16.msra.mxu0 0
  %534 = vmatprep.subr.bf16.mxu0 0
  %535 = vmatpush1.bf16.msra.mxu0 0
  %536 = vmatprep.subr.bf16.mxu0 0
  %537 = vmatpush1.bf16.msra.mxu0 0
  %538 = vmatprep.subr.bf16.mxu0 0
  %539 = vmatpush1.bf16.msra.mxu0 0
  %540 = vmatprep.subr.bf16.mxu0 0
  %541 = vmatpush1.bf16.msra.mxu0 0
  %542 = vmatprep.subr.bf16.mxu0 0
  %543 = vmatpush1.bf16.msra.mxu0 0
  %544 = vmatprep.subr.bf16.mxu0 0
  %545 = vmatpush1.bf16.msra.mxu0 0
  %546 = vmatprep.subr.bf16.mxu0 0
  %547 = vmatpush1.bf16.msra.mxu0 0
  %548 = vmatprep.subr.bf16.mxu0 0
  %549 = vmatpush1.bf16.msra.mxu0 0
  %550 = vmatprep.subr.bf16.mxu0 0
  %551 = vmatpush1.bf16.msra.mxu0 0
  %552 = vmatprep.subr.bf16.mxu0 0
  %553 = vmatpush1.bf16.msra.mxu0 0
  %554 = vmatprep.subr.bf16.mxu0 0
  %555 = vmatpush1.bf16.msra.mxu0 0
  %556 = vmatprep.subr.bf16.mxu0 0
  %557 = vmatpush1.bf16.msra.mxu0 0
  %558 = vmatprep.subr.bf16.mxu0 0
  %559 = vmatpush1.bf16.msra.mxu0 0
  %560 = vmatprep.mubr.bf16.mxu0 0
  %561 = vmatmul.mubr.bf16.gmra.mrb[0].mxu0 %v526
  %v562 = vpop.f32.mrb[0].mxu0
  %v563 = vadd.f32 %v508, %v562
  %v564 = vpop.f32.mrb[0].mxu0
  %v565 = vpop.f32.mrb[0].mxu0
  %v566 = vpop.f32.mrb[0].mxu0
  %567 = vdwg.mxu0
  %v568 = vld [vmem:[%s223] sm:$0x3]
  %v569 = vpack.c.bf16 %v568, %v568
  %v570 = vld [vmem:[%s226] sm:$0xf]
  %v571 = vld [vmem:[%s226 + $0x4] sm:$0xf]
  %v572 = vld [vmem:[%s226 + $0x8] sm:$0xf]
  %v573 = vld [vmem:[%s226 + $0xc] sm:$0xf]
  %v574 = vld [vmem:[%s231] sm:$0x1]
  %v576 = vlaneseq
  %v577 = vshrl.u32 %v576, 7
  %v578 = vsub.s32 0, %v577
  %v579 = vrot.slane %v574, %v578
  %v585 = vunpack.c.l.b16 %v570
  %v586 = vunpack.c.l.b16 %v571
  %v587 = vunpack.c.l.b16 %v572
  %v588 = vunpack.c.l.b16 %v573
  %v589 = vpack.c.b16 %v586, %v585
  %v590 = vpack.c.b16 %v588, %v587
  %v594 = vsel %vm71, %v569, 0
  %596 = vmatprep.subr.bf16.mxu0 0
  %597 = vmatpush1.bf16.msra.mxu0 %v589
  %598 = vmatprep.subr.bf16.mxu0 0
  %599 = vmatpush1.bf16.msra.mxu0 %v590
  %600 = vmatprep.subr.bf16.mxu0 0
  %601 = vmatpush1.bf16.msra.mxu0 0
  %602 = vmatprep.subr.bf16.mxu0 0
  %603 = vmatpush1.bf16.msra.mxu0 0
  %604 = vmatprep.subr.bf16.mxu0 0
  %605 = vmatpush1.bf16.msra.mxu0 0
  %606 = vmatprep.subr.bf16.mxu0 0
  %607 = vmatpush1.bf16.msra.mxu0 0
  %608 = vmatprep.subr.bf16.mxu0 0
  %609 = vmatpush1.bf16.msra.mxu0 0
  %610 = vmatprep.subr.bf16.mxu0 0
  %611 = vmatpush1.bf16.msra.mxu0 0
  %612 = vmatprep.subr.bf16.mxu0 0
  %613 = vmatpush1.bf16.msra.mxu0 0
  %614 = vmatprep.subr.bf16.mxu0 0
  %615 = vmatpush1.bf16.msra.mxu0 0
  %616 = vmatprep.subr.bf16.mxu0 0
  %617 = vmatpush1.bf16.msra.mxu0 0
  %618 = vmatprep.subr.bf16.mxu0 0
  %619 = vmatpush1.bf16.msra.mxu0 0
  %620 = vmatprep.subr.bf16.mxu0 0
  %621 = vmatpush1.bf16.msra.mxu0 0
  %622 = vmatprep.subr.bf16.mxu0 0
  %623 = vmatpush1.bf16.msra.mxu0 0
  %624 = vmatprep.subr.bf16.mxu0 0
  %625 = vmatpush1.bf16.msra.mxu0 0
  %626 = vmatprep.subr.bf16.mxu0 0
  %627 = vmatpush1.bf16.msra.mxu0 0
  %628 = vmatprep.mubr.bf16.mxu0 0
  %629 = vmatmul.mubr.bf16.gmra.mrb[0].mxu0 %v594
  %v630 = vpop.f32.mrb[0].mxu0
  %v631 = vadd.f32 %v579, %v630
  %v632 = vpop.f32.mrb[0].mxu0
  %v633 = vpop.f32.mrb[0].mxu0
  %v634 = vpop.f32.mrb[0].mxu0
  %635 = vdwg.mxu0
  %v636 = vadd.f32 %v563, %v631
  %v637 = vxor.u32 %v636, 2147483648
  %v638 = vmul.f32 %v637, 1.442695
  %v639 = vpow.pop %v638
  %v640 = vadd.f32 %v639, 1.0
  %v641 = vrcp.pop %v640
  %v642 = vmul.f32 1.0, %v641
  %644 = vrot.lane.b32.xlu0 %v631, 64
  %v645 = vpop.permute.xlu0 %644
  %v647 = vmul.f32 %v642, %v645
  %649 = vrot.lane.b32.xlu0 %v647, 64
  %v650 = vpop.permute.xlu0 %649
  %v652 = vadd.f32 %v563, %v650
  %v653 = vtanh.pop %v652
  %v654 = vsub.f32 1.0, %v642
  %656 = vrot.lane.b32.xlu0 %v653, 96
  %v657 = vpop.permute.xlu0 %656
  %v659 = vmul.f32 %v654, %v657
  %661 = vrot.lane.b32.xlu0 %v568, 32
  %v662 = vpop.permute.xlu0 %661
  %v664 = vmul.f32 %v642, %v662
  %v665 = vadd.f32 %v659, %v664
  %667 = vrot.lane.b32.xlu0 %v665, 96
  %v668 = vpop.permute.xlu0 %667
  %670 = vst.msk [vmem:[%s223] sm:$0x3] %vm149, %v668
  %v671 = vld [vmem:[%s6] sm:$0x1]
  %v673 = vlaneseq
  %v674 = vshrl.u32 %v673, 7
  %v675 = vsub.s32 0, %v674
  %v676 = vrot.slane %v671, %v675
  %677 = vrot.lane.b32.xlu0 %v676, 32
  %v678 = vpop.permute.xlu0 %677
  %v680 = vmul.f32 %v665, %v678
  %682 = vrot.lane.b32.xlu0 %v680, 96
  %v683 = vpop.permute.xlu0 %682
  %v685 = vsel %vm149, %v683, 0.0
  %686 = vadd.xlane.f32.xlu0 %v685
  %v687 = vpop.xlane.xlu0 %686
  %v688 = vld [vmem:[#allocation6] sm:$0x1]
  %v690 = vlaneseq
  %v691 = vshrl.u32 %v690, 7
  %v692 = vsub.s32 0, %v691
  %v693 = vrot.slane %v688, %v692
  %v695 = vadd.f32 %v687, %v693
  %v696 = vstv %s392
  %vm697 = vcmp.lt.s32.totalorder %v696, %v43
  %v698 = vld [vmem:[#allocation3] sm:$0x3]
  %v699 = vmax.f32 %v698, %v695
  %v700 = vsel %vm697, %v699, %v698
  %v701 = vsub.f32 %v698, %v700
  %v702 = vmul.f32 %v701, 1.442695
  %v703 = vpow.pop %v702
  %v704 = vsel %vm697, %v703, 1.0
  %v705 = vsub.f32 %v695, %v700
  %v706 = vmul.f32 %v705, 1.442695
  %v707 = vpow.pop %v706
  %v708 = vsel %vm697, %v707, 0.0
  %v709 = vld [vmem:[#allocation4] sm:$0x3]
  %v710 = vmul.f32 %v704, %v709
  %v711 = vadd.f32 %v710, %v708
  %712 = vst.msk [vmem:[#allocation4] sm:$0x3] %vm370, %v711
  %v713 = vld [vmem:[#allocation5] sm:$0x3]
  %715 = vset.pattern.permute.xlu0 0
  %716 = vperm.xlu0 %715, %v704
  %v717 = vpop.permute.xlu0 %716
  %v719 = vmul.f32 %v717, %v713
  %721 = vset.pattern.permute.xlu0 0
  %722 = vperm.xlu0 %721, %v708
  %v723 = vpop.permute.xlu0 %722
  %v725 = vmul.f32 %v723, %v665
  %727 = vrot.lane.b32.xlu0 %v725, 96
  %v728 = vpop.permute.xlu0 %727
  %v730 = vadd.f32 %v719, %v728
  %731 = vst.msk [vmem:[#allocation5] sm:$0x3] %vm149, %v730
  %732 = vst.msk [vmem:[#allocation3] sm:$0x3] %vm370, %v700
  %s733 = sadd.s32 %s44, 2
  %s734 = scalar_lea.vmem %s0, 4
  %v735 = vld [vmem:[%s734] sm:$0x3]
  %v736 = vld [vmem:[#allocation2] sm:$0x3]
  %v737 = vpack.c.bf16 %v736, %v736
  %v738 = vld [vmem:[%s3] sm:$0xf]
  %v739 = vld [vmem:[%s3 + $0x4] sm:$0xf]
  %v740 = vld [vmem:[%s3 + $0x8] sm:$0xf]
  %v741 = vld [vmem:[%s3 + $0xc] sm:$0xf]
  %v742 = vld [vmem:[%s5] sm:$0x1]
  %v744 = vlaneseq
  %v745 = vshrl.u32 %v744, 7
  %v746 = vsub.s32 0, %v745
  %v747 = vrot.slane %v742, %v746
  %v753 = vunpack.c.l.b16 %v738
  %v754 = vunpack.c.l.b16 %v739
  %v755 = vunpack.c.l.b16 %v740
  %v756 = vunpack.c.l.b16 %v741
  %v757 = vpack.c.b16 %v754, %v753
  %v758 = vpack.c.b16 %v756, %v755
  %v762 = vsel %vm71, %v737, 0
  %764 = vmatprep.subr.bf16.mxu0 0
  %765 = vmatpush1.bf16.msra.mxu0 %v757
  %766 = vmatprep.subr.bf16.mxu0 0
  %767 = vmatpush1.bf16.msra.mxu0 %v758
  %768 = vmatprep.subr.bf16.mxu0 0
  %769 = vmatpush1.bf16.msra.mxu0 0
  %770 = vmatprep.subr.bf16.mxu0 0
  %771 = vmatpush1.bf16.msra.mxu0 0
  %772 = vmatprep.subr.bf16.mxu0 0
  %773 = vmatpush1.bf16.msra.mxu0 0
  %774 = vmatprep.subr.bf16.mxu0 0
  %775 = vmatpush1.bf16.msra.mxu0 0
  %776 = vmatprep.subr.bf16.mxu0 0
  %777 = vmatpush1.bf16.msra.mxu0 0
  %778 = vmatprep.subr.bf16.mxu0 0
  %779 = vmatpush1.bf16.msra.mxu0 0
  %780 = vmatprep.subr.bf16.mxu0 0
  %781 = vmatpush1.bf16.msra.mxu0 0
  %782 = vmatprep.subr.bf16.mxu0 0
  %783 = vmatpush1.bf16.msra.mxu0 0
  %784 = vmatprep.subr.bf16.mxu0 0
  %785 = vmatpush1.bf16.msra.mxu0 0
  %786 = vmatprep.subr.bf16.mxu0 0
  %787 = vmatpush1.bf16.msra.mxu0 0
  %788 = vmatprep.subr.bf16.mxu0 0
  %789 = vmatpush1.bf16.msra.mxu0 0
  %790 = vmatprep.subr.bf16.mxu0 0
  %791 = vmatpush1.bf16.msra.mxu0 0
  %792 = vmatprep.subr.bf16.mxu0 0
  %793 = vmatpush1.bf16.msra.mxu0 0
  %794 = vmatprep.subr.bf16.mxu0 0
  %795 = vmatpush1.bf16.msra.mxu0 0
  %796 = vmatprep.mubr.bf16.mxu0 0
  %797 = vmatmul.mubr.bf16.gmra.mrb[0].mxu0 %v762
  %v798 = vpop.f32.mrb[0].mxu0
  %v799 = vadd.f32 %v747, %v798
  %v800 = vpop.f32.mrb[0].mxu0
  %v801 = vpop.f32.mrb[0].mxu0
  %v802 = vpop.f32.mrb[0].mxu0
  %803 = vdwg.mxu0
  %v804 = vadd.f32 %v735, %v799
  %v805 = vxor.u32 %v804, 2147483648
  %v806 = vmul.f32 %v805, 1.442695
  %v807 = vpow.pop %v806
  %v808 = vadd.f32 %v807, 1.0
  %v809 = vrcp.pop %v808
  %v810 = vmul.f32 1.0, %v809
  %812 = vrot.lane.b32.xlu0 %v799, 64
  %v813 = vpop.permute.xlu0 %812
  %v815 = vmul.f32 %v810, %v813
  %817 = vrot.lane.b32.xlu0 %v815, 64
  %v818 = vpop.permute.xlu0 %817
  %v820 = vadd.f32 %v735, %v818
  %v821 = vtanh.pop %v820
  %v822 = vsub.f32 1.0, %v810
  %824 = vrot.lane.b32.xlu0 %v821, 96
  %v825 = vpop.permute.xlu0 %824
  %v827 = vmul.f32 %v822, %v825
  %829 = vrot.lane.b32.xlu0 %v736, 32
  %v830 = vpop.permute.xlu0 %829
  %v832 = vmul.f32 %v810, %v830
  %v833 = vadd.f32 %v827, %v832
  %835 = vrot.lane.b32.xlu0 %v833, 96
  %v836 = vpop.permute.xlu0 %835
  %838 = vst.msk [vmem:[#allocation2] sm:$0x3] %vm149, %v836
  %v839 = vpack.c.bf16 %v833, %v833
  %v840 = vld [vmem:[%s152] sm:$0xf]
  %v841 = vld [vmem:[%s152 + $0x4] sm:$0xf]
  %v842 = vld [vmem:[%s152 + $0x8] sm:$0xf]
  %v843 = vld [vmem:[%s152 + $0xc] sm:$0xf]
  %v844 = vld [vmem:[%s157] sm:$0x1]
  %v846 = vlaneseq
  %v847 = vshrl.u32 %v846, 7
  %v848 = vsub.s32 0, %v847
  %v849 = vrot.slane %v844, %v848
  %852 = vrot.lane.b32.xlu0 %v839, 96
  %v853 = vpop.permute.xlu0 %852
  %v858 = vunpack.c.l.b16 %v840
  %v859 = vunpack.c.l.b16 %v841
  %v860 = vunpack.c.l.b16 %v842
  %v861 = vunpack.c.l.b16 %v843
  %v862 = vpack.c.b16 %v859, %v858
  %v863 = vpack.c.b16 %v861, %v860
  %v867 = vsel %vm71, %v853, 0
  %869 = vmatprep.subr.bf16.mxu0 0
  %870 = vmatpush1.bf16.msra.mxu0 %v862
  %871 = vmatprep.subr.bf16.mxu0 0
  %872 = vmatpush1.bf16.msra.mxu0 %v863
  %873 = vmatprep.subr.bf16.mxu0 0
  %874 = vmatpush1.bf16.msra.mxu0 0
  %875 = vmatprep.subr.bf16.mxu0 0
  %876 = vmatpush1.bf16.msra.mxu0 0
  %877 = vmatprep.subr.bf16.mxu0 0
  %878 = vmatpush1.bf16.msra.mxu0 0
  %879 = vmatprep.subr.bf16.mxu0 0
  %880 = vmatpush1.bf16.msra.mxu0 0
  %881 = vmatprep.subr.bf16.mxu0 0
  %882 = vmatpush1.bf16.msra.mxu0 0
  %883 = vmatprep.subr.bf16.mxu0 0
  %884 = vmatpush1.bf16.msra.mxu0 0
  %885 = vmatprep.subr.bf16.mxu0 0
  %886 = vmatpush1.bf16.msra.mxu0 0
  %887 = vmatprep.subr.bf16.mxu0 0
  %888 = vmatpush1.bf16.msra.mxu0 0
  %889 = vmatprep.subr.bf16.mxu0 0
  %890 = vmatpush1.bf16.msra.mxu0 0
  %891 = vmatprep.subr.bf16.mxu0 0
  %892 = vmatpush1.bf16.msra.mxu0 0
  %893 = vmatprep.subr.bf16.mxu0 0
  %894 = vmatpush1.bf16.msra.mxu0 0
  %895 = vmatprep.subr.bf16.mxu0 0
  %896 = vmatpush1.bf16.msra.mxu0 0
  %897 = vmatprep.subr.bf16.mxu0 0
  %898 = vmatpush1.bf16.msra.mxu0 0
  %899 = vmatprep.subr.bf16.mxu0 0
  %900 = vmatpush1.bf16.msra.mxu0 0
  %901 = vmatprep.mubr.bf16.mxu0 0
  %902 = vmatmul.mubr.bf16.gmra.mrb[0].mxu0 %v867
  %v903 = vpop.f32.mrb[0].mxu0
  %v904 = vadd.f32 %v849, %v903
  %v905 = vpop.f32.mrb[0].mxu0
  %v906 = vpop.f32.mrb[0].mxu0
  %v907 = vpop.f32.mrb[0].mxu0
  %908 = vdwg.mxu0
  %v909 = vld [vmem:[%s223] sm:$0x3]
  %v910 = vpack.c.bf16 %v909, %v909
  %v911 = vld [vmem:[%s226] sm:$0xf]
  %v912 = vld [vmem:[%s226 + $0x4] sm:$0xf]
  %v913 = vld [vmem:[%s226 + $0x8] sm:$0xf]
  %v914 = vld [vmem:[%s226 + $0xc] sm:$0xf]
  %v915 = vld [vmem:[%s231] sm:$0x1]
  %v917 = vlaneseq
  %v918 = vshrl.u32 %v917, 7
  %v919 = vsub.s32 0, %v918
  %v920 = vrot.slane %v915, %v919
  %v926 = vunpack.c.l.b16 %v911
  %v927 = vunpack.c.l.b16 %v912
  %v928 = vunpack.c.l.b16 %v913
  %v929 = vunpack.c.l.b16 %v914
  %v930 = vpack.c.b16 %v927, %v926
  %v931 = vpack.c.b16 %v929, %v928
  %v935 = vsel %vm71, %v910, 0
  %937 = vmatprep.subr.bf16.mxu0 0
  %938 = vmatpush1.bf16.msra.mxu0 %v930
  %939 = vmatprep.subr.bf16.mxu0 0
  %940 = vmatpush1.bf16.msra.mxu0 %v931
  %941 = vmatprep.subr.bf16.mxu0 0
  %942 = vmatpush1.bf16.msra.mxu0 0
  %943 = vmatprep.subr.bf16.mxu0 0
  %944 = vmatpush1.bf16.msra.mxu0 0
  %945 = vmatprep.subr.bf16.mxu0 0
  %946 = vmatpush1.bf16.msra.mxu0 0
  %947 = vmatprep.subr.bf16.mxu0 0
  %948 = vmatpush1.bf16.msra.mxu0 0
  %949 = vmatprep.subr.bf16.mxu0 0
  %950 = vmatpush1.bf16.msra.mxu0 0
  %951 = vmatprep.subr.bf16.mxu0 0
  %952 = vmatpush1.bf16.msra.mxu0 0
  %953 = vmatprep.subr.bf16.mxu0 0
  %954 = vmatpush1.bf16.msra.mxu0 0
  %955 = vmatprep.subr.bf16.mxu0 0
  %956 = vmatpush1.bf16.msra.mxu0 0
  %957 = vmatprep.subr.bf16.mxu0 0
  %958 = vmatpush1.bf16.msra.mxu0 0
  %959 = vmatprep.subr.bf16.mxu0 0
  %960 = vmatpush1.bf16.msra.mxu0 0
  %961 = vmatprep.subr.bf16.mxu0 0
  %962 = vmatpush1.bf16.msra.mxu0 0
  %963 = vmatprep.subr.bf16.mxu0 0
  %964 = vmatpush1.bf16.msra.mxu0 0
  %965 = vmatprep.subr.bf16.mxu0 0
  %966 = vmatpush1.bf16.msra.mxu0 0
  %967 = vmatprep.subr.bf16.mxu0 0
  %968 = vmatpush1.bf16.msra.mxu0 0
  %969 = vmatprep.mubr.bf16.mxu0 0
  %970 = vmatmul.mubr.bf16.gmra.mrb[0].mxu0 %v935
  %v971 = vpop.f32.mrb[0].mxu0
  %v972 = vadd.f32 %v920, %v971
  %v973 = vpop.f32.mrb[0].mxu0
  %v974 = vpop.f32.mrb[0].mxu0
  %v975 = vpop.f32.mrb[0].mxu0
  %976 = vdwg.mxu0
  %v977 = vadd.f32 %v904, %v972
  %v978 = vxor.u32 %v977, 2147483648
  %v979 = vmul.f32 %v978, 1.442695
  %v980 = vpow.pop %v979
  %v981 = vadd.f32 %v980, 1.0
  %v982 = vrcp.pop %v981
  %v983 = vmul.f32 1.0, %v982
  %985 = vrot.lane.b32.xlu0 %v972, 64
  %v986 = vpop.permute.xlu0 %985
  %v988 = vmul.f32 %v983, %v986
  %990 = vrot.lane.b32.xlu0 %v988, 64
  %v991 = vpop.permute.xlu0 %990
  %v993 = vadd.f32 %v904, %v991
  %v994 = vtanh.pop %v993
  %v995 = vsub.f32 1.0, %v983
  %997 = vrot.lane.b32.xlu0 %v994, 96
  %v998 = vpop.permute.xlu0 %997
  %v1000 = vmul.f32 %v995, %v998
  %1002 = vrot.lane.b32.xlu0 %v909, 32
  %v1003 = vpop.permute.xlu0 %1002
  %v1005 = vmul.f32 %v983, %v1003
  %v1006 = vadd.f32 %v1000, %v1005
  %1008 = vrot.lane.b32.xlu0 %v1006, 96
  %v1009 = vpop.permute.xlu0 %1008
  %1011 = vst.msk [vmem:[%s223] sm:$0x3] %vm149, %v1009
  %v1012 = vld [vmem:[%s6] sm:$0x1]
  %v1014 = vlaneseq
  %v1015 = vshrl.u32 %v1014, 7
  %v1016 = vsub.s32 0, %v1015
  %v1017 = vrot.slane %v1012, %v1016
  %1018 = vrot.lane.b32.xlu0 %v1017, 32
  %v1019 = vpop.permute.xlu0 %1018
  %v1021 = vmul.f32 %v1006, %v1019
  %1023 = vrot.lane.b32.xlu0 %v1021, 96
  %v1024 = vpop.permute.xlu0 %1023
  %v1026 = vsel %vm149, %v1024, 0.0
  %1027 = vadd.xlane.f32.xlu0 %v1026
  %v1028 = vpop.xlane.xlu0 %1027
  %v1029 = vld [vmem:[#allocation6] sm:$0x1]
  %v1031 = vlaneseq
  %v1032 = vshrl.u32 %v1031, 7
  %v1033 = vsub.s32 0, %v1032
  %v1034 = vrot.slane %v1029, %v1033
  %v1036 = vadd.f32 %v1028, %v1034
  %v1037 = vstv %s733
  %vm1038 = vcmp.lt.s32.totalorder %v1037, %v43
  %v1039 = vld [vmem:[#allocation3] sm:$0x3]
  %v1040 = vmax.f32 %v1039, %v1036
  %v1041 = vsel %vm1038, %v1040, %v1039
  %v1042 = vsub.f32 %v1039, %v1041
  %v1043 = vmul.f32 %v1042, 1.442695
  %v1044 = vpow.pop %v1043
  %v1045 = vsel %vm1038, %v1044, 1.0
  %v1046 = vsub.f32 %v1036, %v1041
  %v1047 = vmul.f32 %v1046, 1.442695
  %v1048 = vpow.pop %v1047
  %v1049 = vsel %vm1038, %v1048, 0.0
  %v1050 = vld [vmem:[#allocation4] sm:$0x3]
  %v1051 = vmul.f32 %v1045, %v1050
  %v1052 = vadd.f32 %v1051, %v1049
  %1053 = vst.msk [vmem:[#allocation4] sm:$0x3] %vm370, %v1052
  %v1054 = vld [vmem:[#allocation5] sm:$0x3]
  %1056 = vset.pattern.permute.xlu0 0
  %1057 = vperm.xlu0 %1056, %v1045
  %v1058 = vpop.permute.xlu0 %1057
  %v1060 = vmul.f32 %v1058, %v1054
  %1062 = vset.pattern.permute.xlu0 0
  %1063 = vperm.xlu0 %1062, %v1049
  %v1064 = vpop.permute.xlu0 %1063
  %v1066 = vmul.f32 %v1064, %v1006
  %1068 = vrot.lane.b32.xlu0 %v1066, 96
  %v1069 = vpop.permute.xlu0 %1068
  %v1071 = vadd.f32 %v1060, %v1069
  %1072 = vst.msk [vmem:[#allocation5] sm:$0x3] %vm149, %v1071
  %1073 = vst.msk [vmem:[#allocation3] sm:$0x3] %vm370, %v1041
  %s1074 = sadd.s32 %s44, 3
  %s1075 = scalar_lea.vmem %s0, 6
  %v1076 = vld [vmem:[%s1075] sm:$0x3]
  %v1077 = vld [vmem:[#allocation2] sm:$0x3]
  %v1078 = vpack.c.bf16 %v1077, %v1077
  %v1079 = vld [vmem:[%s3] sm:$0xf]
  %v1080 = vld [vmem:[%s3 + $0x4] sm:$0xf]
  %v1081 = vld [vmem:[%s3 + $0x8] sm:$0xf]
  %v1082 = vld [vmem:[%s3 + $0xc] sm:$0xf]
  %v1083 = vld [vmem:[%s5] sm:$0x1]
  %v1085 = vlaneseq
  %v1086 = vshrl.u32 %v1085, 7
  %v1087 = vsub.s32 0, %v1086
  %v1088 = vrot.slane %v1083, %v1087
  %v1094 = vunpack.c.l.b16 %v1079
  %v1095 = vunpack.c.l.b16 %v1080
  %v1096 = vunpack.c.l.b16 %v1081
  %v1097 = vunpack.c.l.b16 %v1082
  %v1098 = vpack.c.b16 %v1095, %v1094
  %v1099 = vpack.c.b16 %v1097, %v1096
  %v1103 = vsel %vm71, %v1078, 0
  %1105 = vmatprep.subr.bf16.mxu0 0
  %1106 = vmatpush1.bf16.msra.mxu0 %v1098
  %1107 = vmatprep.subr.bf16.mxu0 0
  %1108 = vmatpush1.bf16.msra.mxu0 %v1099
  %1109 = vmatprep.subr.bf16.mxu0 0
  %1110 = vmatpush1.bf16.msra.mxu0 0
  %1111 = vmatprep.subr.bf16.mxu0 0
  %1112 = vmatpush1.bf16.msra.mxu0 0
  %1113 = vmatprep.subr.bf16.mxu0 0
  %1114 = vmatpush1.bf16.msra.mxu0 0
  %1115 = vmatprep.subr.bf16.mxu0 0
  %1116 = vmatpush1.bf16.msra.mxu0 0
  %1117 = vmatprep.subr.bf16.mxu0 0
  %1118 = vmatpush1.bf16.msra.mxu0 0
  %1119 = vmatprep.subr.bf16.mxu0 0
  %1120 = vmatpush1.bf16.msra.mxu0 0
  %1121 = vmatprep.subr.bf16.mxu0 0
  %1122 = vmatpush1.bf16.msra.mxu0 0
  %1123 = vmatprep.subr.bf16.mxu0 0
  %1124 = vmatpush1.bf16.msra.mxu0 0
  %1125 = vmatprep.subr.bf16.mxu0 0
  %1126 = vmatpush1.bf16.msra.mxu0 0
  %1127 = vmatprep.subr.bf16.mxu0 0
  %1128 = vmatpush1.bf16.msra.mxu0 0
  %1129 = vmatprep.subr.bf16.mxu0 0
  %1130 = vmatpush1.bf16.msra.mxu0 0
  %1131 = vmatprep.subr.bf16.mxu0 0
  %1132 = vmatpush1.bf16.msra.mxu0 0
  %1133 = vmatprep.subr.bf16.mxu0 0
  %1134 = vmatpush1.bf16.msra.mxu0 0
  %1135 = vmatprep.subr.bf16.mxu0 0
  %1136 = vmatpush1.bf16.msra.mxu0 0
  %1137 = vmatprep.mubr.bf16.mxu0 0
  %1138 = vmatmul.mubr.bf16.gmra.mrb[0].mxu0 %v1103
  %v1139 = vpop.f32.mrb[0].mxu0
  %v1140 = vadd.f32 %v1088, %v1139
  %v1141 = vpop.f32.mrb[0].mxu0
  %v1142 = vpop.f32.mrb[0].mxu0
  %v1143 = vpop.f32.mrb[0].mxu0
  %1144 = vdwg.mxu0
  %v1145 = vadd.f32 %v1076, %v1140
  %v1146 = vxor.u32 %v1145, 2147483648
  %v1147 = vmul.f32 %v1146, 1.442695
  %v1148 = vpow.pop %v1147
  %v1149 = vadd.f32 %v1148, 1.0
  %v1150 = vrcp.pop %v1149
  %v1151 = vmul.f32 1.0, %v1150
  %1153 = vrot.lane.b32.xlu0 %v1140, 64
  %v1154 = vpop.permute.xlu0 %1153
  %v1156 = vmul.f32 %v1151, %v1154
  %1158 = vrot.lane.b32.xlu0 %v1156, 64
  %v1159 = vpop.permute.xlu0 %1158
  %v1161 = vadd.f32 %v1076, %v1159
  %v1162 = vtanh.pop %v1161
  %v1163 = vsub.f32 1.0, %v1151
  %1165 = vrot.lane.b32.xlu0 %v1162, 96
  %v1166 = vpop.permute.xlu0 %1165
  %v1168 = vmul.f32 %v1163, %v1166
  %1170 = vrot.lane.b32.xlu0 %v1077, 32
  %v1171 = vpop.permute.xlu0 %1170
  %v1173 = vmul.f32 %v1151, %v1171
  %v1174 = vadd.f32 %v1168, %v1173
  %1176 = vrot.lane.b32.xlu0 %v1174, 96
  %v1177 = vpop.permute.xlu0 %1176
  %1179 = vst.msk [vmem:[#allocation2] sm:$0x3] %vm149, %v1177
  %v1180 = vpack.c.bf16 %v1174, %v1174
  %v1181 = vld [vmem:[%s152] sm:$0xf]
  %v1182 = vld [vmem:[%s152 + $0x4] sm:$0xf]
  %v1183 = vld [vmem:[%s152 + $0x8] sm:$0xf]
  %v1184 = vld [vmem:[%s152 + $0xc] sm:$0xf]
  %v1185 = vld [vmem:[%s157] sm:$0x1]
  %v1187 = vlaneseq
  %v1188 = vshrl.u32 %v1187, 7
  %v1189 = vsub.s32 0, %v1188
  %v1190 = vrot.slane %v1185, %v1189
  %1193 = vrot.lane.b32.xlu0 %v1180, 96
  %v1194 = vpop.permute.xlu0 %1193
  %v1199 = vunpack.c.l.b16 %v1181
  %v1200 = vunpack.c.l.b16 %v1182
  %v1201 = vunpack.c.l.b16 %v1183
  %v1202 = vunpack.c.l.b16 %v1184
  %v1203 = vpack.c.b16 %v1200, %v1199
  %v1204 = vpack.c.b16 %v1202, %v1201
  %v1208 = vsel %vm71, %v1194, 0
  %1210 = vmatprep.subr.bf16.mxu0 0
  %1211 = vmatpush1.bf16.msra.mxu0 %v1203
  %1212 = vmatprep.subr.bf16.mxu0 0
  %1213 = vmatpush1.bf16.msra.mxu0 %v1204
  %1214 = vmatprep.subr.bf16.mxu0 0
  %1215 = vmatpush1.bf16.msra.mxu0 0
  %1216 = vmatprep.subr.bf16.mxu0 0
  %1217 = vmatpush1.bf16.msra.mxu0 0
  %1218 = vmatprep.subr.bf16.mxu0 0
  %1219 = vmatpush1.bf16.msra.mxu0 0
  %1220 = vmatprep.subr.bf16.mxu0 0
  %1221 = vmatpush1.bf16.msra.mxu0 0
  %1222 = vmatprep.subr.bf16.mxu0 0
  %1223 = vmatpush1.bf16.msra.mxu0 0
  %1224 = vmatprep.subr.bf16.mxu0 0
  %1225 = vmatpush1.bf16.msra.mxu0 0
  %1226 = vmatprep.subr.bf16.mxu0 0
  %1227 = vmatpush1.bf16.msra.mxu0 0
  %1228 = vmatprep.subr.bf16.mxu0 0
  %1229 = vmatpush1.bf16.msra.mxu0 0
  %1230 = vmatprep.subr.bf16.mxu0 0
  %1231 = vmatpush1.bf16.msra.mxu0 0
  %1232 = vmatprep.subr.bf16.mxu0 0
  %1233 = vmatpush1.bf16.msra.mxu0 0
  %1234 = vmatprep.subr.bf16.mxu0 0
  %1235 = vmatpush1.bf16.msra.mxu0 0
  %1236 = vmatprep.subr.bf16.mxu0 0
  %1237 = vmatpush1.bf16.msra.mxu0 0
  %1238 = vmatprep.subr.bf16.mxu0 0
  %1239 = vmatpush1.bf16.msra.mxu0 0
  %1240 = vmatprep.subr.bf16.mxu0 0
  %1241 = vmatpush1.bf16.msra.mxu0 0
  %1242 = vmatprep.mubr.bf16.mxu0 0
  %1243 = vmatmul.mubr.bf16.gmra.mrb[0].mxu0 %v1208
  %v1244 = vpop.f32.mrb[0].mxu0
  %v1245 = vadd.f32 %v1190, %v1244
  %v1246 = vpop.f32.mrb[0].mxu0
  %v1247 = vpop.f32.mrb[0].mxu0
  %v1248 = vpop.f32.mrb[0].mxu0
  %1249 = vdwg.mxu0
  %v1250 = vld [vmem:[%s223] sm:$0x3]
  %v1251 = vpack.c.bf16 %v1250, %v1250
  %v1252 = vld [vmem:[%s226] sm:$0xf]
  %v1253 = vld [vmem:[%s226 + $0x4] sm:$0xf]
  %v1254 = vld [vmem:[%s226 + $0x8] sm:$0xf]
  %v1255 = vld [vmem:[%s226 + $0xc] sm:$0xf]
  %v1256 = vld [vmem:[%s231] sm:$0x1]
  %v1258 = vlaneseq
  %v1259 = vshrl.u32 %v1258, 7
  %v1260 = vsub.s32 0, %v1259
  %v1261 = vrot.slane %v1256, %v1260
  %v1267 = vunpack.c.l.b16 %v1252
  %v1268 = vunpack.c.l.b16 %v1253
  %v1269 = vunpack.c.l.b16 %v1254
  %v1270 = vunpack.c.l.b16 %v1255
  %v1271 = vpack.c.b16 %v1268, %v1267
  %v1272 = vpack.c.b16 %v1270, %v1269
  %v1276 = vsel %vm71, %v1251, 0
  %1278 = vmatprep.subr.bf16.mxu0 0
  %1279 = vmatpush1.bf16.msra.mxu0 %v1271
  %1280 = vmatprep.subr.bf16.mxu0 0
  %1281 = vmatpush1.bf16.msra.mxu0 %v1272
  %1282 = vmatprep.subr.bf16.mxu0 0
  %1283 = vmatpush1.bf16.msra.mxu0 0
  %1284 = vmatprep.subr.bf16.mxu0 0
  %1285 = vmatpush1.bf16.msra.mxu0 0
  %1286 = vmatprep.subr.bf16.mxu0 0
  %1287 = vmatpush1.bf16.msra.mxu0 0
  %1288 = vmatprep.subr.bf16.mxu0 0
  %1289 = vmatpush1.bf16.msra.mxu0 0
  %1290 = vmatprep.subr.bf16.mxu0 0
  %1291 = vmatpush1.bf16.msra.mxu0 0
  %1292 = vmatprep.subr.bf16.mxu0 0
  %1293 = vmatpush1.bf16.msra.mxu0 0
  %1294 = vmatprep.subr.bf16.mxu0 0
  %1295 = vmatpush1.bf16.msra.mxu0 0
  %1296 = vmatprep.subr.bf16.mxu0 0
  %1297 = vmatpush1.bf16.msra.mxu0 0
  %1298 = vmatprep.subr.bf16.mxu0 0
  %1299 = vmatpush1.bf16.msra.mxu0 0
  %1300 = vmatprep.subr.bf16.mxu0 0
  %1301 = vmatpush1.bf16.msra.mxu0 0
  %1302 = vmatprep.subr.bf16.mxu0 0
  %1303 = vmatpush1.bf16.msra.mxu0 0
  %1304 = vmatprep.subr.bf16.mxu0 0
  %1305 = vmatpush1.bf16.msra.mxu0 0
  %1306 = vmatprep.subr.bf16.mxu0 0
  %1307 = vmatpush1.bf16.msra.mxu0 0
  %1308 = vmatprep.subr.bf16.mxu0 0
  %1309 = vmatpush1.bf16.msra.mxu0 0
  %1310 = vmatprep.mubr.bf16.mxu0 0
  %1311 = vmatmul.mubr.bf16.gmra.mrb[0].mxu0 %v1276
  %v1312 = vpop.f32.mrb[0].mxu0
  %v1313 = vadd.f32 %v1261, %v1312
  %v1314 = vpop.f32.mrb[0].mxu0
  %v1315 = vpop.f32.mrb[0].mxu0
  %v1316 = vpop.f32.mrb[0].mxu0
  %1317 = vdwg.mxu0
  %v1318 = vadd.f32 %v1245, %v1313
  %v1319 = vxor.u32 %v1318, 2147483648
  %v1320 = vmul.f32 %v1319, 1.442695
  %v1321 = vpow.pop %v1320
  %v1322 = vadd.f32 %v1321, 1.0
  %v1323 = vrcp.pop %v1322
  %v1324 = vmul.f32 1.0, %v1323
  %1326 = vrot.lane.b32.xlu0 %v1313, 64
  %v1327 = vpop.permute.xlu0 %1326
  %v1329 = vmul.f32 %v1324, %v1327
  %1331 = vrot.lane.b32.xlu0 %v1329, 64
  %v1332 = vpop.permute.xlu0 %1331
  %v1334 = vadd.f32 %v1245, %v1332
  %v1335 = vtanh.pop %v1334
  %v1336 = vsub.f32 1.0, %v1324
  %1338 = vrot.lane.b32.xlu0 %v1335, 96
  %v1339 = vpop.permute.xlu0 %1338
  %v1341 = vmul.f32 %v1336, %v1339
  %1343 = vrot.lane.b32.xlu0 %v1250, 32
  %v1344 = vpop.permute.xlu0 %1343
  %v1346 = vmul.f32 %v1324, %v1344
  %v1347 = vadd.f32 %v1341, %v1346
  %1349 = vrot.lane.b32.xlu0 %v1347, 96
  %v1350 = vpop.permute.xlu0 %1349
  %1352 = vst.msk [vmem:[%s223] sm:$0x3] %vm149, %v1350
  %v1353 = vld [vmem:[%s6] sm:$0x1]
  %v1355 = vlaneseq
  %v1356 = vshrl.u32 %v1355, 7
  %v1357 = vsub.s32 0, %v1356
  %v1358 = vrot.slane %v1353, %v1357
  %1359 = vrot.lane.b32.xlu0 %v1358, 32
  %v1360 = vpop.permute.xlu0 %1359
  %v1362 = vmul.f32 %v1347, %v1360
  %1364 = vrot.lane.b32.xlu0 %v1362, 96
  %v1365 = vpop.permute.xlu0 %1364
  %v1367 = vsel %vm149, %v1365, 0.0
  %1368 = vadd.xlane.f32.xlu0 %v1367
  %v1369 = vpop.xlane.xlu0 %1368
  %v1370 = vld [vmem:[#allocation6] sm:$0x1]
  %v1372 = vlaneseq
  %v1373 = vshrl.u32 %v1372, 7
  %v1374 = vsub.s32 0, %v1373
  %v1375 = vrot.slane %v1370, %v1374
  %v1377 = vadd.f32 %v1369, %v1375
  %v1378 = vstv %s1074
  %vm1379 = vcmp.lt.s32.totalorder %v1378, %v43
  %v1380 = vld [vmem:[#allocation3] sm:$0x3]
  %v1381 = vmax.f32 %v1380, %v1377
  %v1382 = vsel %vm1379, %v1381, %v1380
  %v1383 = vsub.f32 %v1380, %v1382
  %v1384 = vmul.f32 %v1383, 1.442695
  %v1385 = vpow.pop %v1384
  %v1386 = vsel %vm1379, %v1385, 1.0
  %v1387 = vsub.f32 %v1377, %v1382
  %v1388 = vmul.f32 %v1387, 1.442695
  %v1389 = vpow.pop %v1388
  %v1390 = vsel %vm1379, %v1389, 0.0
  %v1391 = vld [vmem:[#allocation4] sm:$0x3]
  %v1392 = vmul.f32 %v1386, %v1391
  %v1393 = vadd.f32 %v1392, %v1390
  %1394 = vst.msk [vmem:[#allocation4] sm:$0x3] %vm370, %v1393
  %v1395 = vld [vmem:[#allocation5] sm:$0x3]
  %1397 = vset.pattern.permute.xlu0 0
  %1398 = vperm.xlu0 %1397, %v1386
  %v1399 = vpop.permute.xlu0 %1398
  %v1401 = vmul.f32 %v1399, %v1395
  %1403 = vset.pattern.permute.xlu0 0
  %1404 = vperm.xlu0 %1403, %v1390
  %v1405 = vpop.permute.xlu0 %1404
  %v1407 = vmul.f32 %v1405, %v1347
  %1409 = vrot.lane.b32.xlu0 %v1407, 96
  %v1410 = vpop.permute.xlu0 %1409
  %v1412 = vadd.f32 %v1401, %v1410
  %1413 = vst.msk [vmem:[#allocation5] sm:$0x3] %vm149, %v1412
  %1414 = vst.msk [vmem:[#allocation3] sm:$0x3] %vm370, %v1382
  %s1415 = sadd.s32 %s44, 4
  %s1416 = scalar_lea.vmem %s0, 8
  %v1417 = vld [vmem:[%s1416] sm:$0x3]
  %v1418 = vld [vmem:[#allocation2] sm:$0x3]
  %v1419 = vpack.c.bf16 %v1418, %v1418
  %v1420 = vld [vmem:[%s3] sm:$0xf]
  %v1421 = vld [vmem:[%s3 + $0x4] sm:$0xf]
  %v1422 = vld [vmem:[%s3 + $0x8] sm:$0xf]
  %v1423 = vld [vmem:[%s3 + $0xc] sm:$0xf]
  %v1424 = vld [vmem:[%s5] sm:$0x1]
  %v1426 = vlaneseq
  %v1427 = vshrl.u32 %v1426, 7
  %v1428 = vsub.s32 0, %v1427
  %v1429 = vrot.slane %v1424, %v1428
  %v1435 = vunpack.c.l.b16 %v1420
  %v1436 = vunpack.c.l.b16 %v1421
  %v1437 = vunpack.c.l.b16 %v1422
  %v1438 = vunpack.c.l.b16 %v1423
  %v1439 = vpack.c.b16 %v1436, %v1435
  %v1440 = vpack.c.b16 %v1438, %v1437
  %v1444 = vsel %vm71, %v1419, 0
  %1446 = vmatprep.subr.bf16.mxu0 0
  %1447 = vmatpush1.bf16.msra.mxu0 %v1439
  %1448 = vmatprep.subr.bf16.mxu0 0
  %1449 = vmatpush1.bf16.msra.mxu0 %v1440
  %1450 = vmatprep.subr.bf16.mxu0 0
  %1451 = vmatpush1.bf16.msra.mxu0 0
  %1452 = vmatprep.subr.bf16.mxu0 0
  %1453 = vmatpush1.bf16.msra.mxu0 0
  %1454 = vmatprep.subr.bf16.mxu0 0
  %1455 = vmatpush1.bf16.msra.mxu0 0
  %1456 = vmatprep.subr.bf16.mxu0 0
  %1457 = vmatpush1.bf16.msra.mxu0 0
  %1458 = vmatprep.subr.bf16.mxu0 0
  %1459 = vmatpush1.bf16.msra.mxu0 0
  %1460 = vmatprep.subr.bf16.mxu0 0
  %1461 = vmatpush1.bf16.msra.mxu0 0
  %1462 = vmatprep.subr.bf16.mxu0 0
  %1463 = vmatpush1.bf16.msra.mxu0 0
  %1464 = vmatprep.subr.bf16.mxu0 0
  %1465 = vmatpush1.bf16.msra.mxu0 0
  %1466 = vmatprep.subr.bf16.mxu0 0
  %1467 = vmatpush1.bf16.msra.mxu0 0
  %1468 = vmatprep.subr.bf16.mxu0 0
  %1469 = vmatpush1.bf16.msra.mxu0 0
  %1470 = vmatprep.subr.bf16.mxu0 0
  %1471 = vmatpush1.bf16.msra.mxu0 0
  %1472 = vmatprep.subr.bf16.mxu0 0
  %1473 = vmatpush1.bf16.msra.mxu0 0
  %1474 = vmatprep.subr.bf16.mxu0 0
  %1475 = vmatpush1.bf16.msra.mxu0 0
  %1476 = vmatprep.subr.bf16.mxu0 0
  %1477 = vmatpush1.bf16.msra.mxu0 0
  %1478 = vmatprep.mubr.bf16.mxu0 0
  %1479 = vmatmul.mubr.bf16.gmra.mrb[0].mxu0 %v1444
  %v1480 = vpop.f32.mrb[0].mxu0
  %v1481 = vadd.f32 %v1429, %v1480
  %v1482 = vpop.f32.mrb[0].mxu0
  %v1483 = vpop.f32.mrb[0].mxu0
  %v1484 = vpop.f32.mrb[0].mxu0
  %1485 = vdwg.mxu0
  %v1486 = vadd.f32 %v1417, %v1481
  %v1487 = vxor.u32 %v1486, 2147483648
  %v1488 = vmul.f32 %v1487, 1.442695
  %v1489 = vpow.pop %v1488
  %v1490 = vadd.f32 %v1489, 1.0
  %v1491 = vrcp.pop %v1490
  %v1492 = vmul.f32 1.0, %v1491
  %1494 = vrot.lane.b32.xlu0 %v1481, 64
  %v1495 = vpop.permute.xlu0 %1494
  %v1497 = vmul.f32 %v1492, %v1495
  %1499 = vrot.lane.b32.xlu0 %v1497, 64
  %v1500 = vpop.permute.xlu0 %1499
  %v1502 = vadd.f32 %v1417, %v1500
  %v1503 = vtanh.pop %v1502
  %v1504 = vsub.f32 1.0, %v1492
  %1506 = vrot.lane.b32.xlu0 %v1503, 96
  %v1507 = vpop.permute.xlu0 %1506
  %v1509 = vmul.f32 %v1504, %v1507
  %1511 = vrot.lane.b32.xlu0 %v1418, 32
  %v1512 = vpop.permute.xlu0 %1511
  %v1514 = vmul.f32 %v1492, %v1512
  %v1515 = vadd.f32 %v1509, %v1514
  %1517 = vrot.lane.b32.xlu0 %v1515, 96
  %v1518 = vpop.permute.xlu0 %1517
  %1520 = vst.msk [vmem:[#allocation2] sm:$0x3] %vm149, %v1518
  %v1521 = vpack.c.bf16 %v1515, %v1515
  %v1522 = vld [vmem:[%s152] sm:$0xf]
  %v1523 = vld [vmem:[%s152 + $0x4] sm:$0xf]
  %v1524 = vld [vmem:[%s152 + $0x8] sm:$0xf]
  %v1525 = vld [vmem:[%s152 + $0xc] sm:$0xf]
  %v1526 = vld [vmem:[%s157] sm:$0x1]
  %v1528 = vlaneseq
  %v1529 = vshrl.u32 %v1528, 7
  %v1530 = vsub.s32 0, %v1529
  %v1531 = vrot.slane %v1526, %v1530
  %1534 = vrot.lane.b32.xlu0 %v1521, 96
  %v1535 = vpop.permute.xlu0 %1534
  %v1540 = vunpack.c.l.b16 %v1522
  %v1541 = vunpack.c.l.b16 %v1523
  %v1542 = vunpack.c.l.b16 %v1524
  %v1543 = vunpack.c.l.b16 %v1525
  %v1544 = vpack.c.b16 %v1541, %v1540
  %v1545 = vpack.c.b16 %v1543, %v1542
  %v1549 = vsel %vm71, %v1535, 0
  %1551 = vmatprep.subr.bf16.mxu0 0
  %1552 = vmatpush1.bf16.msra.mxu0 %v1544
  %1553 = vmatprep.subr.bf16.mxu0 0
  %1554 = vmatpush1.bf16.msra.mxu0 %v1545
  %1555 = vmatprep.subr.bf16.mxu0 0
  %1556 = vmatpush1.bf16.msra.mxu0 0
  %1557 = vmatprep.subr.bf16.mxu0 0
  %1558 = vmatpush1.bf16.msra.mxu0 0
  %1559 = vmatprep.subr.bf16.mxu0 0
  %1560 = vmatpush1.bf16.msra.mxu0 0
  %1561 = vmatprep.subr.bf16.mxu0 0
  %1562 = vmatpush1.bf16.msra.mxu0 0
  %1563 = vmatprep.subr.bf16.mxu0 0
  %1564 = vmatpush1.bf16.msra.mxu0 0
  %1565 = vmatprep.subr.bf16.mxu0 0
  %1566 = vmatpush1.bf16.msra.mxu0 0
  %1567 = vmatprep.subr.bf16.mxu0 0
  %1568 = vmatpush1.bf16.msra.mxu0 0
  %1569 = vmatprep.subr.bf16.mxu0 0
  %1570 = vmatpush1.bf16.msra.mxu0 0
  %1571 = vmatprep.subr.bf16.mxu0 0
  %1572 = vmatpush1.bf16.msra.mxu0 0
  %1573 = vmatprep.subr.bf16.mxu0 0
  %1574 = vmatpush1.bf16.msra.mxu0 0
  %1575 = vmatprep.subr.bf16.mxu0 0
  %1576 = vmatpush1.bf16.msra.mxu0 0
  %1577 = vmatprep.subr.bf16.mxu0 0
  %1578 = vmatpush1.bf16.msra.mxu0 0
  %1579 = vmatprep.subr.bf16.mxu0 0
  %1580 = vmatpush1.bf16.msra.mxu0 0
  %1581 = vmatprep.subr.bf16.mxu0 0
  %1582 = vmatpush1.bf16.msra.mxu0 0
  %1583 = vmatprep.mubr.bf16.mxu0 0
  %1584 = vmatmul.mubr.bf16.gmra.mrb[0].mxu0 %v1549
  %v1585 = vpop.f32.mrb[0].mxu0
  %v1586 = vadd.f32 %v1531, %v1585
  %v1587 = vpop.f32.mrb[0].mxu0
  %v1588 = vpop.f32.mrb[0].mxu0
  %v1589 = vpop.f32.mrb[0].mxu0
  %1590 = vdwg.mxu0
  %v1591 = vld [vmem:[%s223] sm:$0x3]
  %v1592 = vpack.c.bf16 %v1591, %v1591
  %v1593 = vld [vmem:[%s226] sm:$0xf]
  %v1594 = vld [vmem:[%s226 + $0x4] sm:$0xf]
  %v1595 = vld [vmem:[%s226 + $0x8] sm:$0xf]
  %v1596 = vld [vmem:[%s226 + $0xc] sm:$0xf]
  %v1597 = vld [vmem:[%s231] sm:$0x1]
  %v1599 = vlaneseq
  %v1600 = vshrl.u32 %v1599, 7
  %v1601 = vsub.s32 0, %v1600
  %v1602 = vrot.slane %v1597, %v1601
  %v1608 = vunpack.c.l.b16 %v1593
  %v1609 = vunpack.c.l.b16 %v1594
  %v1610 = vunpack.c.l.b16 %v1595
  %v1611 = vunpack.c.l.b16 %v1596
  %v1612 = vpack.c.b16 %v1609, %v1608
  %v1613 = vpack.c.b16 %v1611, %v1610
  %v1617 = vsel %vm71, %v1592, 0
  %1619 = vmatprep.subr.bf16.mxu0 0
  %1620 = vmatpush1.bf16.msra.mxu0 %v1612
  %1621 = vmatprep.subr.bf16.mxu0 0
  %1622 = vmatpush1.bf16.msra.mxu0 %v1613
  %1623 = vmatprep.subr.bf16.mxu0 0
  %1624 = vmatpush1.bf16.msra.mxu0 0
  %1625 = vmatprep.subr.bf16.mxu0 0
  %1626 = vmatpush1.bf16.msra.mxu0 0
  %1627 = vmatprep.subr.bf16.mxu0 0
  %1628 = vmatpush1.bf16.msra.mxu0 0
  %1629 = vmatprep.subr.bf16.mxu0 0
  %1630 = vmatpush1.bf16.msra.mxu0 0
  %1631 = vmatprep.subr.bf16.mxu0 0
  %1632 = vmatpush1.bf16.msra.mxu0 0
  %1633 = vmatprep.subr.bf16.mxu0 0
  %1634 = vmatpush1.bf16.msra.mxu0 0
  %1635 = vmatprep.subr.bf16.mxu0 0
  %1636 = vmatpush1.bf16.msra.mxu0 0
  %1637 = vmatprep.subr.bf16.mxu0 0
  %1638 = vmatpush1.bf16.msra.mxu0 0
  %1639 = vmatprep.subr.bf16.mxu0 0
  %1640 = vmatpush1.bf16.msra.mxu0 0
  %1641 = vmatprep.subr.bf16.mxu0 0
  %1642 = vmatpush1.bf16.msra.mxu0 0
  %1643 = vmatprep.subr.bf16.mxu0 0
  %1644 = vmatpush1.bf16.msra.mxu0 0
  %1645 = vmatprep.subr.bf16.mxu0 0
  %1646 = vmatpush1.bf16.msra.mxu0 0
  %1647 = vmatprep.subr.bf16.mxu0 0
  %1648 = vmatpush1.bf16.msra.mxu0 0
  %1649 = vmatprep.subr.bf16.mxu0 0
  %1650 = vmatpush1.bf16.msra.mxu0 0
  %1651 = vmatprep.mubr.bf16.mxu0 0
  %1652 = vmatmul.mubr.bf16.gmra.mrb[0].mxu0 %v1617
  %v1653 = vpop.f32.mrb[0].mxu0
  %v1654 = vadd.f32 %v1602, %v1653
  %v1655 = vpop.f32.mrb[0].mxu0
  %v1656 = vpop.f32.mrb[0].mxu0
  %v1657 = vpop.f32.mrb[0].mxu0
  %1658 = vdwg.mxu0
  %v1659 = vadd.f32 %v1586, %v1654
  %v1660 = vxor.u32 %v1659, 2147483648
  %v1661 = vmul.f32 %v1660, 1.442695
  %v1662 = vpow.pop %v1661
  %v1663 = vadd.f32 %v1662, 1.0
  %v1664 = vrcp.pop %v1663
  %v1665 = vmul.f32 1.0, %v1664
  %1667 = vrot.lane.b32.xlu0 %v1654, 64
  %v1668 = vpop.permute.xlu0 %1667
  %v1670 = vmul.f32 %v1665, %v1668
  %1672 = vrot.lane.b32.xlu0 %v1670, 64
  %v1673 = vpop.permute.xlu0 %1672
  %v1675 = vadd.f32 %v1586, %v1673
  %v1676 = vtanh.pop %v1675
  %v1677 = vsub.f32 1.0, %v1665
  %1679 = vrot.lane.b32.xlu0 %v1676, 96
  %v1680 = vpop.permute.xlu0 %1679
  %v1682 = vmul.f32 %v1677, %v1680
  %1684 = vrot.lane.b32.xlu0 %v1591, 32
  %v1685 = vpop.permute.xlu0 %1684
  %v1687 = vmul.f32 %v1665, %v1685
  %v1688 = vadd.f32 %v1682, %v1687
  %1690 = vrot.lane.b32.xlu0 %v1688, 96
  %v1691 = vpop.permute.xlu0 %1690
  %1693 = vst.msk [vmem:[%s223] sm:$0x3] %vm149, %v1691
  %v1694 = vld [vmem:[%s6] sm:$0x1]
  %v1696 = vlaneseq
  %v1697 = vshrl.u32 %v1696, 7
  %v1698 = vsub.s32 0, %v1697
  %v1699 = vrot.slane %v1694, %v1698
  %1700 = vrot.lane.b32.xlu0 %v1699, 32
  %v1701 = vpop.permute.xlu0 %1700
  %v1703 = vmul.f32 %v1688, %v1701
  %1705 = vrot.lane.b32.xlu0 %v1703, 96
  %v1706 = vpop.permute.xlu0 %1705
  %v1708 = vsel %vm149, %v1706, 0.0
  %1709 = vadd.xlane.f32.xlu0 %v1708
  %v1710 = vpop.xlane.xlu0 %1709
  %v1711 = vld [vmem:[#allocation6] sm:$0x1]
  %v1713 = vlaneseq
  %v1714 = vshrl.u32 %v1713, 7
  %v1715 = vsub.s32 0, %v1714
  %v1716 = vrot.slane %v1711, %v1715
  %v1718 = vadd.f32 %v1710, %v1716
  %v1719 = vstv %s1415
  %vm1720 = vcmp.lt.s32.totalorder %v1719, %v43
  %v1721 = vld [vmem:[#allocation3] sm:$0x3]
  %v1722 = vmax.f32 %v1721, %v1718
  %v1723 = vsel %vm1720, %v1722, %v1721
  %v1724 = vsub.f32 %v1721, %v1723
  %v1725 = vmul.f32 %v1724, 1.442695
  %v1726 = vpow.pop %v1725
  %v1727 = vsel %vm1720, %v1726, 1.0
  %v1728 = vsub.f32 %v1718, %v1723
  %v1729 = vmul.f32 %v1728, 1.442695
  %v1730 = vpow.pop %v1729
  %v1731 = vsel %vm1720, %v1730, 0.0
  %v1732 = vld [vmem:[#allocation4] sm:$0x3]
  %v1733 = vmul.f32 %v1727, %v1732
  %v1734 = vadd.f32 %v1733, %v1731
  %1735 = vst.msk [vmem:[#allocation4] sm:$0x3] %vm370, %v1734
  %v1736 = vld [vmem:[#allocation5] sm:$0x3]
  %1738 = vset.pattern.permute.xlu0 0
  %1739 = vperm.xlu0 %1738, %v1727
  %v1740 = vpop.permute.xlu0 %1739
  %v1742 = vmul.f32 %v1740, %v1736
  %1744 = vset.pattern.permute.xlu0 0
  %1745 = vperm.xlu0 %1744, %v1731
  %v1746 = vpop.permute.xlu0 %1745
  %v1748 = vmul.f32 %v1746, %v1688
  %1750 = vrot.lane.b32.xlu0 %v1748, 96
  %v1751 = vpop.permute.xlu0 %1750
  %v1753 = vadd.f32 %v1742, %v1751
  %1754 = vst.msk [vmem:[#allocation5] sm:$0x3] %vm149, %v1753
  %1755 = vst.msk [vmem:[#allocation3] sm:$0x3] %vm370, %v1723
  %s1756 = sadd.s32 %s44, 5
  %s1757 = scalar_lea.vmem %s0, 10
  %v1758 = vld [vmem:[%s1757] sm:$0x3]
  %v1759 = vld [vmem:[#allocation2] sm:$0x3]
  %v1760 = vpack.c.bf16 %v1759, %v1759
  %v1761 = vld [vmem:[%s3] sm:$0xf]
  %v1762 = vld [vmem:[%s3 + $0x4] sm:$0xf]
  %v1763 = vld [vmem:[%s3 + $0x8] sm:$0xf]
  %v1764 = vld [vmem:[%s3 + $0xc] sm:$0xf]
  %v1765 = vld [vmem:[%s5] sm:$0x1]
  %v1767 = vlaneseq
  %v1768 = vshrl.u32 %v1767, 7
  %v1769 = vsub.s32 0, %v1768
  %v1770 = vrot.slane %v1765, %v1769
  %v1776 = vunpack.c.l.b16 %v1761
  %v1777 = vunpack.c.l.b16 %v1762
  %v1778 = vunpack.c.l.b16 %v1763
  %v1779 = vunpack.c.l.b16 %v1764
  %v1780 = vpack.c.b16 %v1777, %v1776
  %v1781 = vpack.c.b16 %v1779, %v1778
  %v1785 = vsel %vm71, %v1760, 0
  %1787 = vmatprep.subr.bf16.mxu0 0
  %1788 = vmatpush1.bf16.msra.mxu0 %v1780
  %1789 = vmatprep.subr.bf16.mxu0 0
  %1790 = vmatpush1.bf16.msra.mxu0 %v1781
  %1791 = vmatprep.subr.bf16.mxu0 0
  %1792 = vmatpush1.bf16.msra.mxu0 0
  %1793 = vmatprep.subr.bf16.mxu0 0
  %1794 = vmatpush1.bf16.msra.mxu0 0
  %1795 = vmatprep.subr.bf16.mxu0 0
  %1796 = vmatpush1.bf16.msra.mxu0 0
  %1797 = vmatprep.subr.bf16.mxu0 0
  %1798 = vmatpush1.bf16.msra.mxu0 0
  %1799 = vmatprep.subr.bf16.mxu0 0
  %1800 = vmatpush1.bf16.msra.mxu0 0
  %1801 = vmatprep.subr.bf16.mxu0 0
  %1802 = vmatpush1.bf16.msra.mxu0 0
  %1803 = vmatprep.subr.bf16.mxu0 0
  %1804 = vmatpush1.bf16.msra.mxu0 0
  %1805 = vmatprep.subr.bf16.mxu0 0
  %1806 = vmatpush1.bf16.msra.mxu0 0
  %1807 = vmatprep.subr.bf16.mxu0 0
  %1808 = vmatpush1.bf16.msra.mxu0 0
  %1809 = vmatprep.subr.bf16.mxu0 0
  %1810 = vmatpush1.bf16.msra.mxu0 0
  %1811 = vmatprep.subr.bf16.mxu0 0
  %1812 = vmatpush1.bf16.msra.mxu0 0
  %1813 = vmatprep.subr.bf16.mxu0 0
  %1814 = vmatpush1.bf16.msra.mxu0 0
  %1815 = vmatprep.subr.bf16.mxu0 0
  %1816 = vmatpush1.bf16.msra.mxu0 0
  %1817 = vmatprep.subr.bf16.mxu0 0
  %1818 = vmatpush1.bf16.msra.mxu0 0
  %1819 = vmatprep.mubr.bf16.mxu0 0
  %1820 = vmatmul.mubr.bf16.gmra.mrb[0].mxu0 %v1785
  %v1821 = vpop.f32.mrb[0].mxu0
  %v1822 = vadd.f32 %v1770, %v1821
  %v1823 = vpop.f32.mrb[0].mxu0
  %v1824 = vpop.f32.mrb[0].mxu0
  %v1825 = vpop.f32.mrb[0].mxu0
  %1826 = vdwg.mxu0
  %v1827 = vadd.f32 %v1758, %v1822
  %v1828 = vxor.u32 %v1827, 2147483648
  %v1829 = vmul.f32 %v1828, 1.442695
  %v1830 = vpow.pop %v1829
  %v1831 = vadd.f32 %v1830, 1.0
  %v1832 = vrcp.pop %v1831
  %v1833 = vmul.f32 1.0, %v1832
  %1835 = vrot.lane.b32.xlu0 %v1822, 64
  %v1836 = vpop.permute.xlu0 %1835
  %v1838 = vmul.f32 %v1833, %v1836
  %1840 = vrot.lane.b32.xlu0 %v1838, 64
  %v1841 = vpop.permute.xlu0 %1840
  %v1843 = vadd.f32 %v1758, %v1841
  %v1844 = vtanh.pop %v1843
  %v1845 = vsub.f32 1.0, %v1833
  %1847 = vrot.lane.b32.xlu0 %v1844, 96
  %v1848 = vpop.permute.xlu0 %1847
  %v1850 = vmul.f32 %v1845, %v1848
  %1852 = vrot.lane.b32.xlu0 %v1759, 32
  %v1853 = vpop.permute.xlu0 %1852
  %v1855 = vmul.f32 %v1833, %v1853
  %v1856 = vadd.f32 %v1850, %v1855
  %1858 = vrot.lane.b32.xlu0 %v1856, 96
  %v1859 = vpop.permute.xlu0 %1858
  %1861 = vst.msk [vmem:[#allocation2] sm:$0x3] %vm149, %v1859
  %v1862 = vpack.c.bf16 %v1856, %v1856
  %v1863 = vld [vmem:[%s152] sm:$0xf]
  %v1864 = vld [vmem:[%s152 + $0x4] sm:$0xf]
  %v1865 = vld [vmem:[%s152 + $0x8] sm:$0xf]
  %v1866 = vld [vmem:[%s152 + $0xc] sm:$0xf]
  %v1867 = vld [vmem:[%s157] sm:$0x1]
  %v1869 = vlaneseq
  %v1870 = vshrl.u32 %v1869, 7
  %v1871 = vsub.s32 0, %v1870
  %v1872 = vrot.slane %v1867, %v1871
  %1875 = vrot.lane.b32.xlu0 %v1862, 96
  %v1876 = vpop.permute.xlu0 %1875
  %v1881 = vunpack.c.l.b16 %v1863
  %v1882 = vunpack.c.l.b16 %v1864
  %v1883 = vunpack.c.l.b16 %v1865
  %v1884 = vunpack.c.l.b16 %v1866
  %v1885 = vpack.c.b16 %v1882, %v1881
  %v1886 = vpack.c.b16 %v1884, %v1883
  %v1890 = vsel %vm71, %v1876, 0
  %1892 = vmatprep.subr.bf16.mxu0 0
  %1893 = vmatpush1.bf16.msra.mxu0 %v1885
  %1894 = vmatprep.subr.bf16.mxu0 0
  %1895 = vmatpush1.bf16.msra.mxu0 %v1886
  %1896 = vmatprep.subr.bf16.mxu0 0
  %1897 = vmatpush1.bf16.msra.mxu0 0
  %1898 = vmatprep.subr.bf16.mxu0 0
  %1899 = vmatpush1.bf16.msra.mxu0 0
  %1900 = vmatprep.subr.bf16.mxu0 0
  %1901 = vmatpush1.bf16.msra.mxu0 0
  %1902 = vmatprep.subr.bf16.mxu0 0
  %1903 = vmatpush1.bf16.msra.mxu0 0
  %1904 = vmatprep.subr.bf16.mxu0 0
  %1905 = vmatpush1.bf16.msra.mxu0 0
  %1906 = vmatprep.subr.bf16.mxu0 0
  %1907 = vmatpush1.bf16.msra.mxu0 0
  %1908 = vmatprep.subr.bf16.mxu0 0
  %1909 = vmatpush1.bf16.msra.mxu0 0
  %1910 = vmatprep.subr.bf16.mxu0 0
  %1911 = vmatpush1.bf16.msra.mxu0 0
  %1912 = vmatprep.subr.bf16.mxu0 0
  %1913 = vmatpush1.bf16.msra.mxu0 0
  %1914 = vmatprep.subr.bf16.mxu0 0
  %1915 = vmatpush1.bf16.msra.mxu0 0
  %1916 = vmatprep.subr.bf16.mxu0 0
  %1917 = vmatpush1.bf16.msra.mxu0 0
  %1918 = vmatprep.subr.bf16.mxu0 0
  %1919 = vmatpush1.bf16.msra.mxu0 0
  %1920 = vmatprep.subr.bf16.mxu0 0
  %1921 = vmatpush1.bf16.msra.mxu0 0
  %1922 = vmatprep.subr.bf16.mxu0 0
  %1923 = vmatpush1.bf16.msra.mxu0 0
  %1924 = vmatprep.mubr.bf16.mxu0 0
  %1925 = vmatmul.mubr.bf16.gmra.mrb[0].mxu0 %v1890
  %v1926 = vpop.f32.mrb[0].mxu0
  %v1927 = vadd.f32 %v1872, %v1926
  %v1928 = vpop.f32.mrb[0].mxu0
  %v1929 = vpop.f32.mrb[0].mxu0
  %v1930 = vpop.f32.mrb[0].mxu0
  %1931 = vdwg.mxu0
  %v1932 = vld [vmem:[%s223] sm:$0x3]
  %v1933 = vpack.c.bf16 %v1932, %v1932
  %v1934 = vld [vmem:[%s226] sm:$0xf]
  %v1935 = vld [vmem:[%s226 + $0x4] sm:$0xf]
  %v1936 = vld [vmem:[%s226 + $0x8] sm:$0xf]
  %v1937 = vld [vmem:[%s226 + $0xc] sm:$0xf]
  %v1938 = vld [vmem:[%s231] sm:$0x1]
  %v1940 = vlaneseq
  %v1941 = vshrl.u32 %v1940, 7
  %v1942 = vsub.s32 0, %v1941
  %v1943 = vrot.slane %v1938, %v1942
  %v1949 = vunpack.c.l.b16 %v1934
  %v1950 = vunpack.c.l.b16 %v1935
  %v1951 = vunpack.c.l.b16 %v1936
  %v1952 = vunpack.c.l.b16 %v1937
  %v1953 = vpack.c.b16 %v1950, %v1949
  %v1954 = vpack.c.b16 %v1952, %v1951
  %v1958 = vsel %vm71, %v1933, 0
  %1960 = vmatprep.subr.bf16.mxu0 0
  %1961 = vmatpush1.bf16.msra.mxu0 %v1953
  %1962 = vmatprep.subr.bf16.mxu0 0
  %1963 = vmatpush1.bf16.msra.mxu0 %v1954
  %1964 = vmatprep.subr.bf16.mxu0 0
  %1965 = vmatpush1.bf16.msra.mxu0 0
  %1966 = vmatprep.subr.bf16.mxu0 0
  %1967 = vmatpush1.bf16.msra.mxu0 0
  %1968 = vmatprep.subr.bf16.mxu0 0
  %1969 = vmatpush1.bf16.msra.mxu0 0
  %1970 = vmatprep.subr.bf16.mxu0 0
  %1971 = vmatpush1.bf16.msra.mxu0 0
  %1972 = vmatprep.subr.bf16.mxu0 0
  %1973 = vmatpush1.bf16.msra.mxu0 0
  %1974 = vmatprep.subr.bf16.mxu0 0
  %1975 = vmatpush1.bf16.msra.mxu0 0
  %1976 = vmatprep.subr.bf16.mxu0 0
  %1977 = vmatpush1.bf16.msra.mxu0 0
  %1978 = vmatprep.subr.bf16.mxu0 0
  %1979 = vmatpush1.bf16.msra.mxu0 0
  %1980 = vmatprep.subr.bf16.mxu0 0
  %1981 = vmatpush1.bf16.msra.mxu0 0
  %1982 = vmatprep.subr.bf16.mxu0 0
  %1983 = vmatpush1.bf16.msra.mxu0 0
  %1984 = vmatprep.subr.bf16.mxu0 0
  %1985 = vmatpush1.bf16.msra.mxu0 0
  %1986 = vmatprep.subr.bf16.mxu0 0
  %1987 = vmatpush1.bf16.msra.mxu0 0
  %1988 = vmatprep.subr.bf16.mxu0 0
  %1989 = vmatpush1.bf16.msra.mxu0 0
  %1990 = vmatprep.subr.bf16.mxu0 0
  %1991 = vmatpush1.bf16.msra.mxu0 0
  %1992 = vmatprep.mubr.bf16.mxu0 0
  %1993 = vmatmul.mubr.bf16.gmra.mrb[0].mxu0 %v1958
  %v1994 = vpop.f32.mrb[0].mxu0
  %v1995 = vadd.f32 %v1943, %v1994
  %v1996 = vpop.f32.mrb[0].mxu0
  %v1997 = vpop.f32.mrb[0].mxu0
  %v1998 = vpop.f32.mrb[0].mxu0
  %1999 = vdwg.mxu0
  %v2000 = vadd.f32 %v1927, %v1995
  %v2001 = vxor.u32 %v2000, 2147483648
  %v2002 = vmul.f32 %v2001, 1.442695
  %v2003 = vpow.pop %v2002
  %v2004 = vadd.f32 %v2003, 1.0
  %v2005 = vrcp.pop %v2004
  %v2006 = vmul.f32 1.0, %v2005
  %2008 = vrot.lane.b32.xlu0 %v1995, 64
  %v2009 = vpop.permute.xlu0 %2008
  %v2011 = vmul.f32 %v2006, %v2009
  %2013 = vrot.lane.b32.xlu0 %v2011, 64
  %v2014 = vpop.permute.xlu0 %2013
  %v2016 = vadd.f32 %v1927, %v2014
  %v2017 = vtanh.pop %v2016
  %v2018 = vsub.f32 1.0, %v2006
  %2020 = vrot.lane.b32.xlu0 %v2017, 96
  %v2021 = vpop.permute.xlu0 %2020
  %v2023 = vmul.f32 %v2018, %v2021
  %2025 = vrot.lane.b32.xlu0 %v1932, 32
  %v2026 = vpop.permute.xlu0 %2025
  %v2028 = vmul.f32 %v2006, %v2026
  %v2029 = vadd.f32 %v2023, %v2028
  %2031 = vrot.lane.b32.xlu0 %v2029, 96
  %v2032 = vpop.permute.xlu0 %2031
  %2034 = vst.msk [vmem:[%s223] sm:$0x3] %vm149, %v2032
  %v2035 = vld [vmem:[%s6] sm:$0x1]
  %v2037 = vlaneseq
  %v2038 = vshrl.u32 %v2037, 7
  %v2039 = vsub.s32 0, %v2038
  %v2040 = vrot.slane %v2035, %v2039
  %2041 = vrot.lane.b32.xlu0 %v2040, 32
  %v2042 = vpop.permute.xlu0 %2041
  %v2044 = vmul.f32 %v2029, %v2042
  %2046 = vrot.lane.b32.xlu0 %v2044, 96
  %v2047 = vpop.permute.xlu0 %2046
  %v2049 = vsel %vm149, %v2047, 0.0
  %2050 = vadd.xlane.f32.xlu0 %v2049
  %v2051 = vpop.xlane.xlu0 %2050
  %v2052 = vld [vmem:[#allocation6] sm:$0x1]
  %v2054 = vlaneseq
  %v2055 = vshrl.u32 %v2054, 7
  %v2056 = vsub.s32 0, %v2055
  %v2057 = vrot.slane %v2052, %v2056
  %v2059 = vadd.f32 %v2051, %v2057
  %v2060 = vstv %s1756
  %vm2061 = vcmp.lt.s32.totalorder %v2060, %v43
  %v2062 = vld [vmem:[#allocation3] sm:$0x3]
  %v2063 = vmax.f32 %v2062, %v2059
  %v2064 = vsel %vm2061, %v2063, %v2062
  %v2065 = vsub.f32 %v2062, %v2064
  %v2066 = vmul.f32 %v2065, 1.442695
  %v2067 = vpow.pop %v2066
  %v2068 = vsel %vm2061, %v2067, 1.0
  %v2069 = vsub.f32 %v2059, %v2064
  %v2070 = vmul.f32 %v2069, 1.442695
  %v2071 = vpow.pop %v2070
  %v2072 = vsel %vm2061, %v2071, 0.0
  %v2073 = vld [vmem:[#allocation4] sm:$0x3]
  %v2074 = vmul.f32 %v2068, %v2073
  %v2075 = vadd.f32 %v2074, %v2072
  %2076 = vst.msk [vmem:[#allocation4] sm:$0x3] %vm370, %v2075
  %v2077 = vld [vmem:[#allocation5] sm:$0x3]
  %2079 = vset.pattern.permute.xlu0 0
  %2080 = vperm.xlu0 %2079, %v2068
  %v2081 = vpop.permute.xlu0 %2080
  %v2083 = vmul.f32 %v2081, %v2077
  %2085 = vset.pattern.permute.xlu0 0
  %2086 = vperm.xlu0 %2085, %v2072
  %v2087 = vpop.permute.xlu0 %2086
  %v2089 = vmul.f32 %v2087, %v2029
  %2091 = vrot.lane.b32.xlu0 %v2089, 96
  %v2092 = vpop.permute.xlu0 %2091
  %v2094 = vadd.f32 %v2083, %v2092
  %2095 = vst.msk [vmem:[#allocation5] sm:$0x3] %vm149, %v2094
  %2096 = vst.msk [vmem:[#allocation3] sm:$0x3] %vm370, %v2064
  %s2097 = sadd.s32 %s44, 6
  %s2098 = scalar_lea.vmem %s0, 12
  %v2099 = vld [vmem:[%s2098] sm:$0x3]
  %v2100 = vld [vmem:[#allocation2] sm:$0x3]
  %v2101 = vpack.c.bf16 %v2100, %v2100
  %v2102 = vld [vmem:[%s3] sm:$0xf]
  %v2103 = vld [vmem:[%s3 + $0x4] sm:$0xf]
  %v2104 = vld [vmem:[%s3 + $0x8] sm:$0xf]
  %v2105 = vld [vmem:[%s3 + $0xc] sm:$0xf]
  %v2106 = vld [vmem:[%s5] sm:$0x1]
  %v2108 = vlaneseq
  %v2109 = vshrl.u32 %v2108, 7
  %v2110 = vsub.s32 0, %v2109
  %v2111 = vrot.slane %v2106, %v2110
  %v2117 = vunpack.c.l.b16 %v2102
  %v2118 = vunpack.c.l.b16 %v2103
  %v2119 = vunpack.c.l.b16 %v2104
  %v2120 = vunpack.c.l.b16 %v2105
  %v2121 = vpack.c.b16 %v2118, %v2117
  %v2122 = vpack.c.b16 %v2120, %v2119
  %v2126 = vsel %vm71, %v2101, 0
  %2128 = vmatprep.subr.bf16.mxu0 0
  %2129 = vmatpush1.bf16.msra.mxu0 %v2121
  %2130 = vmatprep.subr.bf16.mxu0 0
  %2131 = vmatpush1.bf16.msra.mxu0 %v2122
  %2132 = vmatprep.subr.bf16.mxu0 0
  %2133 = vmatpush1.bf16.msra.mxu0 0
  %2134 = vmatprep.subr.bf16.mxu0 0
  %2135 = vmatpush1.bf16.msra.mxu0 0
  %2136 = vmatprep.subr.bf16.mxu0 0
  %2137 = vmatpush1.bf16.msra.mxu0 0
  %2138 = vmatprep.subr.bf16.mxu0 0
  %2139 = vmatpush1.bf16.msra.mxu0 0
  %2140 = vmatprep.subr.bf16.mxu0 0
  %2141 = vmatpush1.bf16.msra.mxu0 0
  %2142 = vmatprep.subr.bf16.mxu0 0
  %2143 = vmatpush1.bf16.msra.mxu0 0
  %2144 = vmatprep.subr.bf16.mxu0 0
  %2145 = vmatpush1.bf16.msra.mxu0 0
  %2146 = vmatprep.subr.bf16.mxu0 0
  %2147 = vmatpush1.bf16.msra.mxu0 0
  %2148 = vmatprep.subr.bf16.mxu0 0
  %2149 = vmatpush1.bf16.msra.mxu0 0
  %2150 = vmatprep.subr.bf16.mxu0 0
  %2151 = vmatpush1.bf16.msra.mxu0 0
  %2152 = vmatprep.subr.bf16.mxu0 0
  %2153 = vmatpush1.bf16.msra.mxu0 0
  %2154 = vmatprep.subr.bf16.mxu0 0
  %2155 = vmatpush1.bf16.msra.mxu0 0
  %2156 = vmatprep.subr.bf16.mxu0 0
  %2157 = vmatpush1.bf16.msra.mxu0 0
  %2158 = vmatprep.subr.bf16.mxu0 0
  %2159 = vmatpush1.bf16.msra.mxu0 0
  %2160 = vmatprep.mubr.bf16.mxu0 0
  %2161 = vmatmul.mubr.bf16.gmra.mrb[0].mxu0 %v2126
  %v2162 = vpop.f32.mrb[0].mxu0
  %v2163 = vadd.f32 %v2111, %v2162
  %v2164 = vpop.f32.mrb[0].mxu0
  %v2165 = vpop.f32.mrb[0].mxu0
  %v2166 = vpop.f32.mrb[0].mxu0
  %2167 = vdwg.mxu0
  %v2168 = vadd.f32 %v2099, %v2163
  %v2169 = vxor.u32 %v2168, 2147483648
  %v2170 = vmul.f32 %v2169, 1.442695
  %v2171 = vpow.pop %v2170
  %v2172 = vadd.f32 %v2171, 1.0
  %v2173 = vrcp.pop %v2172
  %v2174 = vmul.f32 1.0, %v2173
  %2176 = vrot.lane.b32.xlu0 %v2163, 64
  %v2177 = vpop.permute.xlu0 %2176
  %v2179 = vmul.f32 %v2174, %v2177
  %2181 = vrot.lane.b32.xlu0 %v2179, 64
  %v2182 = vpop.permute.xlu0 %2181
  %v2184 = vadd.f32 %v2099, %v2182
  %v2185 = vtanh.pop %v2184
  %v2186 = vsub.f32 1.0, %v2174
  %2188 = vrot.lane.b32.xlu0 %v2185, 96
  %v2189 = vpop.permute.xlu0 %2188
  %v2191 = vmul.f32 %v2186, %v2189
  %2193 = vrot.lane.b32.xlu0 %v2100, 32
  %v2194 = vpop.permute.xlu0 %2193
  %v2196 = vmul.f32 %v2174, %v2194
  %v2197 = vadd.f32 %v2191, %v2196
  %2199 = vrot.lane.b32.xlu0 %v2197, 96
  %v2200 = vpop.permute.xlu0 %2199
  %2202 = vst.msk [vmem:[#allocation2] sm:$0x3] %vm149, %v2200
  %v2203 = vpack.c.bf16 %v2197, %v2197
  %v2204 = vld [vmem:[%s152] sm:$0xf]
  %v2205 = vld [vmem:[%s152 + $0x4] sm:$0xf]
  %v2206 = vld [vmem:[%s152 + $0x8] sm:$0xf]
  %v2207 = vld [vmem:[%s152 + $0xc] sm:$0xf]
  %v2208 = vld [vmem:[%s157] sm:$0x1]
  %v2210 = vlaneseq
  %v2211 = vshrl.u32 %v2210, 7
  %v2212 = vsub.s32 0, %v2211
  %v2213 = vrot.slane %v2208, %v2212
  %2216 = vrot.lane.b32.xlu0 %v2203, 96
  %v2217 = vpop.permute.xlu0 %2216
  %v2222 = vunpack.c.l.b16 %v2204
  %v2223 = vunpack.c.l.b16 %v2205
  %v2224 = vunpack.c.l.b16 %v2206
  %v2225 = vunpack.c.l.b16 %v2207
  %v2226 = vpack.c.b16 %v2223, %v2222
  %v2227 = vpack.c.b16 %v2225, %v2224
  %v2231 = vsel %vm71, %v2217, 0
  %2233 = vmatprep.subr.bf16.mxu0 0
  %2234 = vmatpush1.bf16.msra.mxu0 %v2226
  %2235 = vmatprep.subr.bf16.mxu0 0
  %2236 = vmatpush1.bf16.msra.mxu0 %v2227
  %2237 = vmatprep.subr.bf16.mxu0 0
  %2238 = vmatpush1.bf16.msra.mxu0 0
  %2239 = vmatprep.subr.bf16.mxu0 0
  %2240 = vmatpush1.bf16.msra.mxu0 0
  %2241 = vmatprep.subr.bf16.mxu0 0
  %2242 = vmatpush1.bf16.msra.mxu0 0
  %2243 = vmatprep.subr.bf16.mxu0 0
  %2244 = vmatpush1.bf16.msra.mxu0 0
  %2245 = vmatprep.subr.bf16.mxu0 0
  %2246 = vmatpush1.bf16.msra.mxu0 0
  %2247 = vmatprep.subr.bf16.mxu0 0
  %2248 = vmatpush1.bf16.msra.mxu0 0
  %2249 = vmatprep.subr.bf16.mxu0 0
  %2250 = vmatpush1.bf16.msra.mxu0 0
  %2251 = vmatprep.subr.bf16.mxu0 0
  %2252 = vmatpush1.bf16.msra.mxu0 0
  %2253 = vmatprep.subr.bf16.mxu0 0
  %2254 = vmatpush1.bf16.msra.mxu0 0
  %2255 = vmatprep.subr.bf16.mxu0 0
  %2256 = vmatpush1.bf16.msra.mxu0 0
  %2257 = vmatprep.subr.bf16.mxu0 0
  %2258 = vmatpush1.bf16.msra.mxu0 0
  %2259 = vmatprep.subr.bf16.mxu0 0
  %2260 = vmatpush1.bf16.msra.mxu0 0
  %2261 = vmatprep.subr.bf16.mxu0 0
  %2262 = vmatpush1.bf16.msra.mxu0 0
  %2263 = vmatprep.subr.bf16.mxu0 0
  %2264 = vmatpush1.bf16.msra.mxu0 0
  %2265 = vmatprep.mubr.bf16.mxu0 0
  %2266 = vmatmul.mubr.bf16.gmra.mrb[0].mxu0 %v2231
  %v2267 = vpop.f32.mrb[0].mxu0
  %v2268 = vadd.f32 %v2213, %v2267
  %v2269 = vpop.f32.mrb[0].mxu0
  %v2270 = vpop.f32.mrb[0].mxu0
  %v2271 = vpop.f32.mrb[0].mxu0
  %2272 = vdwg.mxu0
  %v2273 = vld [vmem:[%s223] sm:$0x3]
  %v2274 = vpack.c.bf16 %v2273, %v2273
  %v2275 = vld [vmem:[%s226] sm:$0xf]
  %v2276 = vld [vmem:[%s226 + $0x4] sm:$0xf]
  %v2277 = vld [vmem:[%s226 + $0x8] sm:$0xf]
  %v2278 = vld [vmem:[%s226 + $0xc] sm:$0xf]
  %v2279 = vld [vmem:[%s231] sm:$0x1]
  %v2281 = vlaneseq
  %v2282 = vshrl.u32 %v2281, 7
  %v2283 = vsub.s32 0, %v2282
  %v2284 = vrot.slane %v2279, %v2283
  %v2290 = vunpack.c.l.b16 %v2275
  %v2291 = vunpack.c.l.b16 %v2276
  %v2292 = vunpack.c.l.b16 %v2277
  %v2293 = vunpack.c.l.b16 %v2278
  %v2294 = vpack.c.b16 %v2291, %v2290
  %v2295 = vpack.c.b16 %v2293, %v2292
  %v2299 = vsel %vm71, %v2274, 0
  %2301 = vmatprep.subr.bf16.mxu0 0
  %2302 = vmatpush1.bf16.msra.mxu0 %v2294
  %2303 = vmatprep.subr.bf16.mxu0 0
  %2304 = vmatpush1.bf16.msra.mxu0 %v2295
  %2305 = vmatprep.subr.bf16.mxu0 0
  %2306 = vmatpush1.bf16.msra.mxu0 0
  %2307 = vmatprep.subr.bf16.mxu0 0
  %2308 = vmatpush1.bf16.msra.mxu0 0
  %2309 = vmatprep.subr.bf16.mxu0 0
  %2310 = vmatpush1.bf16.msra.mxu0 0
  %2311 = vmatprep.subr.bf16.mxu0 0
  %2312 = vmatpush1.bf16.msra.mxu0 0
  %2313 = vmatprep.subr.bf16.mxu0 0
  %2314 = vmatpush1.bf16.msra.mxu0 0
  %2315 = vmatprep.subr.bf16.mxu0 0
  %2316 = vmatpush1.bf16.msra.mxu0 0
  %2317 = vmatprep.subr.bf16.mxu0 0
  %2318 = vmatpush1.bf16.msra.mxu0 0
  %2319 = vmatprep.subr.bf16.mxu0 0
  %2320 = vmatpush1.bf16.msra.mxu0 0
  %2321 = vmatprep.subr.bf16.mxu0 0
  %2322 = vmatpush1.bf16.msra.mxu0 0
  %2323 = vmatprep.subr.bf16.mxu0 0
  %2324 = vmatpush1.bf16.msra.mxu0 0
  %2325 = vmatprep.subr.bf16.mxu0 0
  %2326 = vmatpush1.bf16.msra.mxu0 0
  %2327 = vmatprep.subr.bf16.mxu0 0
  %2328 = vmatpush1.bf16.msra.mxu0 0
  %2329 = vmatprep.subr.bf16.mxu0 0
  %2330 = vmatpush1.bf16.msra.mxu0 0
  %2331 = vmatprep.subr.bf16.mxu0 0
  %2332 = vmatpush1.bf16.msra.mxu0 0
  %2333 = vmatprep.mubr.bf16.mxu0 0
  %2334 = vmatmul.mubr.bf16.gmra.mrb[0].mxu0 %v2299
  %v2335 = vpop.f32.mrb[0].mxu0
  %v2336 = vadd.f32 %v2284, %v2335
  %v2337 = vpop.f32.mrb[0].mxu0
  %v2338 = vpop.f32.mrb[0].mxu0
  %v2339 = vpop.f32.mrb[0].mxu0
  %2340 = vdwg.mxu0
  %v2341 = vadd.f32 %v2268, %v2336
  %v2342 = vxor.u32 %v2341, 2147483648
  %v2343 = vmul.f32 %v2342, 1.442695
  %v2344 = vpow.pop %v2343
  %v2345 = vadd.f32 %v2344, 1.0
  %v2346 = vrcp.pop %v2345
  %v2347 = vmul.f32 1.0, %v2346
  %2349 = vrot.lane.b32.xlu0 %v2336, 64
  %v2350 = vpop.permute.xlu0 %2349
  %v2352 = vmul.f32 %v2347, %v2350
  %2354 = vrot.lane.b32.xlu0 %v2352, 64
  %v2355 = vpop.permute.xlu0 %2354
  %v2357 = vadd.f32 %v2268, %v2355
  %v2358 = vtanh.pop %v2357
  %v2359 = vsub.f32 1.0, %v2347
  %2361 = vrot.lane.b32.xlu0 %v2358, 96
  %v2362 = vpop.permute.xlu0 %2361
  %v2364 = vmul.f32 %v2359, %v2362
  %2366 = vrot.lane.b32.xlu0 %v2273, 32
  %v2367 = vpop.permute.xlu0 %2366
  %v2369 = vmul.f32 %v2347, %v2367
  %v2370 = vadd.f32 %v2364, %v2369
  %2372 = vrot.lane.b32.xlu0 %v2370, 96
  %v2373 = vpop.permute.xlu0 %2372
  %2375 = vst.msk [vmem:[%s223] sm:$0x3] %vm149, %v2373
  %v2376 = vld [vmem:[%s6] sm:$0x1]
  %v2378 = vlaneseq
  %v2379 = vshrl.u32 %v2378, 7
  %v2380 = vsub.s32 0, %v2379
  %v2381 = vrot.slane %v2376, %v2380
  %2382 = vrot.lane.b32.xlu0 %v2381, 32
  %v2383 = vpop.permute.xlu0 %2382
  %v2385 = vmul.f32 %v2370, %v2383
  %2387 = vrot.lane.b32.xlu0 %v2385, 96
  %v2388 = vpop.permute.xlu0 %2387
  %v2390 = vsel %vm149, %v2388, 0.0
  %2391 = vadd.xlane.f32.xlu0 %v2390
  %v2392 = vpop.xlane.xlu0 %2391
  %v2393 = vld [vmem:[#allocation6] sm:$0x1]
  %v2395 = vlaneseq
  %v2396 = vshrl.u32 %v2395, 7
  %v2397 = vsub.s32 0, %v2396
  %v2398 = vrot.slane %v2393, %v2397
  %v2400 = vadd.f32 %v2392, %v2398
  %v2401 = vstv %s2097
  %vm2402 = vcmp.lt.s32.totalorder %v2401, %v43
  %v2403 = vld [vmem:[#allocation3] sm:$0x3]
  %v2404 = vmax.f32 %v2403, %v2400
  %v2405 = vsel %vm2402, %v2404, %v2403
  %v2406 = vsub.f32 %v2403, %v2405
  %v2407 = vmul.f32 %v2406, 1.442695
  %v2408 = vpow.pop %v2407
  %v2409 = vsel %vm2402, %v2408, 1.0
  %v2410 = vsub.f32 %v2400, %v2405
  %v2411 = vmul.f32 %v2410, 1.442695
  %v2412 = vpow.pop %v2411
  %v2413 = vsel %vm2402, %v2412, 0.0
  %v2414 = vld [vmem:[#allocation4] sm:$0x3]
  %v2415 = vmul.f32 %v2409, %v2414
  %v2416 = vadd.f32 %v2415, %v2413
  %2417 = vst.msk [vmem:[#allocation4] sm:$0x3] %vm370, %v2416
  %v2418 = vld [vmem:[#allocation5] sm:$0x3]
  %2420 = vset.pattern.permute.xlu0 0
  %2421 = vperm.xlu0 %2420, %v2409
  %v2422 = vpop.permute.xlu0 %2421
  %v2424 = vmul.f32 %v2422, %v2418
  %2426 = vset.pattern.permute.xlu0 0
  %2427 = vperm.xlu0 %2426, %v2413
  %v2428 = vpop.permute.xlu0 %2427
  %v2430 = vmul.f32 %v2428, %v2370
  %2432 = vrot.lane.b32.xlu0 %v2430, 96
  %v2433 = vpop.permute.xlu0 %2432
  %v2435 = vadd.f32 %v2424, %v2433
  %2436 = vst.msk [vmem:[#allocation5] sm:$0x3] %vm149, %v2435
  %2437 = vst.msk [vmem:[#allocation3] sm:$0x3] %vm370, %v2405
  %s2438 = sadd.s32 %s44, 7
  %s2439 = scalar_lea.vmem %s0, 14
  %v2440 = vld [vmem:[%s2439] sm:$0x3]
  %v2441 = vld [vmem:[#allocation2] sm:$0x3]
  %v2442 = vpack.c.bf16 %v2441, %v2441
  %v2443 = vld [vmem:[%s3] sm:$0xf]
  %v2444 = vld [vmem:[%s3 + $0x4] sm:$0xf]
  %v2445 = vld [vmem:[%s3 + $0x8] sm:$0xf]
  %v2446 = vld [vmem:[%s3 + $0xc] sm:$0xf]
  %v2447 = vld [vmem:[%s5] sm:$0x1]
  %v2449 = vlaneseq
  %v2450 = vshrl.u32 %v2449, 7
  %v2451 = vsub.s32 0, %v2450
  %v2452 = vrot.slane %v2447, %v2451
  %v2458 = vunpack.c.l.b16 %v2443
  %v2459 = vunpack.c.l.b16 %v2444
  %v2460 = vunpack.c.l.b16 %v2445
  %v2461 = vunpack.c.l.b16 %v2446
  %v2462 = vpack.c.b16 %v2459, %v2458
  %v2463 = vpack.c.b16 %v2461, %v2460
  %v2467 = vsel %vm71, %v2442, 0
  %2469 = vmatprep.subr.bf16.mxu0 0
  %2470 = vmatpush1.bf16.msra.mxu0 %v2462
  %2471 = vmatprep.subr.bf16.mxu0 0
  %2472 = vmatpush1.bf16.msra.mxu0 %v2463
  %2473 = vmatprep.subr.bf16.mxu0 0
  %2474 = vmatpush1.bf16.msra.mxu0 0
  %2475 = vmatprep.subr.bf16.mxu0 0
  %2476 = vmatpush1.bf16.msra.mxu0 0
  %2477 = vmatprep.subr.bf16.mxu0 0
  %2478 = vmatpush1.bf16.msra.mxu0 0
  %2479 = vmatprep.subr.bf16.mxu0 0
  %2480 = vmatpush1.bf16.msra.mxu0 0
  %2481 = vmatprep.subr.bf16.mxu0 0
  %2482 = vmatpush1.bf16.msra.mxu0 0
  %2483 = vmatprep.subr.bf16.mxu0 0
  %2484 = vmatpush1.bf16.msra.mxu0 0
  %2485 = vmatprep.subr.bf16.mxu0 0
  %2486 = vmatpush1.bf16.msra.mxu0 0
  %2487 = vmatprep.subr.bf16.mxu0 0
  %2488 = vmatpush1.bf16.msra.mxu0 0
  %2489 = vmatprep.subr.bf16.mxu0 0
  %2490 = vmatpush1.bf16.msra.mxu0 0
  %2491 = vmatprep.subr.bf16.mxu0 0
  %2492 = vmatpush1.bf16.msra.mxu0 0
  %2493 = vmatprep.subr.bf16.mxu0 0
  %2494 = vmatpush1.bf16.msra.mxu0 0
  %2495 = vmatprep.subr.bf16.mxu0 0
  %2496 = vmatpush1.bf16.msra.mxu0 0
  %2497 = vmatprep.subr.bf16.mxu0 0
  %2498 = vmatpush1.bf16.msra.mxu0 0
  %2499 = vmatprep.subr.bf16.mxu0 0
  %2500 = vmatpush1.bf16.msra.mxu0 0
  %2501 = vmatprep.mubr.bf16.mxu0 0
  %2502 = vmatmul.mubr.bf16.gmra.mrb[0].mxu0 %v2467
  %v2503 = vpop.f32.mrb[0].mxu0
  %v2504 = vadd.f32 %v2452, %v2503
  %v2505 = vpop.f32.mrb[0].mxu0
  %v2506 = vpop.f32.mrb[0].mxu0
  %v2507 = vpop.f32.mrb[0].mxu0
  %2508 = vdwg.mxu0
  %v2509 = vadd.f32 %v2440, %v2504
  %v2510 = vxor.u32 %v2509, 2147483648
  %v2511 = vmul.f32 %v2510, 1.442695
  %v2512 = vpow.pop %v2511
  %v2513 = vadd.f32 %v2512, 1.0
  %v2514 = vrcp.pop %v2513
  %v2515 = vmul.f32 1.0, %v2514
  %2517 = vrot.lane.b32.xlu0 %v2504, 64
  %v2518 = vpop.permute.xlu0 %2517
  %v2520 = vmul.f32 %v2515, %v2518
  %2522 = vrot.lane.b32.xlu0 %v2520, 64
  %v2523 = vpop.permute.xlu0 %2522
  %v2525 = vadd.f32 %v2440, %v2523
  %v2526 = vtanh.pop %v2525
  %v2527 = vsub.f32 1.0, %v2515
  %2529 = vrot.lane.b32.xlu0 %v2526, 96
  %v2530 = vpop.permute.xlu0 %2529
  %v2532 = vmul.f32 %v2527, %v2530
  %2534 = vrot.lane.b32.xlu0 %v2441, 32
  %v2535 = vpop.permute.xlu0 %2534
  %v2537 = vmul.f32 %v2515, %v2535
  %v2538 = vadd.f32 %v2532, %v2537
  %2540 = vrot.lane.b32.xlu0 %v2538, 96
  %v2541 = vpop.permute.xlu0 %2540
  %2543 = vst.msk [vmem:[#allocation2] sm:$0x3] %vm149, %v2541
  %v2544 = vpack.c.bf16 %v2538, %v2538
  %v2545 = vld [vmem:[%s152] sm:$0xf]
  %v2546 = vld [vmem:[%s152 + $0x4] sm:$0xf]
  %v2547 = vld [vmem:[%s152 + $0x8] sm:$0xf]
  %v2548 = vld [vmem:[%s152 + $0xc] sm:$0xf]
  %v2549 = vld [vmem:[%s157] sm:$0x1]
  %v2551 = vlaneseq
  %v2552 = vshrl.u32 %v2551, 7
  %v2553 = vsub.s32 0, %v2552
  %v2554 = vrot.slane %v2549, %v2553
  %2557 = vrot.lane.b32.xlu0 %v2544, 96
  %v2558 = vpop.permute.xlu0 %2557
  %v2563 = vunpack.c.l.b16 %v2545
  %v2564 = vunpack.c.l.b16 %v2546
  %v2565 = vunpack.c.l.b16 %v2547
  %v2566 = vunpack.c.l.b16 %v2548
  %v2567 = vpack.c.b16 %v2564, %v2563
  %v2568 = vpack.c.b16 %v2566, %v2565
  %v2572 = vsel %vm71, %v2558, 0
  %2574 = vmatprep.subr.bf16.mxu0 0
  %2575 = vmatpush1.bf16.msra.mxu0 %v2567
  %2576 = vmatprep.subr.bf16.mxu0 0
  %2577 = vmatpush1.bf16.msra.mxu0 %v2568
  %2578 = vmatprep.subr.bf16.mxu0 0
  %2579 = vmatpush1.bf16.msra.mxu0 0
  %2580 = vmatprep.subr.bf16.mxu0 0
  %2581 = vmatpush1.bf16.msra.mxu0 0
  %2582 = vmatprep.subr.bf16.mxu0 0
  %2583 = vmatpush1.bf16.msra.mxu0 0
  %2584 = vmatprep.subr.bf16.mxu0 0
  %2585 = vmatpush1.bf16.msra.mxu0 0
  %2586 = vmatprep.subr.bf16.mxu0 0
  %2587 = vmatpush1.bf16.msra.mxu0 0
  %2588 = vmatprep.subr.bf16.mxu0 0
  %2589 = vmatpush1.bf16.msra.mxu0 0
  %2590 = vmatprep.subr.bf16.mxu0 0
  %2591 = vmatpush1.bf16.msra.mxu0 0
  %2592 = vmatprep.subr.bf16.mxu0 0
  %2593 = vmatpush1.bf16.msra.mxu0 0
  %2594 = vmatprep.subr.bf16.mxu0 0
  %2595 = vmatpush1.bf16.msra.mxu0 0
  %2596 = vmatprep.subr.bf16.mxu0 0
  %2597 = vmatpush1.bf16.msra.mxu0 0
  %2598 = vmatprep.subr.bf16.mxu0 0
  %2599 = vmatpush1.bf16.msra.mxu0 0
  %2600 = vmatprep.subr.bf16.mxu0 0
  %2601 = vmatpush1.bf16.msra.mxu0 0
  %2602 = vmatprep.subr.bf16.mxu0 0
  %2603 = vmatpush1.bf16.msra.mxu0 0
  %2604 = vmatprep.subr.bf16.mxu0 0
  %2605 = vmatpush1.bf16.msra.mxu0 0
  %2606 = vmatprep.mubr.bf16.mxu0 0
  %2607 = vmatmul.mubr.bf16.gmra.mrb[0].mxu0 %v2572
  %v2608 = vpop.f32.mrb[0].mxu0
  %v2609 = vadd.f32 %v2554, %v2608
  %v2610 = vpop.f32.mrb[0].mxu0
  %v2611 = vpop.f32.mrb[0].mxu0
  %v2612 = vpop.f32.mrb[0].mxu0
  %2613 = vdwg.mxu0
  %v2614 = vld [vmem:[%s223] sm:$0x3]
  %v2615 = vpack.c.bf16 %v2614, %v2614
  %v2616 = vld [vmem:[%s226] sm:$0xf]
  %v2617 = vld [vmem:[%s226 + $0x4] sm:$0xf]
  %v2618 = vld [vmem:[%s226 + $0x8] sm:$0xf]
  %v2619 = vld [vmem:[%s226 + $0xc] sm:$0xf]
  %v2620 = vld [vmem:[%s231] sm:$0x1]
  %v2622 = vlaneseq
  %v2623 = vshrl.u32 %v2622, 7
  %v2624 = vsub.s32 0, %v2623
  %v2625 = vrot.slane %v2620, %v2624
  %v2631 = vunpack.c.l.b16 %v2616
  %v2632 = vunpack.c.l.b16 %v2617
  %v2633 = vunpack.c.l.b16 %v2618
  %v2634 = vunpack.c.l.b16 %v2619
  %v2635 = vpack.c.b16 %v2632, %v2631
  %v2636 = vpack.c.b16 %v2634, %v2633
  %v2640 = vsel %vm71, %v2615, 0
  %2642 = vmatprep.subr.bf16.mxu0 0
  %2643 = vmatpush1.bf16.msra.mxu0 %v2635
  %2644 = vmatprep.subr.bf16.mxu0 0
  %2645 = vmatpush1.bf16.msra.mxu0 %v2636
  %2646 = vmatprep.subr.bf16.mxu0 0
  %2647 = vmatpush1.bf16.msra.mxu0 0
  %2648 = vmatprep.subr.bf16.mxu0 0
  %2649 = vmatpush1.bf16.msra.mxu0 0
  %2650 = vmatprep.subr.bf16.mxu0 0
  %2651 = vmatpush1.bf16.msra.mxu0 0
  %2652 = vmatprep.subr.bf16.mxu0 0
  %2653 = vmatpush1.bf16.msra.mxu0 0
  %2654 = vmatprep.subr.bf16.mxu0 0
  %2655 = vmatpush1.bf16.msra.mxu0 0
  %2656 = vmatprep.subr.bf16.mxu0 0
  %2657 = vmatpush1.bf16.msra.mxu0 0
  %2658 = vmatprep.subr.bf16.mxu0 0
  %2659 = vmatpush1.bf16.msra.mxu0 0
  %2660 = vmatprep.subr.bf16.mxu0 0
  %2661 = vmatpush1.bf16.msra.mxu0 0
  %2662 = vmatprep.subr.bf16.mxu0 0
  %2663 = vmatpush1.bf16.msra.mxu0 0
  %2664 = vmatprep.subr.bf16.mxu0 0
  %2665 = vmatpush1.bf16.msra.mxu0 0
  %2666 = vmatprep.subr.bf16.mxu0 0
  %2667 = vmatpush1.bf16.msra.mxu0 0
  %2668 = vmatprep.subr.bf16.mxu0 0
  %2669 = vmatpush1.bf16.msra.mxu0 0
  %2670 = vmatprep.subr.bf16.mxu0 0
  %2671 = vmatpush1.bf16.msra.mxu0 0
  %2672 = vmatprep.subr.bf16.mxu0 0
  %2673 = vmatpush1.bf16.msra.mxu0 0
  %2674 = vmatprep.mubr.bf16.mxu0 0
  %2675 = vmatmul.mubr.bf16.gmra.mrb[0].mxu0 %v2640
  %v2676 = vpop.f32.mrb[0].mxu0
  %v2677 = vadd.f32 %v2625, %v2676
  %v2678 = vpop.f32.mrb[0].mxu0
  %v2679 = vpop.f32.mrb[0].mxu0
  %v2680 = vpop.f32.mrb[0].mxu0
  %2681 = vdwg.mxu0
  %v2682 = vadd.f32 %v2609, %v2677
  %v2683 = vxor.u32 %v2682, 2147483648
  %v2684 = vmul.f32 %v2683, 1.442695
  %v2685 = vpow.pop %v2684
  %v2686 = vadd.f32 %v2685, 1.0
  %v2687 = vrcp.pop %v2686
  %v2688 = vmul.f32 1.0, %v2687
  %2690 = vrot.lane.b32.xlu0 %v2677, 64
  %v2691 = vpop.permute.xlu0 %2690
  %v2693 = vmul.f32 %v2688, %v2691
  %2695 = vrot.lane.b32.xlu0 %v2693, 64
  %v2696 = vpop.permute.xlu0 %2695
  %v2698 = vadd.f32 %v2609, %v2696
  %v2699 = vtanh.pop %v2698
  %v2700 = vsub.f32 1.0, %v2688
  %2702 = vrot.lane.b32.xlu0 %v2699, 96
  %v2703 = vpop.permute.xlu0 %2702
  %v2705 = vmul.f32 %v2700, %v2703
  %2707 = vrot.lane.b32.xlu0 %v2614, 32
  %v2708 = vpop.permute.xlu0 %2707
  %v2710 = vmul.f32 %v2688, %v2708
  %v2711 = vadd.f32 %v2705, %v2710
  %2713 = vrot.lane.b32.xlu0 %v2711, 96
  %v2714 = vpop.permute.xlu0 %2713
  %2716 = vst.msk [vmem:[%s223] sm:$0x3] %vm149, %v2714
  %v2717 = vld [vmem:[%s6] sm:$0x1]
  %v2719 = vlaneseq
  %v2720 = vshrl.u32 %v2719, 7
  %v2721 = vsub.s32 0, %v2720
  %v2722 = vrot.slane %v2717, %v2721
  %2723 = vrot.lane.b32.xlu0 %v2722, 32
  %v2724 = vpop.permute.xlu0 %2723
  %v2726 = vmul.f32 %v2711, %v2724
  %2728 = vrot.lane.b32.xlu0 %v2726, 96
  %v2729 = vpop.permute.xlu0 %2728
  %v2731 = vsel %vm149, %v2729, 0.0
  %2732 = vadd.xlane.f32.xlu0 %v2731
  %v2733 = vpop.xlane.xlu0 %2732
  %v2734 = vld [vmem:[#allocation6] sm:$0x1]
  %v2736 = vlaneseq
  %v2737 = vshrl.u32 %v2736, 7
  %v2738 = vsub.s32 0, %v2737
  %v2739 = vrot.slane %v2734, %v2738
  %v2741 = vadd.f32 %v2733, %v2739
  %v2742 = vstv %s2438
  %vm2743 = vcmp.lt.s32.totalorder %v2742, %v43
  %v2744 = vld [vmem:[#allocation3] sm:$0x3]
  %v2745 = vmax.f32 %v2744, %v2741
  %v2746 = vsel %vm2743, %v2745, %v2744
  %v2747 = vsub.f32 %v2744, %v2746
  %v2748 = vmul.f32 %v2747, 1.442695
  %v2749 = vpow.pop %v2748
  %v2750 = vsel %vm2743, %v2749, 1.0
  %v2751 = vsub.f32 %v2741, %v2746
  %v2752 = vmul.f32 %v2751, 1.442695
  %v2753 = vpow.pop %v2752
  %v2754 = vsel %vm2743, %v2753, 0.0
  %v2755 = vld [vmem:[#allocation4] sm:$0x3]
  %v2756 = vmul.f32 %v2750, %v2755
  %v2757 = vadd.f32 %v2756, %v2754
  %2758 = vst.msk [vmem:[#allocation4] sm:$0x3] %vm370, %v2757
  %v2759 = vld [vmem:[#allocation5] sm:$0x3]
  %2761 = vset.pattern.permute.xlu0 0
  %2762 = vperm.xlu0 %2761, %v2750
  %v2763 = vpop.permute.xlu0 %2762
  %v2765 = vmul.f32 %v2763, %v2759
  %2767 = vset.pattern.permute.xlu0 0
  %2768 = vperm.xlu0 %2767, %v2754
  %v2769 = vpop.permute.xlu0 %2768
  %v2771 = vmul.f32 %v2769, %v2711
  %2773 = vrot.lane.b32.xlu0 %v2771, 96
  %v2774 = vpop.permute.xlu0 %2773
  %v2776 = vadd.f32 %v2765, %v2774
  %2777 = vst.msk [vmem:[#allocation5] sm:$0x3] %vm149, %v2776
  %2778 = vst.msk [vmem:[#allocation3] sm:$0x3] %vm370, %v2746
  // Predicated region
  $region38: #{gru_self_forward.3} parent=0 // pred_check
    %p2779 = pneg %p32
  $region39: #{gru_self_forward.3} parent=0 // pred_check_branch
    %2781 = sbr.rel (%p2779) target = $region41
  $region40: #{gru_self_forward.3} parent=0 // pred_region
    %v2782 = vld [vmem:[#allocation5] sm:$0x3]
    %v2783 = vld [vmem:[#allocation4] sm:$0x3]
    %2785 = vset.pattern.permute.xlu0 0
    %2786 = vperm.xlu0 %2785, %v2783
    %v2787 = vpop.permute.xlu0 %2786
    %v2789 = vrcp.pop %v2787
    %v2790 = vmul.f32 %v2782, %v2789
    %2791 = vst.msk [vmem:[%s8] sm:$0x3] %vm149, %v2790
  $region41: #{gru_self_forward.3} parent=0 // pred_fallthru
    _
  // Predicated region
  $region42: #{gru_self_forward.3} parent=0 // pred_check
    _
  $region43: #{gru_self_forward.3} parent=0 // pred_check_branch
    %2793 = sbr.rel (0) target = $region45
  $region44: #{gru_self_forward.3} parent=0 // pred_region
    _
  $region45: #{gru_self_forward.3} parent=0 // pred_fallthru
    _
  // Predicated region
  $region46: #{gru_self_forward.3} parent=0 // pred_check
    _
  $region47: #{gru_self_forward.3} parent=0 // pred_check_branch
    %2795 = sbr.rel (0) target = $region49
  $region48: #{gru_self_forward.3} parent=0 // pred_region
    _
  $region49: #{gru_self_forward.3} parent=0 // pred_fallthru
    _

</llo_original>
